<compile_context>
chip_gen: v7x
topology: tpu7x:2x2x1
jax: 0.10.0
libtpu: 0.0.40
codegen_flags: <defaults>
</compile_context>

<pallas_src>
import jax
import jax.numpy as jnp
from jax.experimental import pallas as pl
from jax.experimental.pallas import tpu as pltpu

# ----------------------------- problem sizes --------------------------------
B, C = 2, 2            # nb_samples, nb_channels
S, L = 8, 64           # nb_slices, samples per slice  -> N = S * L = 512
F, M = 8, 128          # sliCQ frequency bins, time bins per slice
FM = F * M             # 1024
H = 128                # hidden width of the synthetic target model (lane-dense)
TARGETS = ("vocals", "drums")
T = len(TARGETS)
EPS = 1e-8
ROWS = B * C * S       # 32 frame-rows


# ------------------------------- fused kernel --------------------------------
def _separator_target_kernel(frames_ref, a_ref, w1_ref, b1_ref, w2_ref, b2_ref,
                             syn_ref, out_ref):
    """One grid step == one target: nsgt -> |.| -> model -> phasemix -> insgt."""
    # NSGT-like analysis: complex matmul, real/imag folded into one MXU op.
    frames = frames_ref[...].astype(jnp.bfloat16)                        # (ROWS, L)
    x = jnp.dot(frames, a_ref[0], preferred_element_type=jnp.float32)    # (ROWS, 2*FM)
    xr = x[:, :FM]
    xi = x[:, FM:]

    # ComplexNorm (mono=False since nb_channels == 2): |X| = sqrt(re^2 + im^2)
    xmag = jnp.sqrt(xr * xr + xi * xi)                                   # (ROWS, FM)

    # Synthetic per-target spectrogram model: 2-layer ReLU MLP over F*M.
    h = jnp.maximum(
        jnp.dot(xmag.astype(jnp.bfloat16), w1_ref[0],
                preferred_element_type=jnp.float32) + b1_ref[0], 0.0)    # (ROWS, H)
    ymag = jnp.maximum(
        jnp.dot(h.astype(jnp.bfloat16), w2_ref[0],
                preferred_element_type=jnp.float32) + b2_ref[0], 0.0)    # (ROWS, FM)

    # phasemix_sep: Y = Ymag * exp(i*angle(X)) = Ymag * X / |X|.
    # Reuse xmag; approx reciprocal runs on the otherwise-idle EUP slot.
    scale = ymag * pl.reciprocal(xmag + EPS, approx=True)
    yc = jnp.concatenate([scale * xr, scale * xi], axis=-1)              # (ROWS, 2*FM)

    # insgt-like synthesis back to time-domain frames; syn already packs
    # [s_r; -s_i] so this is the real part of the complex synthesis.
    out_ref[0] = jnp.dot(yc.astype(jnp.bfloat16), syn_ref[0],
                         preferred_element_type=jnp.float32)             # (ROWS, L)


# ------------------------------ parameters ----------------------------------
def init_params(key):
    ks = jax.random.split(key, 8)
    a_r = jax.random.normal(ks[0], (T, L, FM), jnp.float32) * (1.0 / L ** 0.5)
    a_i = jax.random.normal(ks[1], (T, L, FM), jnp.float32) * (1.0 / L ** 0.5)
    s_r = jax.random.normal(ks[2], (T, FM, L), jnp.float32) * (1.0 / FM ** 0.5)
    s_i = jax.random.normal(ks[3], (T, FM, L), jnp.float32) * (1.0 / FM ** 0.5)
    w1 = jax.random.normal(ks[4], (T, FM, H), jnp.float32) * (1.0 / FM ** 0.5)
    b1 = jax.random.normal(ks[5], (T, 1, H), jnp.float32) * 0.01
    w2 = jax.random.normal(ks[6], (T, H, FM), jnp.float32) * (1.0 / H ** 0.5)
    b2 = jax.random.normal(ks[7], (T, 1, FM), jnp.float32) * 0.01
    return dict(
        # analysis filterbank, real/imag concatenated along the lane axis
        a=jnp.concatenate([a_r, a_i], axis=-1).astype(jnp.bfloat16),     # (T, L, 2FM)
        # synthesis filterbank: real part of complex synthesis = Yr@s_r - Yi@s_i
        syn=jnp.concatenate([s_r, -s_i], axis=1).astype(jnp.bfloat16),   # (T, 2FM, L)
        w1=w1.astype(jnp.bfloat16), b1=b1,
        w2=w2.astype(jnp.bfloat16), b2=b2,
    )


# ------------------------------ forward pass ---------------------------------
def separator_forward(audio, params):
    """audio: (B, C, N) -> estimates: (B, nb_targets, C, N)"""
    nb_samples, nb_channels, n_samples = audio.shape
    assert n_samples == S * L and nb_samples * nb_channels * S == ROWS

    # Free view: (B, C, S*L) -> (B*C*S, L); L is already the minor axis.
    frames = audio.reshape(ROWS, L)

    out = pl.pallas_call(
        _separator_target_kernel,
        grid=(T,),
        in_specs=[
            pl.BlockSpec((ROWS, L), lambda t: (0, 0)),          # frames (shared)
            pl.BlockSpec((1, L, 2 * FM), lambda t: (t, 0, 0)),  # analysis fb
            pl.BlockSpec((1, FM, H), lambda t: (t, 0, 0)),      # w1
            pl.BlockSpec((1, 1, H), lambda t: (t, 0, 0)),       # b1
            pl.BlockSpec((1, H, FM), lambda t: (t, 0, 0)),      # w2
            pl.BlockSpec((1, 1, FM), lambda t: (t, 0, 0)),      # b2
            pl.BlockSpec((1, 2 * FM, L), lambda t: (t, 0, 0)),  # synthesis fb
        ],
        out_specs=pl.BlockSpec((1, ROWS, L), lambda t: (t, 0, 0)),
        out_shape=jax.ShapeDtypeStruct((T, ROWS, L), jnp.float32),
        compiler_params=pltpu.CompilerParams(
            dimension_semantics=("parallel",)),
    )(frames, params["a"], params["w1"], params["b1"], params["w2"],
      params["b2"], params["syn"])

    # (T, B*C*S, L) -> (T, B, C, N) -> (B, T, C, N)  == estimates.permute(0,3,1,2)
    y = out.reshape(T, nb_samples, nb_channels, n_samples)
    return jnp.transpose(y, (1, 0, 2, 3))


# --------------------------------- main --------------------------------------
if __name__ == "__main__":
    key = jax.random.PRNGKey(0)
    k_audio, k_params = jax.random.split(key)

    audio = jax.random.normal(k_audio, (B, C, S * L), jnp.float32)
    params = init_params(k_params)

    fwd = jax.jit(separator_forward)
    estimates = jax.block_until_ready(fwd(audio, params))

    assert estimates.shape == (B, T, C, S * L), estimates.shape
    assert estimates.dtype == jnp.float32
    assert bool(jnp.all(jnp.isfinite(estimates)))
    print("KERNEL_OK")
</pallas_src>

<mosaic_0001>
module attributes {stable_mosaic.version = 11 : i64} {
  func.func @_separator_target_kernel(%arg0: i32, %arg1: memref<32x64xf32, #tpu.memory_space<vmem>>, %arg2: memref<1x64x2048xbf16, #tpu.memory_space<vmem>>, %arg3: memref<1x1024x128xbf16, #tpu.memory_space<vmem>>, %arg4: memref<1x1x128xf32, #tpu.memory_space<vmem>>, %arg5: memref<1x128x1024xbf16, #tpu.memory_space<vmem>>, %arg6: memref<1x1x1024xf32, #tpu.memory_space<vmem>>, %arg7: memref<1x2048x64xbf16, #tpu.memory_space<vmem>>, %arg8: memref<1x32x64xf32, #tpu.memory_space<vmem>>) attributes {dimension_semantics = [#tpu.dimension_semantics<parallel>], iteration_bounds = array<i64: 2>, scalar_prefetch = 0 : i64, scratch_operands = 0 : i64, tpu.core_type = #tpu.core_type<tc>, window_params = [{pipeline_mode = #tpu.pipeline_mode<synchronous>, transform_indices = @transform_0, window_bounds = array<i64: 32, 64>}, {transform_indices = @transform_1, window_bounds = array<i64: 1, 64, 2048>}, {transform_indices = @transform_2, window_bounds = array<i64: 1, 1024, 128>}, {transform_indices = @transform_3, window_bounds = array<i64: 1, 1, 128>}, {transform_indices = @transform_4, window_bounds = array<i64: 1, 128, 1024>}, {transform_indices = @transform_5, window_bounds = array<i64: 1, 1, 1024>}, {transform_indices = @transform_6, window_bounds = array<i64: 1, 2048, 64>}, {transform_indices = @transform_7, window_bounds = array<i64: 1, 32, 64>}]} {
    %c0 = arith.constant 0 : index
    %c0_0 = arith.constant 0 : index
    %0 = vector.load %arg1[%c0, %c0_0] : memref<32x64xf32, #tpu.memory_space<vmem>>, vector<32x64xf32>
    %1 = arith.truncf %0 : vector<32x64xf32> to vector<32x64xbf16>
    %c0_1 = arith.constant 0 : index
    %c0_2 = arith.constant 0 : index
    %c0_3 = arith.constant 0 : index
    %2 = vector.load %arg2[%c0_1, %c0_2, %c0_3] : memref<1x64x2048xbf16, #tpu.memory_space<vmem>>, vector<1x64x2048xbf16>
    %3 = vector.shape_cast %2 : vector<1x64x2048xbf16> to vector<64x2048xbf16>
    %cst = arith.constant dense<0.000000e+00> : vector<32x2048xf32>
    %4 = tpu.matmul %1, %3, %cst {dimension_numbers = #tpu.dot_dimension_numbers<[1], [0], [0], [1], [0, 0, 1, 1], [], []>} : vector<32x64xbf16>, vector<64x2048xbf16>, vector<32x2048xf32> -> vector<32x2048xf32>
    %5 = vector.extract_strided_slice %4 {offsets = [0, 0], sizes = [32, 1024], strides = [1, 1]} : vector<32x2048xf32> to vector<32x1024xf32>
    %6 = vector.extract_strided_slice %4 {offsets = [0, 1024], sizes = [32, 1024], strides = [1, 1]} : vector<32x2048xf32> to vector<32x1024xf32>
    %7 = arith.mulf %5, %5 : vector<32x1024xf32>
    %8 = arith.mulf %6, %6 : vector<32x1024xf32>
    %9 = arith.addf %7, %8 : vector<32x1024xf32>
    %10 = math.sqrt %9 : vector<32x1024xf32>
    %11 = arith.truncf %10 : vector<32x1024xf32> to vector<32x1024xbf16>
    %c0_4 = arith.constant 0 : index
    %c0_5 = arith.constant 0 : index
    %c0_6 = arith.constant 0 : index
    %12 = vector.load %arg3[%c0_4, %c0_5, %c0_6] : memref<1x1024x128xbf16, #tpu.memory_space<vmem>>, vector<1x1024x128xbf16>
    %13 = vector.shape_cast %12 : vector<1x1024x128xbf16> to vector<1024x128xbf16>
    %cst_7 = arith.constant dense<0.000000e+00> : vector<32x128xf32>
    %14 = tpu.matmul %11, %13, %cst_7 {dimension_numbers = #tpu.dot_dimension_numbers<[1], [0], [0], [1], [0, 0, 1, 1], [], []>} : vector<32x1024xbf16>, vector<1024x128xbf16>, vector<32x128xf32> -> vector<32x128xf32>
    %c0_8 = arith.constant 0 : index
    %c0_9 = arith.constant 0 : index
    %c0_10 = arith.constant 0 : index
    %15 = vector.load %arg4[%c0_8, %c0_9, %c0_10] : memref<1x1x128xf32, #tpu.memory_space<vmem>>, vector<1x1x128xf32>
    %16 = vector.shape_cast %15 : vector<1x1x128xf32> to vector<1x128xf32>
    %17 = vector.broadcast %16 : vector<1x128xf32> to vector<32x128xf32>
    %18 = arith.addf %14, %17 : vector<32x128xf32>
    %cst_11 = arith.constant 0.000000e+00 : f32
    %19 = vector.broadcast %cst_11 : f32 to vector<32x128xf32>
    %20 = arith.maximumf %18, %19 : vector<32x128xf32>
    %21 = arith.truncf %20 : vector<32x128xf32> to vector<32x128xbf16>
    %c0_12 = arith.constant 0 : index
    %c0_13 = arith.constant 0 : index
    %c0_14 = arith.constant 0 : index
    %22 = vector.load %arg5[%c0_12, %c0_13, %c0_14] : memref<1x128x1024xbf16, #tpu.memory_space<vmem>>, vector<1x128x1024xbf16>
    %23 = vector.shape_cast %22 : vector<1x128x1024xbf16> to vector<128x1024xbf16>
    %cst_15 = arith.constant dense<0.000000e+00> : vector<32x1024xf32>
    %24 = tpu.matmul %21, %23, %cst_15 {dimension_numbers = #tpu.dot_dimension_numbers<[1], [0], [0], [1], [0, 0, 1, 1], [], []>} : vector<32x128xbf16>, vector<128x1024xbf16>, vector<32x1024xf32> -> vector<32x1024xf32>
    %c0_16 = arith.constant 0 : index
    %c0_17 = arith.constant 0 : index
    %c0_18 = arith.constant 0 : index
    %25 = vector.load %arg6[%c0_16, %c0_17, %c0_18] : memref<1x1x1024xf32, #tpu.memory_space<vmem>>, vector<1x1x1024xf32>
    %26 = vector.shape_cast %25 : vector<1x1x1024xf32> to vector<1x1024xf32>
    %27 = vector.broadcast %26 : vector<1x1024xf32> to vector<32x1024xf32>
    %28 = arith.addf %24, %27 : vector<32x1024xf32>
    %cst_19 = arith.constant 0.000000e+00 : f32
    %29 = vector.broadcast %cst_19 : f32 to vector<32x1024xf32>
    %30 = arith.maximumf %28, %29 : vector<32x1024xf32>
    %cst_20 = arith.constant 9.99999993E-9 : f32
    %31 = vector.broadcast %cst_20 : f32 to vector<32x1024xf32>
    %32 = arith.addf %10, %31 : vector<32x1024xf32>
    %33 = tpu.reciprocal %32 {approx = true} : vector<32x1024xf32> -> vector<32x1024xf32>
    %34 = arith.mulf %30, %33 : vector<32x1024xf32>
    %35 = arith.mulf %34, %5 : vector<32x1024xf32>
    %36 = arith.mulf %34, %6 : vector<32x1024xf32>
    %37 = tpu.concatenate %35, %36 in 1 : vector<32x1024xf32>, vector<32x1024xf32> -> vector<32x2048xf32>
    %38 = arith.truncf %37 : vector<32x2048xf32> to vector<32x2048xbf16>
    %c0_21 = arith.constant 0 : index
    %c0_22 = arith.constant 0 : index
    %c0_23 = arith.constant 0 : index
    %39 = vector.load %arg7[%c0_21, %c0_22, %c0_23] : memref<1x2048x64xbf16, #tpu.memory_space<vmem>>, vector<1x2048x64xbf16>
    %40 = vector.shape_cast %39 : vector<1x2048x64xbf16> to vector<2048x64xbf16>
    %cst_24 = arith.constant dense<0.000000e+00> : vector<32x64xf32>
    %41 = tpu.matmul %38, %40, %cst_24 {dimension_numbers = #tpu.dot_dimension_numbers<[1], [0], [0], [1], [0, 0, 1, 1], [], []>} : vector<32x2048xbf16>, vector<2048x64xbf16>, vector<32x64xf32> -> vector<32x64xf32>
    %c0_25 = arith.constant 0 : index
    %c0_26 = arith.constant 0 : index
    %c0_27 = arith.constant 0 : index
    %42 = vector.load %arg8[%c0_25, %c0_26, %c0_27] : memref<1x32x64xf32, #tpu.memory_space<vmem>>, vector<1x32x64xf32>
    %43 = vector.shape_cast %42 : vector<1x32x64xf32> to vector<32x64xf32>
    %44 = vector.shape_cast %41 : vector<32x64xf32> to vector<1x32x64xf32>
    tpu.vector_store %arg8[%c0_25, %c0_26, %c0_27], %44 {strides = array<i32>} : memref<1x32x64xf32, #tpu.memory_space<vmem>>, vector<1x32x64xf32>,
    return
  }
  func.func @transform_0(%arg0: i32) -> (i32, i32) {
    %c0_i32 = arith.constant 0 : i32
    %c0_i32_0 = arith.constant 0 : i32
    %c0_i32_1 = arith.constant 0 : i32
    return %c0_i32, %c0_i32_0 : i32, i32
  }
  func.func @transform_1(%arg0: i32) -> (i32, i32, i32) {
    %c0_i32 = arith.constant 0 : i32
    %c0_i32_0 = arith.constant 0 : i32
    %c0_i32_1 = arith.constant 0 : i32
    return %arg0, %c0_i32, %c0_i32_0 : i32, i32, i32
  }
  func.func @transform_2(%arg0: i32) -> (i32, i32, i32) {
    %c0_i32 = arith.constant 0 : i32
    %c0_i32_0 = arith.constant 0 : i32
    %c0_i32_1 = arith.constant 0 : i32
    return %arg0, %c0_i32, %c0_i32_0 : i32, i32, i32
  }
  func.func @transform_3(%arg0: i32) -> (i32, i32, i32) {
    %c0_i32 = arith.constant 0 : i32
    %c0_i32_0 = arith.constant 0 : i32
    %c0_i32_1 = arith.constant 0 : i32
    return %arg0, %c0_i32, %c0_i32_0 : i32, i32, i32
  }
  func.func @transform_4(%arg0: i32) -> (i32, i32, i32) {
    %c0_i32 = arith.constant 0 : i32
    %c0_i32_0 = arith.constant 0 : i32
    %c0_i32_1 = arith.constant 0 : i32
    return %arg0, %c0_i32, %c0_i32_0 : i32, i32, i32
  }
  func.func @transform_5(%arg0: i32) -> (i32, i32, i32) {
    %c0_i32 = arith.constant 0 : i32
    %c0_i32_0 = arith.constant 0 : i32
    %c0_i32_1 = arith.constant 0 : i32
    return %arg0, %c0_i32, %c0_i32_0 : i32, i32, i32
  }
  func.func @transform_6(%arg0: i32) -> (i32, i32, i32) {
    %c0_i32 = arith.constant 0 : i32
    %c0_i32_0 = arith.constant 0 : i32
    %c0_i32_1 = arith.constant 0 : i32
    return %arg0, %c0_i32, %c0_i32_0 : i32, i32, i32
  }
  func.func @transform_7(%arg0: i32) -> (i32, i32, i32) {
    %c0_i32 = arith.constant 0 : i32
    %c0_i32_0 = arith.constant 0 : i32
    %c0_i32_1 = arith.constant 0 : i32
    return %arg0, %c0_i32, %c0_i32_0 : i32, i32, i32
  }
}

</mosaic_0001>

<llo_original>
// kernel: separator_forward.1
$region0: #{separator_forward.1}
  #allocation0 [shape = 'u32[]', space=smem, size = 0x4, offset = 0x4, fixed_abs, tag = 'smem constant byte address 0x4 - core index']
  #allocation1 [shape = 'u32[144,128]{1,0:T(1,128)}', space=vmem, size = 0x12000, scoped, tag = 'internal scratch']
  %s0 = inlined_call_operand.vmem [shape: f32[32,64], index: 0, kind: input, shape index: {}]
  %s1 = inlined_call_operand.vmem [shape: bf16[2,64,2048], index: 1, kind: input, shape index: {}]
  %s2 = inlined_call_operand.vmem [shape: bf16[2,1024,128], index: 2, kind: input, shape index: {}]
  %s3 = inlined_call_operand.vmem [shape: f32[2,1,128], index: 3, kind: input, shape index: {}]
  %s4 = inlined_call_operand.vmem [shape: bf16[2,128,1024], index: 4, kind: input, shape index: {}]
  %s5 = inlined_call_operand.vmem [shape: f32[2,1,1024], index: 5, kind: input, shape index: {}]
  %s6 = inlined_call_operand.vmem [shape: bf16[2,2048,64], index: 6, kind: input, shape index: {}]
  %s7 = inlined_call_operand.vmem [shape: f32[2,32,64], index: 7, kind: output, shape index: {}]
  %s8 = sld [smem:[#allocation0]]
  $region61: #{separator_forward.1} parent=0
    _
  %s10 = ssub.s32 1, %s8
  %s11 = scalar_select 0, %s10, %s8
  loop: start=0, step=1, limit=4
  $region2: #{separator_forward.1} parent=0 // loop_pre_header
    _
  $region3: #{separator_forward.1} parent=0 // loop_header
    %s13 = sphi 0, %s17
    %p14 = scmp.ge.s32.totalorder %s13, 4
    %s21 = sphi 0, %s21
    %s23 = sphi 0, %s21
    %s24 = sphi 0, %s23
    %s38 = sphi 0, %s24
    %s44 = sphi 0, %s46
    %s47 = sphi 0, %s44
    %s48 = sphi 0, %s47
    %s64 = sphi 0, %s48
    %s70 = sphi 0, %s72
    %s73 = sphi 0, %s70
    %s74 = sphi 0, %s73
    %s90 = sphi 0, %s74
    %s96 = sphi 0, %s98
    %s99 = sphi 0, %s96
    %s100 = sphi 0, %s99
    %s116 = sphi 0, %s100
    %s122 = sphi 0, %s124
    %s125 = sphi 0, %s122
    %s126 = sphi 0, %s125
    %s142 = sphi 0, %s126
    %s148 = sphi 0, %s150
    %s151 = sphi 0, %s148
    %s152 = sphi 0, %s151
    %s168 = sphi 0, %s152
    %s174 = sphi 0, %s176
    %s177 = sphi 0, %s174
    %s178 = sphi 0, %s177
    %s194 = sphi 0, %s178
    %s200 = sphi 0, %s202
    %s203 = sphi 0, %s200
    %s204 = sphi 0, %s203
    %s220 = sphi 0, %s204
  $region4: #{separator_forward.1} parent=0 // loop_header_branch
    %16 = sbr.rel (%p14) target = $region8
  $region5: #{separator_forward.1} parent=0 // loop_body
    %s18 = ssub.s32 %s13, 1
    %s19 = ssub.s32 %s13, 2
    %s20 = sadd.s32 %s13, 1
    %s22 = sadd.s32 %s21, 1
    %p25 = scmp.eq.s32.totalorder %s13, 1
    %p26 = scmp.ne.s32.totalorder %s21, %s23
    %p27 = scmp.eq.s32.totalorder %s13, 0
    %p28 = por %p26, %p27
    %p29 = scmp.ne.s32.totalorder %s21, %s23
    %p30 = scmp.eq.s32.totalorder %s18, 1
    %p31 = por %p29, %p30
    %p32 = scmp.ne.s32.totalorder %s23, %s24
    %p33 = scmp.eq.s32.totalorder %s18, 0
    %p34 = por %p32, %p33
    %p35 = scmp.ne.s32.totalorder %s23, %s24
    %p36 = scmp.eq.s32.totalorder %s19, 1
    %p37 = por %p35, %p36
    %p39 = scmp.ne.s32.totalorder %s24, %s38
    %p40 = scmp.eq.s32.totalorder %s19, 0
    %p41 = por %p39, %p40
    %s42 = ssub.s32 %s13, %s20
    %p43 = scmp.eq.s32.totalorder %s42, 0
    %s45 = sadd.s32 %s44, 1
    %s46 = scalar_select %p43, %s44, %s45
    %p49 = pneg %p43
    %p50 = scmp.eq.s32.totalorder %s13, 1
    %p51 = por %p49, %p50
    %p52 = scmp.ne.s32.totalorder %s44, %s47
    %p53 = scmp.eq.s32.totalorder %s13, 0
    %p54 = por %p52, %p53
    %p55 = scmp.ne.s32.totalorder %s44, %s47
    %p56 = scmp.eq.s32.totalorder %s18, 1
    %p57 = por %p55, %p56
    %p58 = scmp.ne.s32.totalorder %s47, %s48
    %p59 = scmp.eq.s32.totalorder %s18, 0
    %p60 = por %p58, %p59
    %p61 = scmp.ne.s32.totalorder %s47, %s48
    %p62 = scmp.eq.s32.totalorder %s19, 1
    %p63 = por %p61, %p62
    %p65 = scmp.ne.s32.totalorder %s48, %s64
    %p66 = scmp.eq.s32.totalorder %s19, 0
    %p67 = por %p65, %p66
    %s68 = ssub.s32 %s13, %s20
    %p69 = scmp.eq.s32.totalorder %s68, 0
    %s71 = sadd.s32 %s70, 1
    %s72 = scalar_select %p69, %s70, %s71
    %p75 = pneg %p69
    %p76 = scmp.eq.s32.totalorder %s13, 1
    %p77 = por %p75, %p76
    %p78 = scmp.ne.s32.totalorder %s70, %s73
    %p79 = scmp.eq.s32.totalorder %s13, 0
    %p80 = por %p78, %p79
    %p81 = scmp.ne.s32.totalorder %s70, %s73
    %p82 = scmp.eq.s32.totalorder %s18, 1
    %p83 = por %p81, %p82
    %p84 = scmp.ne.s32.totalorder %s73, %s74
    %p85 = scmp.eq.s32.totalorder %s18, 0
    %p86 = por %p84, %p85
    %p87 = scmp.ne.s32.totalorder %s73, %s74
    %p88 = scmp.eq.s32.totalorder %s19, 1
    %p89 = por %p87, %p88
    %p91 = scmp.ne.s32.totalorder %s74, %s90
    %p92 = scmp.eq.s32.totalorder %s19, 0
    %p93 = por %p91, %p92
    %s94 = ssub.s32 %s13, %s20
    %p95 = scmp.eq.s32.totalorder %s94, 0
    %s97 = sadd.s32 %s96, 1
    %s98 = scalar_select %p95, %s96, %s97
    %p101 = pneg %p95
    %p102 = scmp.eq.s32.totalorder %s13, 1
    %p103 = por %p101, %p102
    %p104 = scmp.ne.s32.totalorder %s96, %s99
    %p105 = scmp.eq.s32.totalorder %s13, 0
    %p106 = por %p104, %p105
    %p107 = scmp.ne.s32.totalorder %s96, %s99
    %p108 = scmp.eq.s32.totalorder %s18, 1
    %p109 = por %p107, %p108
    %p110 = scmp.ne.s32.totalorder %s99, %s100
    %p111 = scmp.eq.s32.totalorder %s18, 0
    %p112 = por %p110, %p111
    %p113 = scmp.ne.s32.totalorder %s99, %s100
    %p114 = scmp.eq.s32.totalorder %s19, 1
    %p115 = por %p113, %p114
    %p117 = scmp.ne.s32.totalorder %s100, %s116
    %p118 = scmp.eq.s32.totalorder %s19, 0
    %p119 = por %p117, %p118
    %s120 = ssub.s32 %s13, %s20
    %p121 = scmp.eq.s32.totalorder %s120, 0
    %s123 = sadd.s32 %s122, 1
    %s124 = scalar_select %p121, %s122, %s123
    %p127 = pneg %p121
    %p128 = scmp.eq.s32.totalorder %s13, 1
    %p129 = por %p127, %p128
    %p130 = scmp.ne.s32.totalorder %s122, %s125
    %p131 = scmp.eq.s32.totalorder %s13, 0
    %p132 = por %p130, %p131
    %p133 = scmp.ne.s32.totalorder %s122, %s125
    %p134 = scmp.eq.s32.totalorder %s18, 1
    %p135 = por %p133, %p134
    %p136 = scmp.ne.s32.totalorder %s125, %s126
    %p137 = scmp.eq.s32.totalorder %s18, 0
    %p138 = por %p136, %p137
    %p139 = scmp.ne.s32.totalorder %s125, %s126
    %p140 = scmp.eq.s32.totalorder %s19, 1
    %p141 = por %p139, %p140
    %p143 = scmp.ne.s32.totalorder %s126, %s142
    %p144 = scmp.eq.s32.totalorder %s19, 0
    %p145 = por %p143, %p144
    %s146 = ssub.s32 %s13, %s20
    %p147 = scmp.eq.s32.totalorder %s146, 0
    %s149 = sadd.s32 %s148, 1
    %s150 = scalar_select %p147, %s148, %s149
    %p153 = pneg %p147
    %p154 = scmp.eq.s32.totalorder %s13, 1
    %p155 = por %p153, %p154
    %p156 = scmp.ne.s32.totalorder %s148, %s151
    %p157 = scmp.eq.s32.totalorder %s13, 0
    %p158 = por %p156, %p157
    %p159 = scmp.ne.s32.totalorder %s148, %s151
    %p160 = scmp.eq.s32.totalorder %s18, 1
    %p161 = por %p159, %p160
    %p162 = scmp.ne.s32.totalorder %s151, %s152
    %p163 = scmp.eq.s32.totalorder %s18, 0
    %p164 = por %p162, %p163
    %p165 = scmp.ne.s32.totalorder %s151, %s152
    %p166 = scmp.eq.s32.totalorder %s19, 1
    %p167 = por %p165, %p166
    %p169 = scmp.ne.s32.totalorder %s152, %s168
    %p170 = scmp.eq.s32.totalorder %s19, 0
    %p171 = por %p169, %p170
    %s172 = ssub.s32 %s13, %s20
    %p173 = scmp.eq.s32.totalorder %s172, 0
    %s175 = sadd.s32 %s174, 1
    %s176 = scalar_select %p173, %s174, %s175
    %p179 = pneg %p173
    %p180 = scmp.eq.s32.totalorder %s13, 1
    %p181 = por %p179, %p180
    %p182 = scmp.ne.s32.totalorder %s174, %s177
    %p183 = scmp.eq.s32.totalorder %s13, 0
    %p184 = por %p182, %p183
    %p185 = scmp.ne.s32.totalorder %s174, %s177
    %p186 = scmp.eq.s32.totalorder %s18, 1
    %p187 = por %p185, %p186
    %p188 = scmp.ne.s32.totalorder %s177, %s178
    %p189 = scmp.eq.s32.totalorder %s18, 0
    %p190 = por %p188, %p189
    %p191 = scmp.ne.s32.totalorder %s177, %s178
    %p192 = scmp.eq.s32.totalorder %s19, 1
    %p193 = por %p191, %p192
    %p195 = scmp.ne.s32.totalorder %s178, %s194
    %p196 = scmp.eq.s32.totalorder %s19, 0
    %p197 = por %p195, %p196
    %s198 = ssub.s32 %s13, %s20
    %p199 = scmp.eq.s32.totalorder %s198, 0
    %s201 = sadd.s32 %s200, 1
    %s202 = scalar_select %p199, %s200, %s201
    %p205 = pneg %p199
    %p206 = scmp.eq.s32.totalorder %s13, 1
    %p207 = por %p205, %p206
    %p208 = scmp.ne.s32.totalorder %s200, %s203
    %p209 = scmp.eq.s32.totalorder %s13, 0
    %p210 = por %p208, %p209
    %p211 = scmp.ne.s32.totalorder %s200, %s203
    %p212 = scmp.eq.s32.totalorder %s18, 1
    %p213 = por %p211, %p212
    %p214 = scmp.ne.s32.totalorder %s203, %s204
    %p215 = scmp.eq.s32.totalorder %s18, 0
    %p216 = por %p214, %p215
    %p217 = scmp.ne.s32.totalorder %s203, %s204
    %p218 = scmp.eq.s32.totalorder %s19, 1
    %p219 = por %p217, %p218
    %p221 = scmp.ne.s32.totalorder %s204, %s220
    %p222 = scmp.eq.s32.totalorder %s19, 0
    %p223 = por %p221, %p222
    %p224 = scmp.le.s32.totalorder 1, %s13
    %p225 = scmp.lt.s32.totalorder %s13, 3
    %p226 = pnand %p224, %p225
    %p227 = pneg %p226
    // Predicated region
    $region9: #{separator_forward.1} parent=5 // pred_check
      _
    $region10: #{separator_forward.1} parent=5 // pred_check_branch
      %229 = sbr.rel (%p226) target = $region12
    $region11: #{separator_forward.1} parent=5 // pred_region
      %s230 = ssub.s32 %s13, 1
      // Predicated region
      $region13: #{separator_forward.1} parent=11 // pred_check
        %p231 = pneg %p34
      $region14: #{separator_forward.1} parent=11 // pred_check_branch
        %233 = sbr.rel (%p231) target = $region16
      $region15: #{separator_forward.1} parent=11 // pred_region
        _
      $region16: #{separator_forward.1} parent=11 // pred_fallthru
        _
    $region12: #{separator_forward.1} parent=5 // pred_fallthru
      _
    %p234 = scmp.lt.s32.totalorder %s13, 2
    // Predicated region
    $region17: #{separator_forward.1} parent=5 // pred_check
      %p235 = pneg %p234
    $region18: #{separator_forward.1} parent=5 // pred_check_branch
      %237 = sbr.rel (%p235) target = $region20
    $region19: #{separator_forward.1} parent=5 // pred_region
      // Predicated region
      $region21: #{separator_forward.1} parent=19 // pred_check
        %p238 = pneg %p54
      $region22: #{separator_forward.1} parent=19 // pred_check_branch
        %240 = sbr.rel (%p238) target = $region24
      $region23: #{separator_forward.1} parent=19 // pred_region
        %p241 = scmp.lt.s32.totalorder %s13, 1
        %s242 = scalar_select %p241, %s13, 1
        %s243 = smul.addr %s242, 128
        %s244 = smul.addr %s243, 4
        %s245 = scalar_lea.vmem %s1, %s244
      $region24: #{separator_forward.1} parent=19 // pred_fallthru
        _
      // Predicated region
      $region25: #{separator_forward.1} parent=19 // pred_check
        %p246 = pneg %p80
      $region26: #{separator_forward.1} parent=19 // pred_check_branch
        %248 = sbr.rel (%p246) target = $region28
      $region27: #{separator_forward.1} parent=19 // pred_region
        %p249 = scmp.lt.s32.totalorder %s13, 1
        %s250 = scalar_select %p249, %s13, 1
        %s251 = smul.addr %s250, 128
        %s252 = smul.addr %s251, 4
        %s253 = scalar_lea.vmem %s2, %s252
      $region28: #{separator_forward.1} parent=19 // pred_fallthru
        _
      // Predicated region
      $region29: #{separator_forward.1} parent=19 // pred_check
        %p254 = pneg %p106
      $region30: #{separator_forward.1} parent=19 // pred_check_branch
        %256 = sbr.rel (%p254) target = $region32
      $region31: #{separator_forward.1} parent=19 // pred_region
        %p257 = scmp.lt.s32.totalorder %s13, 1
        %s258 = scalar_select %p257, %s13, 1
        %s259 = scalar_lea.vmem %s3, %s258
      $region32: #{separator_forward.1} parent=19 // pred_fallthru
        _
      // Predicated region
      $region33: #{separator_forward.1} parent=19 // pred_check
        %p260 = pneg %p132
      $region34: #{separator_forward.1} parent=19 // pred_check_branch
        %262 = sbr.rel (%p260) target = $region36
      $region35: #{separator_forward.1} parent=19 // pred_region
        %p263 = scmp.lt.s32.totalorder %s13, 1
        %s264 = scalar_select %p263, %s13, 1
        %s265 = smul.addr %s264, 128
        %s266 = smul.addr %s265, 4
        %s267 = scalar_lea.vmem %s4, %s266
      $region36: #{separator_forward.1} parent=19 // pred_fallthru
        _
      // Predicated region
      $region37: #{separator_forward.1} parent=19 // pred_check
        %p268 = pneg %p158
      $region38: #{separator_forward.1} parent=19 // pred_check_branch
        %270 = sbr.rel (%p268) target = $region40
      $region39: #{separator_forward.1} parent=19 // pred_region
        %p271 = scmp.lt.s32.totalorder %s13, 1
        %s272 = scalar_select %p271, %s13, 1
        %s273 = smul.addr %s272, 8
        %s274 = scalar_lea.vmem %s5, %s273
      $region40: #{separator_forward.1} parent=19 // pred_fallthru
        _
      // Predicated region
      $region41: #{separator_forward.1} parent=19 // pred_check
        %p275 = pneg %p184
      $region42: #{separator_forward.1} parent=19 // pred_check_branch
        %277 = sbr.rel (%p275) target = $region44
      $region43: #{separator_forward.1} parent=19 // pred_region
        %p278 = scmp.lt.s32.totalorder %s13, 1
        %s279 = scalar_select %p278, %s13, 1
        %s280 = smul.addr %s279, 256
        %s281 = smul.addr %s280, 4
        %s282 = scalar_lea.vmem %s6, %s281
      $region44: #{separator_forward.1} parent=19 // pred_fallthru
        _
    $region20: #{separator_forward.1} parent=5 // pred_fallthru
      _
    %p283 = scmp.le.s32.totalorder 1, %s13
    %p284 = scmp.lt.s32.totalorder %s13, 3
    %p285 = pnand %p283, %p284
    %p286 = pneg %p285
    // Predicated region
    $region45: #{separator_forward.1} parent=5 // pred_check
      _
    $region46: #{separator_forward.1} parent=5 // pred_check_branch
      %288 = sbr.rel (%p285) target = $region48
    $region47: #{separator_forward.1} parent=5 // pred_region
      %s289 = ssub.s32 %s13, 1
      %p290 = pneg %p34
      %p291 = pneg %p31
      %p292 = scmp.lt.s32.totalorder %s18, 1
      %s293 = scalar_select %p292, %s18, 1
      %s294 = smul.addr %s293, 128
      %s295 = smul.addr %s294, 4
      %s296 = scalar_lea.vmem %s1, %s295
      %p297 = pneg %p60
      %p298 = pneg %p57
      %p299 = scmp.lt.s32.totalorder %s18, 1
      %s300 = scalar_select %p299, %s18, 1
      %s301 = smul.addr %s300, 128
      %s302 = smul.addr %s301, 4
      %s303 = scalar_lea.vmem %s2, %s302
      %p304 = pneg %p86
      %p305 = pneg %p83
      %p306 = scmp.lt.s32.totalorder %s18, 1
      %s307 = scalar_select %p306, %s18, 1
      %s308 = scalar_lea.vmem %s3, %s307
      %p309 = pneg %p112
      %p310 = pneg %p109
      %p311 = scmp.lt.s32.totalorder %s18, 1
      %s312 = scalar_select %p311, %s18, 1
      %s313 = smul.addr %s312, 128
      %s314 = smul.addr %s313, 4
      %s315 = scalar_lea.vmem %s4, %s314
      %p316 = pneg %p138
      %p317 = pneg %p135
      %p318 = scmp.lt.s32.totalorder %s18, 1
      %s319 = scalar_select %p318, %s18, 1
      %s320 = smul.addr %s319, 8
      %s321 = scalar_lea.vmem %s5, %s320
      %p322 = pneg %p164
      %p323 = pneg %p161
      %p324 = scmp.lt.s32.totalorder %s18, 1
      %s325 = scalar_select %p324, %s18, 1
      %s326 = smul.addr %s325, 256
      %s327 = smul.addr %s326, 4
      %s328 = scalar_lea.vmem %s6, %s327
      %p329 = pneg %p190
      %p330 = pneg %p187
      %p331 = pneg %p216
      %p332 = pneg %p213
      %p333 = scmp.lt.s32.totalorder %s18, 1
      %s334 = scalar_select %p333, %s18, 1
      %s335 = smul.addr %s334, 4
      %s336 = smul.addr %s335, 8
      %s337 = scalar_lea.vmem %s7, %s336
      %p338 = scmp.lt.s32.totalorder %s18, 1
      %s339 = scalar_select %p338, %s18, 1
      %s340 = smul.addr %s339, 128
      %s341 = smul.addr %s340, 4
      %s342 = scalar_lea.vmem %s1, %s341
      %p343 = scmp.lt.s32.totalorder %s18, 1
      %s344 = scalar_select %p343, %s18, 1
      %s345 = smul.addr %s344, 128
      %s346 = smul.addr %s345, 4
      %s347 = scalar_lea.vmem %s2, %s346
      %p348 = scmp.lt.s32.totalorder %s18, 1
      %s349 = scalar_select %p348, %s18, 1
      %s350 = scalar_lea.vmem %s3, %s349
      %p351 = scmp.lt.s32.totalorder %s18, 1
      %s352 = scalar_select %p351, %s18, 1
      %s353 = smul.addr %s352, 128
      %s354 = smul.addr %s353, 4
      %s355 = scalar_lea.vmem %s4, %s354
      %p356 = scmp.lt.s32.totalorder %s18, 1
      %s357 = scalar_select %p356, %s18, 1
      %s358 = smul.addr %s357, 8
      %s359 = scalar_lea.vmem %s5, %s358
      %p360 = scmp.lt.s32.totalorder %s18, 1
      %s361 = scalar_select %p360, %s18, 1
      %s362 = smul.addr %s361, 256
      %s363 = smul.addr %s362, 4
      %s364 = scalar_lea.vmem %s6, %s363
      %p365 = scmp.lt.s32.totalorder %s18, 1
      %s366 = scalar_select %p365, %s18, 1
      %s367 = smul.addr %s366, 4
      %s368 = smul.addr %s367, 8
      %s369 = scalar_lea.vmem %s7, %s368
      %v371 = vld [vmem:[%s0] sm:$0xff]
      %v372 = vld [vmem:[%s0 + $0x8] sm:$0xff]
      %v373 = vld [vmem:[%s0 + $0x10] sm:$0xff]
      %v374 = vld [vmem:[%s0 + $0x18] sm:$0xff]
      %v375 = vpack.c.bf16 %v372, %v371
      %v376 = vpack.c.bf16 %v374, %v373
      %v377 = vld [vmem:[%s342] sm:$0xff]
      %v378 = vld [vmem:[%s342 + $0x8] sm:$0xff]
      %v379 = vld [vmem:[%s342 + $0x10] sm:$0xff]
      %v380 = vld [vmem:[%s342 + $0x18] sm:$0xff]
      %v381 = vld [vmem:[%s342 + $0x20] sm:$0xff]
      %v382 = vld [vmem:[%s342 + $0x28] sm:$0xff]
      %v383 = vld [vmem:[%s342 + $0x30] sm:$0xff]
      %v384 = vld [vmem:[%s342 + $0x38] sm:$0xff]
      %v385 = vld [vmem:[%s342 + $0x40] sm:$0xff]
      %v386 = vld [vmem:[%s342 + $0x48] sm:$0xff]
      %v387 = vld [vmem:[%s342 + $0x50] sm:$0xff]
      %v388 = vld [vmem:[%s342 + $0x58] sm:$0xff]
      %v389 = vld [vmem:[%s342 + $0x60] sm:$0xff]
      %v390 = vld [vmem:[%s342 + $0x68] sm:$0xff]
      %v391 = vld [vmem:[%s342 + $0x70] sm:$0xff]
      %v392 = vld [vmem:[%s342 + $0x78] sm:$0xff]
      %v393 = vld [vmem:[%s342 + $0x80] sm:$0xff]
      %v394 = vld [vmem:[%s342 + $0x88] sm:$0xff]
      %v395 = vld [vmem:[%s342 + $0x90] sm:$0xff]
      %v396 = vld [vmem:[%s342 + $0x98] sm:$0xff]
      %v397 = vld [vmem:[%s342 + $0xa0] sm:$0xff]
      %v398 = vld [vmem:[%s342 + $0xa8] sm:$0xff]
      %v399 = vld [vmem:[%s342 + $0xb0] sm:$0xff]
      %v400 = vld [vmem:[%s342 + $0xb8] sm:$0xff]
      %v401 = vld [vmem:[%s342 + $0xc0] sm:$0xff]
      %v402 = vld [vmem:[%s342 + $0xc8] sm:$0xff]
      %v403 = vld [vmem:[%s342 + $0xd0] sm:$0xff]
      %v404 = vld [vmem:[%s342 + $0xd8] sm:$0xff]
      %v405 = vld [vmem:[%s342 + $0xe0] sm:$0xff]
      %v406 = vld [vmem:[%s342 + $0xe8] sm:$0xff]
      %v407 = vld [vmem:[%s342 + $0xf0] sm:$0xff]
      %v408 = vld [vmem:[%s342 + $0xf8] sm:$0xff]
      %v409 = vld [vmem:[%s342 + $0x100] sm:$0xff]
      %v410 = vld [vmem:[%s342 + $0x108] sm:$0xff]
      %v411 = vld [vmem:[%s342 + $0x110] sm:$0xff]
      %v412 = vld [vmem:[%s342 + $0x118] sm:$0xff]
      %v413 = vld [vmem:[%s342 + $0x120] sm:$0xff]
      %v414 = vld [vmem:[%s342 + $0x128] sm:$0xff]
      %v415 = vld [vmem:[%s342 + $0x130] sm:$0xff]
      %v416 = vld [vmem:[%s342 + $0x138] sm:$0xff]
      %v417 = vld [vmem:[%s342 + $0x140] sm:$0xff]
      %v418 = vld [vmem:[%s342 + $0x148] sm:$0xff]
      %v419 = vld [vmem:[%s342 + $0x150] sm:$0xff]
      %v420 = vld [vmem:[%s342 + $0x158] sm:$0xff]
      %v421 = vld [vmem:[%s342 + $0x160] sm:$0xff]
      %v422 = vld [vmem:[%s342 + $0x168] sm:$0xff]
      %v423 = vld [vmem:[%s342 + $0x170] sm:$0xff]
      %v424 = vld [vmem:[%s342 + $0x178] sm:$0xff]
      %v425 = vld [vmem:[%s342 + $0x180] sm:$0xff]
      %v426 = vld [vmem:[%s342 + $0x188] sm:$0xff]
      %v427 = vld [vmem:[%s342 + $0x190] sm:$0xff]
      %v428 = vld [vmem:[%s342 + $0x198] sm:$0xff]
      %v429 = vld [vmem:[%s342 + $0x1a0] sm:$0xff]
      %v430 = vld [vmem:[%s342 + $0x1a8] sm:$0xff]
      %v431 = vld [vmem:[%s342 + $0x1b0] sm:$0xff]
      %v432 = vld [vmem:[%s342 + $0x1b8] sm:$0xff]
      %v433 = vld [vmem:[%s342 + $0x1c0] sm:$0xff]
      %v434 = vld [vmem:[%s342 + $0x1c8] sm:$0xff]
      %v435 = vld [vmem:[%s342 + $0x1d0] sm:$0xff]
      %v436 = vld [vmem:[%s342 + $0x1d8] sm:$0xff]
      %v437 = vld [vmem:[%s342 + $0x1e0] sm:$0xff]
      %v438 = vld [vmem:[%s342 + $0x1e8] sm:$0xff]
      %v439 = vld [vmem:[%s342 + $0x1f0] sm:$0xff]
      %v440 = vld [vmem:[%s342 + $0x1f8] sm:$0xff]
      %v505 = vunpack.c.l.b16 %v377
      %v506 = vunpack.c.h.b16 %v377
      %v507 = vunpack.c.l.b16 %v378
      %v508 = vunpack.c.h.b16 %v378
      %v509 = vunpack.c.l.b16 %v379
      %v510 = vunpack.c.h.b16 %v379
      %v511 = vunpack.c.l.b16 %v380
      %v512 = vunpack.c.h.b16 %v380
      %v513 = vunpack.c.l.b16 %v381
      %v514 = vunpack.c.h.b16 %v381
      %v515 = vunpack.c.l.b16 %v382
      %v516 = vunpack.c.h.b16 %v382
      %v517 = vunpack.c.l.b16 %v383
      %v518 = vunpack.c.h.b16 %v383
      %v519 = vunpack.c.l.b16 %v384
      %v520 = vunpack.c.h.b16 %v384
      %v521 = vunpack.c.l.b16 %v385
      %v522 = vunpack.c.h.b16 %v385
      %v523 = vunpack.c.l.b16 %v386
      %v524 = vunpack.c.h.b16 %v386
      %v525 = vunpack.c.l.b16 %v387
      %v526 = vunpack.c.h.b16 %v387
      %v527 = vunpack.c.l.b16 %v388
      %v528 = vunpack.c.h.b16 %v388
      %v529 = vunpack.c.l.b16 %v389
      %v530 = vunpack.c.h.b16 %v389
      %v531 = vunpack.c.l.b16 %v390
      %v532 = vunpack.c.h.b16 %v390
      %v533 = vunpack.c.l.b16 %v391
      %v534 = vunpack.c.h.b16 %v391
      %v535 = vunpack.c.l.b16 %v392
      %v536 = vunpack.c.h.b16 %v392
      %v537 = vunpack.c.l.b16 %v393
      %v538 = vunpack.c.h.b16 %v393
      %v539 = vunpack.c.l.b16 %v394
      %v540 = vunpack.c.h.b16 %v394
      %v541 = vunpack.c.l.b16 %v395
      %v542 = vunpack.c.h.b16 %v395
      %v543 = vunpack.c.l.b16 %v396
      %v544 = vunpack.c.h.b16 %v396
      %v545 = vunpack.c.l.b16 %v397
      %v546 = vunpack.c.h.b16 %v397
      %v547 = vunpack.c.l.b16 %v398
      %v548 = vunpack.c.h.b16 %v398
      %v549 = vunpack.c.l.b16 %v399
      %v550 = vunpack.c.h.b16 %v399
      %v551 = vunpack.c.l.b16 %v400
      %v552 = vunpack.c.h.b16 %v400
      %v553 = vunpack.c.l.b16 %v401
      %v554 = vunpack.c.h.b16 %v401
      %v555 = vunpack.c.l.b16 %v402
      %v556 = vunpack.c.h.b16 %v402
      %v557 = vunpack.c.l.b16 %v403
      %v558 = vunpack.c.h.b16 %v403
      %v559 = vunpack.c.l.b16 %v404
      %v560 = vunpack.c.h.b16 %v404
      %v561 = vunpack.c.l.b16 %v405
      %v562 = vunpack.c.h.b16 %v405
      %v563 = vunpack.c.l.b16 %v406
      %v564 = vunpack.c.h.b16 %v406
      %v565 = vunpack.c.l.b16 %v407
      %v566 = vunpack.c.h.b16 %v407
      %v567 = vunpack.c.l.b16 %v408
      %v568 = vunpack.c.h.b16 %v408
      %v569 = vunpack.c.l.b16 %v409
      %v570 = vunpack.c.h.b16 %v409
      %v571 = vunpack.c.l.b16 %v410
      %v572 = vunpack.c.h.b16 %v410
      %v573 = vunpack.c.l.b16 %v411
      %v574 = vunpack.c.h.b16 %v411
      %v575 = vunpack.c.l.b16 %v412
      %v576 = vunpack.c.h.b16 %v412
      %v577 = vunpack.c.l.b16 %v413
      %v578 = vunpack.c.h.b16 %v413
      %v579 = vunpack.c.l.b16 %v414
      %v580 = vunpack.c.h.b16 %v414
      %v581 = vunpack.c.l.b16 %v415
      %v582 = vunpack.c.h.b16 %v415
      %v583 = vunpack.c.l.b16 %v416
      %v584 = vunpack.c.h.b16 %v416
      %v585 = vunpack.c.l.b16 %v417
      %v586 = vunpack.c.h.b16 %v417
      %v587 = vunpack.c.l.b16 %v418
      %v588 = vunpack.c.h.b16 %v418
      %v589 = vunpack.c.l.b16 %v419
      %v590 = vunpack.c.h.b16 %v419
      %v591 = vunpack.c.l.b16 %v420
      %v592 = vunpack.c.h.b16 %v420
      %v593 = vunpack.c.l.b16 %v421
      %v594 = vunpack.c.h.b16 %v421
      %v595 = vunpack.c.l.b16 %v422
      %v596 = vunpack.c.h.b16 %v422
      %v597 = vunpack.c.l.b16 %v423
      %v598 = vunpack.c.h.b16 %v423
      %v599 = vunpack.c.l.b16 %v424
      %v600 = vunpack.c.h.b16 %v424
      %v601 = vunpack.c.l.b16 %v425
      %v602 = vunpack.c.h.b16 %v425
      %v603 = vunpack.c.l.b16 %v426
      %v604 = vunpack.c.h.b16 %v426
      %v605 = vunpack.c.l.b16 %v427
      %v606 = vunpack.c.h.b16 %v427
      %v607 = vunpack.c.l.b16 %v428
      %v608 = vunpack.c.h.b16 %v428
      %v609 = vunpack.c.l.b16 %v429
      %v610 = vunpack.c.h.b16 %v429
      %v611 = vunpack.c.l.b16 %v430
      %v612 = vunpack.c.h.b16 %v430
      %v613 = vunpack.c.l.b16 %v431
      %v614 = vunpack.c.h.b16 %v431
      %v615 = vunpack.c.l.b16 %v432
      %v616 = vunpack.c.h.b16 %v432
      %v617 = vunpack.c.l.b16 %v433
      %v618 = vunpack.c.h.b16 %v433
      %v619 = vunpack.c.l.b16 %v434
      %v620 = vunpack.c.h.b16 %v434
      %v621 = vunpack.c.l.b16 %v435
      %v622 = vunpack.c.h.b16 %v435
      %v623 = vunpack.c.l.b16 %v436
      %v624 = vunpack.c.h.b16 %v436
      %v625 = vunpack.c.l.b16 %v437
      %v626 = vunpack.c.h.b16 %v437
      %v627 = vunpack.c.l.b16 %v438
      %v628 = vunpack.c.h.b16 %v438
      %v629 = vunpack.c.l.b16 %v439
      %v630 = vunpack.c.h.b16 %v439
      %v631 = vunpack.c.l.b16 %v440
      %v632 = vunpack.c.h.b16 %v440
      %v633 = vpack.c.b16 %v521, %v505
      %v634 = vpack.c.b16 %v522, %v506
      %v635 = vpack.c.b16 %v523, %v507
      %v636 = vpack.c.b16 %v524, %v508
      %v637 = vpack.c.b16 %v525, %v509
      %v638 = vpack.c.b16 %v526, %v510
      %v639 = vpack.c.b16 %v527, %v511
      %v640 = vpack.c.b16 %v528, %v512
      %v641 = vpack.c.b16 %v529, %v513
      %v642 = vpack.c.b16 %v530, %v514
      %v643 = vpack.c.b16 %v531, %v515
      %v644 = vpack.c.b16 %v532, %v516
      %v645 = vpack.c.b16 %v533, %v517
      %v646 = vpack.c.b16 %v534, %v518
      %v647 = vpack.c.b16 %v535, %v519
      %v648 = vpack.c.b16 %v536, %v520
      %v649 = vpack.c.b16 %v553, %v537
      %v650 = vpack.c.b16 %v554, %v538
      %v651 = vpack.c.b16 %v555, %v539
      %v652 = vpack.c.b16 %v556, %v540
      %v653 = vpack.c.b16 %v557, %v541
      %v654 = vpack.c.b16 %v558, %v542
      %v655 = vpack.c.b16 %v559, %v543
      %v656 = vpack.c.b16 %v560, %v544
      %v657 = vpack.c.b16 %v561, %v545
      %v658 = vpack.c.b16 %v562, %v546
      %v659 = vpack.c.b16 %v563, %v547
      %v660 = vpack.c.b16 %v564, %v548
      %v661 = vpack.c.b16 %v565, %v549
      %v662 = vpack.c.b16 %v566, %v550
      %v663 = vpack.c.b16 %v567, %v551
      %v664 = vpack.c.b16 %v568, %v552
      %v665 = vpack.c.b16 %v585, %v569
      %v666 = vpack.c.b16 %v586, %v570
      %v667 = vpack.c.b16 %v587, %v571
      %v668 = vpack.c.b16 %v588, %v572
      %v669 = vpack.c.b16 %v589, %v573
      %v670 = vpack.c.b16 %v590, %v574
      %v671 = vpack.c.b16 %v591, %v575
      %v672 = vpack.c.b16 %v592, %v576
      %v673 = vpack.c.b16 %v593, %v577
      %v674 = vpack.c.b16 %v594, %v578
      %v675 = vpack.c.b16 %v595, %v579
      %v676 = vpack.c.b16 %v596, %v580
      %v677 = vpack.c.b16 %v597, %v581
      %v678 = vpack.c.b16 %v598, %v582
      %v679 = vpack.c.b16 %v599, %v583
      %v680 = vpack.c.b16 %v600, %v584
      %v681 = vpack.c.b16 %v617, %v601
      %v682 = vpack.c.b16 %v618, %v602
      %v683 = vpack.c.b16 %v619, %v603
      %v684 = vpack.c.b16 %v620, %v604
      %v685 = vpack.c.b16 %v621, %v605
      %v686 = vpack.c.b16 %v622, %v606
      %v687 = vpack.c.b16 %v623, %v607
      %v688 = vpack.c.b16 %v624, %v608
      %v689 = vpack.c.b16 %v625, %v609
      %v690 = vpack.c.b16 %v626, %v610
      %v691 = vpack.c.b16 %v627, %v611
      %v692 = vpack.c.b16 %v628, %v612
      %v693 = vpack.c.b16 %v629, %v613
      %v694 = vpack.c.b16 %v630, %v614
      %v695 = vpack.c.b16 %v631, %v615
      %v696 = vpack.c.b16 %v632, %v616
      %vm761 = vcmask 523264
      %v763 = vsel %vm761, %v375, 0
      %v766 = vsel %vm761, %v376, 0
      %768 = vmatprep.subr.bf16.mxu0 %v634
      %769 = vmatpush1.bf16.msra.mxu0 %v633
      %770 = vmatprep.subr.bf16.mxu0 %v650
      %771 = vmatpush1.bf16.msra.mxu0 %v649
      %772 = vmatprep.subr.bf16.mxu0 %v666
      %773 = vmatpush1.bf16.msra.mxu0 %v665
      %774 = vmatprep.subr.bf16.mxu0 %v682
      %775 = vmatpush1.bf16.msra.mxu0 %v681
      %776 = vmatprep.subr.bf16.mxu0 0
      %777 = vmatpush1.bf16.msra.mxu0 0
      %778 = vmatprep.subr.bf16.mxu0 0
      %779 = vmatpush1.bf16.msra.mxu0 0
      %780 = vmatprep.subr.bf16.mxu0 0
      %781 = vmatpush1.bf16.msra.mxu0 0
      %782 = vmatprep.subr.bf16.mxu0 0
      %783 = vmatpush1.bf16.msra.mxu0 0
      %784 = vmatprep.subr.bf16.mxu0 0
      %785 = vmatpush1.bf16.msra.mxu0 0
      %786 = vmatprep.subr.bf16.mxu0 0
      %787 = vmatpush1.bf16.msra.mxu0 0
      %788 = vmatprep.subr.bf16.mxu0 0
      %789 = vmatpush1.bf16.msra.mxu0 0
      %790 = vmatprep.subr.bf16.mxu0 0
      %791 = vmatpush1.bf16.msra.mxu0 0
      %792 = vmatprep.subr.bf16.mxu0 0
      %793 = vmatpush1.bf16.msra.mxu0 0
      %794 = vmatprep.subr.bf16.mxu0 0
      %795 = vmatpush1.bf16.msra.mxu0 0
      %796 = vmatprep.subr.bf16.mxu0 0
      %797 = vmatpush1.bf16.msra.mxu0 0
      %798 = vmatprep.subr.bf16.mxu0 0
      %799 = vmatpush1.bf16.msra.mxu0 0
      %800 = vmatprep.mubr.bf16.mxu0 0
      %801 = vmatmul.mubr.bf16.gmra.mrb[0].mxu0 %v763
      %v802 = vpop.f32.mrb[0].mxu0
      %v803 = vadd.f32 0.0, %v802
      %v804 = vpop.f32.mrb[0].mxu0
      %v805 = vadd.f32 0.0, %v804
      %v806 = vpop.f32.mrb[0].mxu0
      %v807 = vadd.f32 0.0, %v806
      %v808 = vpop.f32.mrb[0].mxu0
      %v809 = vadd.f32 0.0, %v808
      %810 = vmatprep.mubr.bf16.mxu0 0
      %811 = vmatmul.mubr.bf16.gmra.mrb[0].mxu0 %v766
      %v812 = vpop.f32.mrb[0].mxu0
      %v813 = vadd.f32 0.0, %v812
      %v814 = vpop.f32.mrb[0].mxu0
      %v815 = vadd.f32 0.0, %v814
      %v816 = vpop.f32.mrb[0].mxu0
      %v817 = vadd.f32 0.0, %v816
      %v818 = vpop.f32.mrb[0].mxu0
      %v819 = vadd.f32 0.0, %v818
      %820 = vdwg.mxu0
      %821 = vmatprep.subr.bf16.mxu0 %v636
      %822 = vmatpush1.bf16.msra.mxu0 %v635
      %823 = vmatprep.subr.bf16.mxu0 %v652
      %824 = vmatpush1.bf16.msra.mxu0 %v651
      %825 = vmatprep.subr.bf16.mxu0 %v668
      %826 = vmatpush1.bf16.msra.mxu0 %v667
      %827 = vmatprep.subr.bf16.mxu0 %v684
      %828 = vmatpush1.bf16.msra.mxu0 %v683
      %829 = vmatprep.subr.bf16.mxu0 0
      %830 = vmatpush1.bf16.msra.mxu0 0
      %831 = vmatprep.subr.bf16.mxu0 0
      %832 = vmatpush1.bf16.msra.mxu0 0
      %833 = vmatprep.subr.bf16.mxu0 0
      %834 = vmatpush1.bf16.msra.mxu0 0
      %835 = vmatprep.subr.bf16.mxu0 0
      %836 = vmatpush1.bf16.msra.mxu0 0
      %837 = vmatprep.subr.bf16.mxu0 0
      %838 = vmatpush1.bf16.msra.mxu0 0
      %839 = vmatprep.subr.bf16.mxu0 0
      %840 = vmatpush1.bf16.msra.mxu0 0
      %841 = vmatprep.subr.bf16.mxu0 0
      %842 = vmatpush1.bf16.msra.mxu0 0
      %843 = vmatprep.subr.bf16.mxu0 0
      %844 = vmatpush1.bf16.msra.mxu0 0
      %845 = vmatprep.subr.bf16.mxu0 0
      %846 = vmatpush1.bf16.msra.mxu0 0
      %847 = vmatprep.subr.bf16.mxu0 0
      %848 = vmatpush1.bf16.msra.mxu0 0
      %849 = vmatprep.subr.bf16.mxu0 0
      %850 = vmatpush1.bf16.msra.mxu0 0
      %851 = vmatprep.subr.bf16.mxu0 0
      %852 = vmatpush1.bf16.msra.mxu0 0
      %853 = vmatprep.mubr.bf16.mxu0 0
      %854 = vmatmul.mubr.bf16.gmra.mrb[0].mxu0 %v763
      %v855 = vpop.f32.mrb[0].mxu0
      %v856 = vadd.f32 0.0, %v855
      %v857 = vpop.f32.mrb[0].mxu0
      %v858 = vadd.f32 0.0, %v857
      %v859 = vpop.f32.mrb[0].mxu0
      %v860 = vadd.f32 0.0, %v859
      %v861 = vpop.f32.mrb[0].mxu0
      %v862 = vadd.f32 0.0, %v861
      %863 = vmatprep.mubr.bf16.mxu0 0
      %864 = vmatmul.mubr.bf16.gmra.mrb[0].mxu0 %v766
      %v865 = vpop.f32.mrb[0].mxu0
      %v866 = vadd.f32 0.0, %v865
      %v867 = vpop.f32.mrb[0].mxu0
      %v868 = vadd.f32 0.0, %v867
      %v869 = vpop.f32.mrb[0].mxu0
      %v870 = vadd.f32 0.0, %v869
      %v871 = vpop.f32.mrb[0].mxu0
      %v872 = vadd.f32 0.0, %v871
      %873 = vdwg.mxu0
      %874 = vmatprep.subr.bf16.mxu0 %v638
      %875 = vmatpush1.bf16.msra.mxu0 %v637
      %876 = vmatprep.subr.bf16.mxu0 %v654
      %877 = vmatpush1.bf16.msra.mxu0 %v653
      %878 = vmatprep.subr.bf16.mxu0 %v670
      %879 = vmatpush1.bf16.msra.mxu0 %v669
      %880 = vmatprep.subr.bf16.mxu0 %v686
      %881 = vmatpush1.bf16.msra.mxu0 %v685
      %882 = vmatprep.subr.bf16.mxu0 0
      %883 = vmatpush1.bf16.msra.mxu0 0
      %884 = vmatprep.subr.bf16.mxu0 0
      %885 = vmatpush1.bf16.msra.mxu0 0
      %886 = vmatprep.subr.bf16.mxu0 0
      %887 = vmatpush1.bf16.msra.mxu0 0
      %888 = vmatprep.subr.bf16.mxu0 0
      %889 = vmatpush1.bf16.msra.mxu0 0
      %890 = vmatprep.subr.bf16.mxu0 0
      %891 = vmatpush1.bf16.msra.mxu0 0
      %892 = vmatprep.subr.bf16.mxu0 0
      %893 = vmatpush1.bf16.msra.mxu0 0
      %894 = vmatprep.subr.bf16.mxu0 0
      %895 = vmatpush1.bf16.msra.mxu0 0
      %896 = vmatprep.subr.bf16.mxu0 0
      %897 = vmatpush1.bf16.msra.mxu0 0
      %898 = vmatprep.subr.bf16.mxu0 0
      %899 = vmatpush1.bf16.msra.mxu0 0
      %900 = vmatprep.subr.bf16.mxu0 0
      %901 = vmatpush1.bf16.msra.mxu0 0
      %902 = vmatprep.subr.bf16.mxu0 0
      %903 = vmatpush1.bf16.msra.mxu0 0
      %904 = vmatprep.subr.bf16.mxu0 0
      %905 = vmatpush1.bf16.msra.mxu0 0
      %906 = vmatprep.mubr.bf16.mxu0 0
      %907 = vmatmul.mubr.bf16.gmra.mrb[0].mxu0 %v763
      %v908 = vpop.f32.mrb[0].mxu0
      %v909 = vadd.f32 0.0, %v908
      %v910 = vpop.f32.mrb[0].mxu0
      %v911 = vadd.f32 0.0, %v910
      %v912 = vpop.f32.mrb[0].mxu0
      %v913 = vadd.f32 0.0, %v912
      %v914 = vpop.f32.mrb[0].mxu0
      %v915 = vadd.f32 0.0, %v914
      %916 = vmatprep.mubr.bf16.mxu0 0
      %917 = vmatmul.mubr.bf16.gmra.mrb[0].mxu0 %v766
      %v918 = vpop.f32.mrb[0].mxu0
      %v919 = vadd.f32 0.0, %v918
      %v920 = vpop.f32.mrb[0].mxu0
      %v921 = vadd.f32 0.0, %v920
      %v922 = vpop.f32.mrb[0].mxu0
      %v923 = vadd.f32 0.0, %v922
      %v924 = vpop.f32.mrb[0].mxu0
      %v925 = vadd.f32 0.0, %v924
      %926 = vdwg.mxu0
      %927 = vmatprep.subr.bf16.mxu0 %v640
      %928 = vmatpush1.bf16.msra.mxu0 %v639
      %929 = vmatprep.subr.bf16.mxu0 %v656
      %930 = vmatpush1.bf16.msra.mxu0 %v655
      %931 = vmatprep.subr.bf16.mxu0 %v672
      %932 = vmatpush1.bf16.msra.mxu0 %v671
      %933 = vmatprep.subr.bf16.mxu0 %v688
      %934 = vmatpush1.bf16.msra.mxu0 %v687
      %935 = vmatprep.subr.bf16.mxu0 0
      %936 = vmatpush1.bf16.msra.mxu0 0
      %937 = vmatprep.subr.bf16.mxu0 0
      %938 = vmatpush1.bf16.msra.mxu0 0
      %939 = vmatprep.subr.bf16.mxu0 0
      %940 = vmatpush1.bf16.msra.mxu0 0
      %941 = vmatprep.subr.bf16.mxu0 0
      %942 = vmatpush1.bf16.msra.mxu0 0
      %943 = vmatprep.subr.bf16.mxu0 0
      %944 = vmatpush1.bf16.msra.mxu0 0
      %945 = vmatprep.subr.bf16.mxu0 0
      %946 = vmatpush1.bf16.msra.mxu0 0
      %947 = vmatprep.subr.bf16.mxu0 0
      %948 = vmatpush1.bf16.msra.mxu0 0
      %949 = vmatprep.subr.bf16.mxu0 0
      %950 = vmatpush1.bf16.msra.mxu0 0
      %951 = vmatprep.subr.bf16.mxu0 0
      %952 = vmatpush1.bf16.msra.mxu0 0
      %953 = vmatprep.subr.bf16.mxu0 0
      %954 = vmatpush1.bf16.msra.mxu0 0
      %955 = vmatprep.subr.bf16.mxu0 0
      %956 = vmatpush1.bf16.msra.mxu0 0
      %957 = vmatprep.subr.bf16.mxu0 0
      %958 = vmatpush1.bf16.msra.mxu0 0
      %959 = vmatprep.mubr.bf16.mxu0 0
      %960 = vmatmul.mubr.bf16.gmra.mrb[0].mxu0 %v763
      %v961 = vpop.f32.mrb[0].mxu0
      %v962 = vadd.f32 0.0, %v961
      %v963 = vpop.f32.mrb[0].mxu0
      %v964 = vadd.f32 0.0, %v963
      %v965 = vpop.f32.mrb[0].mxu0
      %v966 = vadd.f32 0.0, %v965
      %v967 = vpop.f32.mrb[0].mxu0
      %v968 = vadd.f32 0.0, %v967
      %969 = vmatprep.mubr.bf16.mxu0 0
      %970 = vmatmul.mubr.bf16.gmra.mrb[0].mxu0 %v766
      %v971 = vpop.f32.mrb[0].mxu0
      %v972 = vadd.f32 0.0, %v971
      %v973 = vpop.f32.mrb[0].mxu0
      %v974 = vadd.f32 0.0, %v973
      %v975 = vpop.f32.mrb[0].mxu0
      %v976 = vadd.f32 0.0, %v975
      %v977 = vpop.f32.mrb[0].mxu0
      %v978 = vadd.f32 0.0, %v977
      %979 = vdwg.mxu0
      %980 = vmatprep.subr.bf16.mxu0 %v642
      %981 = vmatpush1.bf16.msra.mxu0 %v641
      %982 = vmatprep.subr.bf16.mxu0 %v658
      %983 = vmatpush1.bf16.msra.mxu0 %v657
      %984 = vmatprep.subr.bf16.mxu0 %v674
      %985 = vmatpush1.bf16.msra.mxu0 %v673
      %986 = vmatprep.subr.bf16.mxu0 %v690
      %987 = vmatpush1.bf16.msra.mxu0 %v689
      %988 = vmatprep.subr.bf16.mxu0 0
      %989 = vmatpush1.bf16.msra.mxu0 0
      %990 = vmatprep.subr.bf16.mxu0 0
      %991 = vmatpush1.bf16.msra.mxu0 0
      %992 = vmatprep.subr.bf16.mxu0 0
      %993 = vmatpush1.bf16.msra.mxu0 0
      %994 = vmatprep.subr.bf16.mxu0 0
      %995 = vmatpush1.bf16.msra.mxu0 0
      %996 = vmatprep.subr.bf16.mxu0 0
      %997 = vmatpush1.bf16.msra.mxu0 0
      %998 = vmatprep.subr.bf16.mxu0 0
      %999 = vmatpush1.bf16.msra.mxu0 0
      %1000 = vmatprep.subr.bf16.mxu0 0
      %1001 = vmatpush1.bf16.msra.mxu0 0
      %1002 = vmatprep.subr.bf16.mxu0 0
      %1003 = vmatpush1.bf16.msra.mxu0 0
      %1004 = vmatprep.subr.bf16.mxu0 0
      %1005 = vmatpush1.bf16.msra.mxu0 0
      %1006 = vmatprep.subr.bf16.mxu0 0
      %1007 = vmatpush1.bf16.msra.mxu0 0
      %1008 = vmatprep.subr.bf16.mxu0 0
      %1009 = vmatpush1.bf16.msra.mxu0 0
      %1010 = vmatprep.subr.bf16.mxu0 0
      %1011 = vmatpush1.bf16.msra.mxu0 0
      %1012 = vmatprep.mubr.bf16.mxu0 0
      %1013 = vmatmul.mubr.bf16.gmra.mrb[0].mxu0 %v763
      %v1014 = vpop.f32.mrb[0].mxu0
      %v1015 = vadd.f32 0.0, %v1014
      %v1016 = vpop.f32.mrb[0].mxu0
      %v1017 = vadd.f32 0.0, %v1016
      %v1018 = vpop.f32.mrb[0].mxu0
      %v1019 = vadd.f32 0.0, %v1018
      %v1020 = vpop.f32.mrb[0].mxu0
      %v1021 = vadd.f32 0.0, %v1020
      %1022 = vmatprep.mubr.bf16.mxu0 0
      %1023 = vmatmul.mubr.bf16.gmra.mrb[0].mxu0 %v766
      %v1024 = vpop.f32.mrb[0].mxu0
      %v1025 = vadd.f32 0.0, %v1024
      %v1026 = vpop.f32.mrb[0].mxu0
      %v1027 = vadd.f32 0.0, %v1026
      %v1028 = vpop.f32.mrb[0].mxu0
      %v1029 = vadd.f32 0.0, %v1028
      %v1030 = vpop.f32.mrb[0].mxu0
      %v1031 = vadd.f32 0.0, %v1030
      %1032 = vdwg.mxu0
      %1033 = vmatprep.subr.bf16.mxu0 %v644
      %1034 = vmatpush1.bf16.msra.mxu0 %v643
      %1035 = vmatprep.subr.bf16.mxu0 %v660
      %1036 = vmatpush1.bf16.msra.mxu0 %v659
      %1037 = vmatprep.subr.bf16.mxu0 %v676
      %1038 = vmatpush1.bf16.msra.mxu0 %v675
      %1039 = vmatprep.subr.bf16.mxu0 %v692
      %1040 = vmatpush1.bf16.msra.mxu0 %v691
      %1041 = vmatprep.subr.bf16.mxu0 0
      %1042 = vmatpush1.bf16.msra.mxu0 0
      %1043 = vmatprep.subr.bf16.mxu0 0
      %1044 = vmatpush1.bf16.msra.mxu0 0
      %1045 = vmatprep.subr.bf16.mxu0 0
      %1046 = vmatpush1.bf16.msra.mxu0 0
      %1047 = vmatprep.subr.bf16.mxu0 0
      %1048 = vmatpush1.bf16.msra.mxu0 0
      %1049 = vmatprep.subr.bf16.mxu0 0
      %1050 = vmatpush1.bf16.msra.mxu0 0
      %1051 = vmatprep.subr.bf16.mxu0 0
      %1052 = vmatpush1.bf16.msra.mxu0 0
      %1053 = vmatprep.subr.bf16.mxu0 0
      %1054 = vmatpush1.bf16.msra.mxu0 0
      %1055 = vmatprep.subr.bf16.mxu0 0
      %1056 = vmatpush1.bf16.msra.mxu0 0
      %1057 = vmatprep.subr.bf16.mxu0 0
      %1058 = vmatpush1.bf16.msra.mxu0 0
      %1059 = vmatprep.subr.bf16.mxu0 0
      %1060 = vmatpush1.bf16.msra.mxu0 0
      %1061 = vmatprep.subr.bf16.mxu0 0
      %1062 = vmatpush1.bf16.msra.mxu0 0
      %1063 = vmatprep.subr.bf16.mxu0 0
      %1064 = vmatpush1.bf16.msra.mxu0 0
      %1065 = vmatprep.mubr.bf16.mxu0 0
      %1066 = vmatmul.mubr.bf16.gmra.mrb[0].mxu0 %v763
      %v1067 = vpop.f32.mrb[0].mxu0
      %v1068 = vadd.f32 0.0, %v1067
      %v1069 = vpop.f32.mrb[0].mxu0
      %v1070 = vadd.f32 0.0, %v1069
      %v1071 = vpop.f32.mrb[0].mxu0
      %v1072 = vadd.f32 0.0, %v1071
      %v1073 = vpop.f32.mrb[0].mxu0
      %v1074 = vadd.f32 0.0, %v1073
      %1075 = vmatprep.mubr.bf16.mxu0 0
      %1076 = vmatmul.mubr.bf16.gmra.mrb[0].mxu0 %v766
      %v1077 = vpop.f32.mrb[0].mxu0
      %v1078 = vadd.f32 0.0, %v1077
      %v1079 = vpop.f32.mrb[0].mxu0
      %v1080 = vadd.f32 0.0, %v1079
      %v1081 = vpop.f32.mrb[0].mxu0
      %v1082 = vadd.f32 0.0, %v1081
      %v1083 = vpop.f32.mrb[0].mxu0
      %v1084 = vadd.f32 0.0, %v1083
      %1085 = vdwg.mxu0
      %1086 = vmatprep.subr.bf16.mxu0 %v646
      %1087 = vmatpush1.bf16.msra.mxu0 %v645
      %1088 = vmatprep.subr.bf16.mxu0 %v662
      %1089 = vmatpush1.bf16.msra.mxu0 %v661
      %1090 = vmatprep.subr.bf16.mxu0 %v678
      %1091 = vmatpush1.bf16.msra.mxu0 %v677
      %1092 = vmatprep.subr.bf16.mxu0 %v694
      %1093 = vmatpush1.bf16.msra.mxu0 %v693
      %1094 = vmatprep.subr.bf16.mxu0 0
      %1095 = vmatpush1.bf16.msra.mxu0 0
      %1096 = vmatprep.subr.bf16.mxu0 0
      %1097 = vmatpush1.bf16.msra.mxu0 0
      %1098 = vmatprep.subr.bf16.mxu0 0
      %1099 = vmatpush1.bf16.msra.mxu0 0
      %1100 = vmatprep.subr.bf16.mxu0 0
      %1101 = vmatpush1.bf16.msra.mxu0 0
      %1102 = vmatprep.subr.bf16.mxu0 0
      %1103 = vmatpush1.bf16.msra.mxu0 0
      %1104 = vmatprep.subr.bf16.mxu0 0
      %1105 = vmatpush1.bf16.msra.mxu0 0
      %1106 = vmatprep.subr.bf16.mxu0 0
      %1107 = vmatpush1.bf16.msra.mxu0 0
      %1108 = vmatprep.subr.bf16.mxu0 0
      %1109 = vmatpush1.bf16.msra.mxu0 0
      %1110 = vmatprep.subr.bf16.mxu0 0
      %1111 = vmatpush1.bf16.msra.mxu0 0
      %1112 = vmatprep.subr.bf16.mxu0 0
      %1113 = vmatpush1.bf16.msra.mxu0 0
      %1114 = vmatprep.subr.bf16.mxu0 0
      %1115 = vmatpush1.bf16.msra.mxu0 0
      %1116 = vmatprep.subr.bf16.mxu0 0
      %1117 = vmatpush1.bf16.msra.mxu0 0
      %1118 = vmatprep.mubr.bf16.mxu0 0
      %1119 = vmatmul.mubr.bf16.gmra.mrb[0].mxu0 %v763
      %v1120 = vpop.f32.mrb[0].mxu0
      %v1121 = vadd.f32 0.0, %v1120
      %v1122 = vpop.f32.mrb[0].mxu0
      %v1123 = vadd.f32 0.0, %v1122
      %v1124 = vpop.f32.mrb[0].mxu0
      %v1125 = vadd.f32 0.0, %v1124
      %v1126 = vpop.f32.mrb[0].mxu0
      %v1127 = vadd.f32 0.0, %v1126
      %1128 = vmatprep.mubr.bf16.mxu0 0
      %1129 = vmatmul.mubr.bf16.gmra.mrb[0].mxu0 %v766
      %v1130 = vpop.f32.mrb[0].mxu0
      %v1131 = vadd.f32 0.0, %v1130
      %v1132 = vpop.f32.mrb[0].mxu0
      %v1133 = vadd.f32 0.0, %v1132
      %v1134 = vpop.f32.mrb[0].mxu0
      %v1135 = vadd.f32 0.0, %v1134
      %v1136 = vpop.f32.mrb[0].mxu0
      %v1137 = vadd.f32 0.0, %v1136
      %1138 = vdwg.mxu0
      %1139 = vmatprep.subr.bf16.mxu0 %v648
      %1140 = vmatpush1.bf16.msra.mxu0 %v647
      %1141 = vmatprep.subr.bf16.mxu0 %v664
      %1142 = vmatpush1.bf16.msra.mxu0 %v663
      %1143 = vmatprep.subr.bf16.mxu0 %v680
      %1144 = vmatpush1.bf16.msra.mxu0 %v679
      %1145 = vmatprep.subr.bf16.mxu0 %v696
      %1146 = vmatpush1.bf16.msra.mxu0 %v695
      %1147 = vmatprep.subr.bf16.mxu0 0
      %1148 = vmatpush1.bf16.msra.mxu0 0
      %1149 = vmatprep.subr.bf16.mxu0 0
      %1150 = vmatpush1.bf16.msra.mxu0 0
      %1151 = vmatprep.subr.bf16.mxu0 0
      %1152 = vmatpush1.bf16.msra.mxu0 0
      %1153 = vmatprep.subr.bf16.mxu0 0
      %1154 = vmatpush1.bf16.msra.mxu0 0
      %1155 = vmatprep.subr.bf16.mxu0 0
      %1156 = vmatpush1.bf16.msra.mxu0 0
      %1157 = vmatprep.subr.bf16.mxu0 0
      %1158 = vmatpush1.bf16.msra.mxu0 0
      %1159 = vmatprep.subr.bf16.mxu0 0
      %1160 = vmatpush1.bf16.msra.mxu0 0
      %1161 = vmatprep.subr.bf16.mxu0 0
      %1162 = vmatpush1.bf16.msra.mxu0 0
      %1163 = vmatprep.subr.bf16.mxu0 0
      %1164 = vmatpush1.bf16.msra.mxu0 0
      %1165 = vmatprep.subr.bf16.mxu0 0
      %1166 = vmatpush1.bf16.msra.mxu0 0
      %1167 = vmatprep.subr.bf16.mxu0 0
      %1168 = vmatpush1.bf16.msra.mxu0 0
      %1169 = vmatprep.subr.bf16.mxu0 0
      %1170 = vmatpush1.bf16.msra.mxu0 0
      %1171 = vmatprep.mubr.bf16.mxu0 0
      %1172 = vmatmul.mubr.bf16.gmra.mrb[0].mxu0 %v763
      %v1173 = vpop.f32.mrb[0].mxu0
      %v1174 = vadd.f32 0.0, %v1173
      %v1175 = vpop.f32.mrb[0].mxu0
      %v1176 = vadd.f32 0.0, %v1175
      %v1177 = vpop.f32.mrb[0].mxu0
      %v1178 = vadd.f32 0.0, %v1177
      %v1179 = vpop.f32.mrb[0].mxu0
      %v1180 = vadd.f32 0.0, %v1179
      %1181 = vmatprep.mubr.bf16.mxu0 0
      %1182 = vmatmul.mubr.bf16.gmra.mrb[0].mxu0 %v766
      %v1183 = vpop.f32.mrb[0].mxu0
      %v1184 = vadd.f32 0.0, %v1183
      %v1185 = vpop.f32.mrb[0].mxu0
      %v1186 = vadd.f32 0.0, %v1185
      %v1187 = vpop.f32.mrb[0].mxu0
      %v1188 = vadd.f32 0.0, %v1187
      %v1189 = vpop.f32.mrb[0].mxu0
      %v1190 = vadd.f32 0.0, %v1189
      %1191 = vdwg.mxu0
      %v1192 = vmul.f32 %v803, %v803
      %v1193 = vmul.f32 %v805, %v805
      %v1194 = vmul.f32 %v856, %v856
      %v1195 = vmul.f32 %v858, %v858
      %v1196 = vmul.f32 %v909, %v909
      %v1197 = vmul.f32 %v911, %v911
      %v1198 = vmul.f32 %v962, %v962
      %v1199 = vmul.f32 %v964, %v964
      %v1200 = vmul.f32 %v807, %v807
      %v1201 = vmul.f32 %v809, %v809
      %v1202 = vmul.f32 %v860, %v860
      %v1203 = vmul.f32 %v862, %v862
      %v1204 = vmul.f32 %v913, %v913
      %v1205 = vmul.f32 %v915, %v915
      %v1206 = vmul.f32 %v966, %v966
      %v1207 = vmul.f32 %v968, %v968
      %v1208 = vmul.f32 %v813, %v813
      %v1209 = vmul.f32 %v815, %v815
      %v1210 = vmul.f32 %v866, %v866
      %v1211 = vmul.f32 %v868, %v868
      %v1212 = vmul.f32 %v919, %v919
      %v1213 = vmul.f32 %v921, %v921
      %v1214 = vmul.f32 %v972, %v972
      %v1215 = vmul.f32 %v974, %v974
      %v1216 = vmul.f32 %v817, %v817
      %v1217 = vmul.f32 %v819, %v819
      %v1218 = vmul.f32 %v870, %v870
      %v1219 = vmul.f32 %v872, %v872
      %v1220 = vmul.f32 %v923, %v923
      %v1221 = vmul.f32 %v925, %v925
      %v1222 = vmul.f32 %v976, %v976
      %v1223 = vmul.f32 %v978, %v978
      %v1224 = vmul.f32 %v1015, %v1015
      %v1225 = vmul.f32 %v1017, %v1017
      %v1226 = vmul.f32 %v1068, %v1068
      %v1227 = vmul.f32 %v1070, %v1070
      %v1228 = vmul.f32 %v1121, %v1121
      %v1229 = vmul.f32 %v1123, %v1123
      %v1230 = vmul.f32 %v1174, %v1174
      %v1231 = vmul.f32 %v1176, %v1176
      %v1232 = vmul.f32 %v1019, %v1019
      %v1233 = vmul.f32 %v1021, %v1021
      %v1234 = vmul.f32 %v1072, %v1072
      %v1235 = vmul.f32 %v1074, %v1074
      %v1236 = vmul.f32 %v1125, %v1125
      %v1237 = vmul.f32 %v1127, %v1127
      %v1238 = vmul.f32 %v1178, %v1178
      %v1239 = vmul.f32 %v1180, %v1180
      %v1240 = vmul.f32 %v1025, %v1025
      %v1241 = vmul.f32 %v1027, %v1027
      %v1242 = vmul.f32 %v1078, %v1078
      %v1243 = vmul.f32 %v1080, %v1080
      %v1244 = vmul.f32 %v1131, %v1131
      %v1245 = vmul.f32 %v1133, %v1133
      %v1246 = vmul.f32 %v1184, %v1184
      %v1247 = vmul.f32 %v1186, %v1186
      %v1248 = vmul.f32 %v1029, %v1029
      %v1249 = vmul.f32 %v1031, %v1031
      %v1250 = vmul.f32 %v1082, %v1082
      %v1251 = vmul.f32 %v1084, %v1084
      %v1252 = vmul.f32 %v1135, %v1135
      %v1253 = vmul.f32 %v1137, %v1137
      %v1254 = vmul.f32 %v1188, %v1188
      %v1255 = vmul.f32 %v1190, %v1190
      %v1256 = vadd.f32 %v1192, %v1224
      %v1257 = vadd.f32 %v1193, %v1225
      %v1258 = vadd.f32 %v1194, %v1226
      %v1259 = vadd.f32 %v1195, %v1227
      %v1260 = vadd.f32 %v1196, %v1228
      %v1261 = vadd.f32 %v1197, %v1229
      %v1262 = vadd.f32 %v1198, %v1230
      %v1263 = vadd.f32 %v1199, %v1231
      %v1264 = vadd.f32 %v1200, %v1232
      %v1265 = vadd.f32 %v1201, %v1233
      %v1266 = vadd.f32 %v1202, %v1234
      %v1267 = vadd.f32 %v1203, %v1235
      %v1268 = vadd.f32 %v1204, %v1236
      %v1269 = vadd.f32 %v1205, %v1237
      %v1270 = vadd.f32 %v1206, %v1238
      %v1271 = vadd.f32 %v1207, %v1239
      %v1272 = vadd.f32 %v1208, %v1240
      %v1273 = vadd.f32 %v1209, %v1241
      %v1274 = vadd.f32 %v1210, %v1242
      %v1275 = vadd.f32 %v1211, %v1243
      %v1276 = vadd.f32 %v1212, %v1244
      %v1277 = vadd.f32 %v1213, %v1245
      %v1278 = vadd.f32 %v1214, %v1246
      %v1279 = vadd.f32 %v1215, %v1247
      %v1280 = vadd.f32 %v1216, %v1248
      %v1281 = vadd.f32 %v1217, %v1249
      %v1282 = vadd.f32 %v1218, %v1250
      %v1283 = vadd.f32 %v1219, %v1251
      %v1284 = vadd.f32 %v1220, %v1252
      %v1285 = vadd.f32 %v1221, %v1253
      %v1286 = vadd.f32 %v1222, %v1254
      %v1287 = vadd.f32 %v1223, %v1255
      %v1288 = vrsqrt.pop %v1256
      %v1289 = vmul.f32 %v1256, %v1288
      %vm1290 = vcmp.eq.f32.partialorder %v1256, inf
      %v1291 = vsel %vm1290, %v1256, %v1289
      %vm1292 = vcmp.eq.f32.partialorder %v1256, 0.0
      %v1293 = vand.u32 %v1256, 2147483648
      %v1294 = vsel %vm1292, %v1293, %v1291
      %v1295 = vrsqrt.pop %v1257
      %v1296 = vmul.f32 %v1257, %v1295
      %vm1297 = vcmp.eq.f32.partialorder %v1257, inf
      %v1298 = vsel %vm1297, %v1257, %v1296
      %vm1299 = vcmp.eq.f32.partialorder %v1257, 0.0
      %v1300 = vand.u32 %v1257, 2147483648
      %v1301 = vsel %vm1299, %v1300, %v1298
      %v1302 = vrsqrt.pop %v1258
      %v1303 = vmul.f32 %v1258, %v1302
      %vm1304 = vcmp.eq.f32.partialorder %v1258, inf
      %v1305 = vsel %vm1304, %v1258, %v1303
      %vm1306 = vcmp.eq.f32.partialorder %v1258, 0.0
      %v1307 = vand.u32 %v1258, 2147483648
      %v1308 = vsel %vm1306, %v1307, %v1305
      %v1309 = vrsqrt.pop %v1259
      %v1310 = vmul.f32 %v1259, %v1309
      %vm1311 = vcmp.eq.f32.partialorder %v1259, inf
      %v1312 = vsel %vm1311, %v1259, %v1310
      %vm1313 = vcmp.eq.f32.partialorder %v1259, 0.0
      %v1314 = vand.u32 %v1259, 2147483648
      %v1315 = vsel %vm1313, %v1314, %v1312
      %v1316 = vrsqrt.pop %v1260
      %v1317 = vmul.f32 %v1260, %v1316
      %vm1318 = vcmp.eq.f32.partialorder %v1260, inf
      %v1319 = vsel %vm1318, %v1260, %v1317
      %vm1320 = vcmp.eq.f32.partialorder %v1260, 0.0
      %v1321 = vand.u32 %v1260, 2147483648
      %v1322 = vsel %vm1320, %v1321, %v1319
      %v1323 = vrsqrt.pop %v1261
      %v1324 = vmul.f32 %v1261, %v1323
      %vm1325 = vcmp.eq.f32.partialorder %v1261, inf
      %v1326 = vsel %vm1325, %v1261, %v1324
      %vm1327 = vcmp.eq.f32.partialorder %v1261, 0.0
      %v1328 = vand.u32 %v1261, 2147483648
      %v1329 = vsel %vm1327, %v1328, %v1326
      %v1330 = vrsqrt.pop %v1262
      %v1331 = vmul.f32 %v1262, %v1330
      %vm1332 = vcmp.eq.f32.partialorder %v1262, inf
      %v1333 = vsel %vm1332, %v1262, %v1331
      %vm1334 = vcmp.eq.f32.partialorder %v1262, 0.0
      %v1335 = vand.u32 %v1262, 2147483648
      %v1336 = vsel %vm1334, %v1335, %v1333
      %v1337 = vrsqrt.pop %v1263
      %v1338 = vmul.f32 %v1263, %v1337
      %vm1339 = vcmp.eq.f32.partialorder %v1263, inf
      %v1340 = vsel %vm1339, %v1263, %v1338
      %vm1341 = vcmp.eq.f32.partialorder %v1263, 0.0
      %v1342 = vand.u32 %v1263, 2147483648
      %v1343 = vsel %vm1341, %v1342, %v1340
      %v1344 = vrsqrt.pop %v1264
      %v1345 = vmul.f32 %v1264, %v1344
      %vm1346 = vcmp.eq.f32.partialorder %v1264, inf
      %v1347 = vsel %vm1346, %v1264, %v1345
      %vm1348 = vcmp.eq.f32.partialorder %v1264, 0.0
      %v1349 = vand.u32 %v1264, 2147483648
      %v1350 = vsel %vm1348, %v1349, %v1347
      %v1351 = vrsqrt.pop %v1265
      %v1352 = vmul.f32 %v1265, %v1351
      %vm1353 = vcmp.eq.f32.partialorder %v1265, inf
      %v1354 = vsel %vm1353, %v1265, %v1352
      %vm1355 = vcmp.eq.f32.partialorder %v1265, 0.0
      %v1356 = vand.u32 %v1265, 2147483648
      %v1357 = vsel %vm1355, %v1356, %v1354
      %v1358 = vrsqrt.pop %v1266
      %v1359 = vmul.f32 %v1266, %v1358
      %vm1360 = vcmp.eq.f32.partialorder %v1266, inf
      %v1361 = vsel %vm1360, %v1266, %v1359
      %vm1362 = vcmp.eq.f32.partialorder %v1266, 0.0
      %v1363 = vand.u32 %v1266, 2147483648
      %v1364 = vsel %vm1362, %v1363, %v1361
      %v1365 = vrsqrt.pop %v1267
      %v1366 = vmul.f32 %v1267, %v1365
      %vm1367 = vcmp.eq.f32.partialorder %v1267, inf
      %v1368 = vsel %vm1367, %v1267, %v1366
      %vm1369 = vcmp.eq.f32.partialorder %v1267, 0.0
      %v1370 = vand.u32 %v1267, 2147483648
      %v1371 = vsel %vm1369, %v1370, %v1368
      %v1372 = vrsqrt.pop %v1268
      %v1373 = vmul.f32 %v1268, %v1372
      %vm1374 = vcmp.eq.f32.partialorder %v1268, inf
      %v1375 = vsel %vm1374, %v1268, %v1373
      %vm1376 = vcmp.eq.f32.partialorder %v1268, 0.0
      %v1377 = vand.u32 %v1268, 2147483648
      %v1378 = vsel %vm1376, %v1377, %v1375
      %v1379 = vrsqrt.pop %v1269
      %v1380 = vmul.f32 %v1269, %v1379
      %vm1381 = vcmp.eq.f32.partialorder %v1269, inf
      %v1382 = vsel %vm1381, %v1269, %v1380
      %vm1383 = vcmp.eq.f32.partialorder %v1269, 0.0
      %v1384 = vand.u32 %v1269, 2147483648
      %v1385 = vsel %vm1383, %v1384, %v1382
      %v1386 = vrsqrt.pop %v1270
      %v1387 = vmul.f32 %v1270, %v1386
      %vm1388 = vcmp.eq.f32.partialorder %v1270, inf
      %v1389 = vsel %vm1388, %v1270, %v1387
      %vm1390 = vcmp.eq.f32.partialorder %v1270, 0.0
      %v1391 = vand.u32 %v1270, 2147483648
      %v1392 = vsel %vm1390, %v1391, %v1389
      %v1393 = vrsqrt.pop %v1271
      %v1394 = vmul.f32 %v1271, %v1393
      %vm1395 = vcmp.eq.f32.partialorder %v1271, inf
      %v1396 = vsel %vm1395, %v1271, %v1394
      %vm1397 = vcmp.eq.f32.partialorder %v1271, 0.0
      %v1398 = vand.u32 %v1271, 2147483648
      %v1399 = vsel %vm1397, %v1398, %v1396
      %v1400 = vrsqrt.pop %v1272
      %v1401 = vmul.f32 %v1272, %v1400
      %vm1402 = vcmp.eq.f32.partialorder %v1272, inf
      %v1403 = vsel %vm1402, %v1272, %v1401
      %vm1404 = vcmp.eq.f32.partialorder %v1272, 0.0
      %v1405 = vand.u32 %v1272, 2147483648
      %v1406 = vsel %vm1404, %v1405, %v1403
      %v1407 = vrsqrt.pop %v1273
      %v1408 = vmul.f32 %v1273, %v1407
      %vm1409 = vcmp.eq.f32.partialorder %v1273, inf
      %v1410 = vsel %vm1409, %v1273, %v1408
      %vm1411 = vcmp.eq.f32.partialorder %v1273, 0.0
      %v1412 = vand.u32 %v1273, 2147483648
      %v1413 = vsel %vm1411, %v1412, %v1410
      %v1414 = vrsqrt.pop %v1274
      %v1415 = vmul.f32 %v1274, %v1414
      %vm1416 = vcmp.eq.f32.partialorder %v1274, inf
      %v1417 = vsel %vm1416, %v1274, %v1415
      %vm1418 = vcmp.eq.f32.partialorder %v1274, 0.0
      %v1419 = vand.u32 %v1274, 2147483648
      %v1420 = vsel %vm1418, %v1419, %v1417
      %v1421 = vrsqrt.pop %v1275
      %v1422 = vmul.f32 %v1275, %v1421
      %vm1423 = vcmp.eq.f32.partialorder %v1275, inf
      %v1424 = vsel %vm1423, %v1275, %v1422
      %vm1425 = vcmp.eq.f32.partialorder %v1275, 0.0
      %v1426 = vand.u32 %v1275, 2147483648
      %v1427 = vsel %vm1425, %v1426, %v1424
      %v1428 = vrsqrt.pop %v1276
      %v1429 = vmul.f32 %v1276, %v1428
      %vm1430 = vcmp.eq.f32.partialorder %v1276, inf
      %v1431 = vsel %vm1430, %v1276, %v1429
      %vm1432 = vcmp.eq.f32.partialorder %v1276, 0.0
      %v1433 = vand.u32 %v1276, 2147483648
      %v1434 = vsel %vm1432, %v1433, %v1431
      %v1435 = vrsqrt.pop %v1277
      %v1436 = vmul.f32 %v1277, %v1435
      %vm1437 = vcmp.eq.f32.partialorder %v1277, inf
      %v1438 = vsel %vm1437, %v1277, %v1436
      %vm1439 = vcmp.eq.f32.partialorder %v1277, 0.0
      %v1440 = vand.u32 %v1277, 2147483648
      %v1441 = vsel %vm1439, %v1440, %v1438
      %v1442 = vrsqrt.pop %v1278
      %v1443 = vmul.f32 %v1278, %v1442
      %vm1444 = vcmp.eq.f32.partialorder %v1278, inf
      %v1445 = vsel %vm1444, %v1278, %v1443
      %vm1446 = vcmp.eq.f32.partialorder %v1278, 0.0
      %v1447 = vand.u32 %v1278, 2147483648
      %v1448 = vsel %vm1446, %v1447, %v1445
      %v1449 = vrsqrt.pop %v1279
      %v1450 = vmul.f32 %v1279, %v1449
      %vm1451 = vcmp.eq.f32.partialorder %v1279, inf
      %v1452 = vsel %vm1451, %v1279, %v1450
      %vm1453 = vcmp.eq.f32.partialorder %v1279, 0.0
      %v1454 = vand.u32 %v1279, 2147483648
      %v1455 = vsel %vm1453, %v1454, %v1452
      %v1456 = vrsqrt.pop %v1280
      %v1457 = vmul.f32 %v1280, %v1456
      %vm1458 = vcmp.eq.f32.partialorder %v1280, inf
      %v1459 = vsel %vm1458, %v1280, %v1457
      %vm1460 = vcmp.eq.f32.partialorder %v1280, 0.0
      %v1461 = vand.u32 %v1280, 2147483648
      %v1462 = vsel %vm1460, %v1461, %v1459
      %v1463 = vrsqrt.pop %v1281
      %v1464 = vmul.f32 %v1281, %v1463
      %vm1465 = vcmp.eq.f32.partialorder %v1281, inf
      %v1466 = vsel %vm1465, %v1281, %v1464
      %vm1467 = vcmp.eq.f32.partialorder %v1281, 0.0
      %v1468 = vand.u32 %v1281, 2147483648
      %v1469 = vsel %vm1467, %v1468, %v1466
      %v1470 = vrsqrt.pop %v1282
      %v1471 = vmul.f32 %v1282, %v1470
      %vm1472 = vcmp.eq.f32.partialorder %v1282, inf
      %v1473 = vsel %vm1472, %v1282, %v1471
      %vm1474 = vcmp.eq.f32.partialorder %v1282, 0.0
      %v1475 = vand.u32 %v1282, 2147483648
      %v1476 = vsel %vm1474, %v1475, %v1473
      %v1477 = vrsqrt.pop %v1283
      %v1478 = vmul.f32 %v1283, %v1477
      %vm1479 = vcmp.eq.f32.partialorder %v1283, inf
      %v1480 = vsel %vm1479, %v1283, %v1478
      %vm1481 = vcmp.eq.f32.partialorder %v1283, 0.0
      %v1482 = vand.u32 %v1283, 2147483648
      %v1483 = vsel %vm1481, %v1482, %v1480
      %v1484 = vrsqrt.pop %v1284
      %v1485 = vmul.f32 %v1284, %v1484
      %vm1486 = vcmp.eq.f32.partialorder %v1284, inf
      %v1487 = vsel %vm1486, %v1284, %v1485
      %vm1488 = vcmp.eq.f32.partialorder %v1284, 0.0
      %v1489 = vand.u32 %v1284, 2147483648
      %v1490 = vsel %vm1488, %v1489, %v1487
      %v1491 = vrsqrt.pop %v1285
      %v1492 = vmul.f32 %v1285, %v1491
      %vm1493 = vcmp.eq.f32.partialorder %v1285, inf
      %v1494 = vsel %vm1493, %v1285, %v1492
      %vm1495 = vcmp.eq.f32.partialorder %v1285, 0.0
      %v1496 = vand.u32 %v1285, 2147483648
      %v1497 = vsel %vm1495, %v1496, %v1494
      %v1498 = vrsqrt.pop %v1286
      %v1499 = vmul.f32 %v1286, %v1498
      %vm1500 = vcmp.eq.f32.partialorder %v1286, inf
      %v1501 = vsel %vm1500, %v1286, %v1499
      %vm1502 = vcmp.eq.f32.partialorder %v1286, 0.0
      %v1503 = vand.u32 %v1286, 2147483648
      %v1504 = vsel %vm1502, %v1503, %v1501
      %v1505 = vrsqrt.pop %v1287
      %v1506 = vmul.f32 %v1287, %v1505
      %vm1507 = vcmp.eq.f32.partialorder %v1287, inf
      %v1508 = vsel %vm1507, %v1287, %v1506
      %vm1509 = vcmp.eq.f32.partialorder %v1287, 0.0
      %v1510 = vand.u32 %v1287, 2147483648
      %v1511 = vsel %vm1509, %v1510, %v1508
      %v1512 = vpack.c.bf16 %v1350, %v1294
      %v1513 = vpack.c.bf16 %v1357, %v1301
      %v1514 = vpack.c.bf16 %v1364, %v1308
      %v1515 = vpack.c.bf16 %v1371, %v1315
      %v1516 = vpack.c.bf16 %v1378, %v1322
      %v1517 = vpack.c.bf16 %v1385, %v1329
      %v1518 = vpack.c.bf16 %v1392, %v1336
      %v1519 = vpack.c.bf16 %v1399, %v1343
      %v1520 = vpack.c.bf16 %v1462, %v1406
      %v1521 = vpack.c.bf16 %v1469, %v1413
      %v1522 = vpack.c.bf16 %v1476, %v1420
      %v1523 = vpack.c.bf16 %v1483, %v1427
      %v1524 = vpack.c.bf16 %v1490, %v1434
      %v1525 = vpack.c.bf16 %v1497, %v1441
      %v1526 = vpack.c.bf16 %v1504, %v1448
      %v1527 = vpack.c.bf16 %v1511, %v1455
      %v1528 = vld [vmem:[%s347] sm:$0xf]
      %v1529 = vld [vmem:[%s347 + $0x4] sm:$0xf]
      %v1530 = vld [vmem:[%s347 + $0x8] sm:$0xf]
      %v1531 = vld [vmem:[%s347 + $0xc] sm:$0xf]
      %v1532 = vld [vmem:[%s347 + $0x10] sm:$0xf]
      %v1533 = vld [vmem:[%s347 + $0x14] sm:$0xf]
      %v1534 = vld [vmem:[%s347 + $0x18] sm:$0xf]
      %v1535 = vld [vmem:[%s347 + $0x1c] sm:$0xf]
      %v1536 = vld [vmem:[%s347 + $0x20] sm:$0xf]
      %v1537 = vld [vmem:[%s347 + $0x24] sm:$0xf]
      %v1538 = vld [vmem:[%s347 + $0x28] sm:$0xf]
      %v1539 = vld [vmem:[%s347 + $0x2c] sm:$0xf]
      %v1540 = vld [vmem:[%s347 + $0x30] sm:$0xf]
      %v1541 = vld [vmem:[%s347 + $0x34] sm:$0xf]
      %v1542 = vld [vmem:[%s347 + $0x38] sm:$0xf]
      %v1543 = vld [vmem:[%s347 + $0x3c] sm:$0xf]
      %v1544 = vld [vmem:[%s347 + $0x40] sm:$0xf]
      %v1545 = vld [vmem:[%s347 + $0x44] sm:$0xf]
      %v1546 = vld [vmem:[%s347 + $0x48] sm:$0xf]
      %v1547 = vld [vmem:[%s347 + $0x4c] sm:$0xf]
      %v1548 = vld [vmem:[%s347 + $0x50] sm:$0xf]
      %v1549 = vld [vmem:[%s347 + $0x54] sm:$0xf]
      %v1550 = vld [vmem:[%s347 + $0x58] sm:$0xf]
      %v1551 = vld [vmem:[%s347 + $0x5c] sm:$0xf]
      %v1552 = vld [vmem:[%s347 + $0x60] sm:$0xf]
      %v1553 = vld [vmem:[%s347 + $0x64] sm:$0xf]
      %v1554 = vld [vmem:[%s347 + $0x68] sm:$0xf]
      %v1555 = vld [vmem:[%s347 + $0x6c] sm:$0xf]
      %v1556 = vld [vmem:[%s347 + $0x70] sm:$0xf]
      %v1557 = vld [vmem:[%s347 + $0x74] sm:$0xf]
      %v1558 = vld [vmem:[%s347 + $0x78] sm:$0xf]
      %v1559 = vld [vmem:[%s347 + $0x7c] sm:$0xf]
      %v1560 = vld [vmem:[%s347 + $0x80] sm:$0xf]
      %v1561 = vld [vmem:[%s347 + $0x84] sm:$0xf]
      %v1562 = vld [vmem:[%s347 + $0x88] sm:$0xf]
      %v1563 = vld [vmem:[%s347 + $0x8c] sm:$0xf]
      %v1564 = vld [vmem:[%s347 + $0x90] sm:$0xf]
      %v1565 = vld [vmem:[%s347 + $0x94] sm:$0xf]
      %v1566 = vld [vmem:[%s347 + $0x98] sm:$0xf]
      %v1567 = vld [vmem:[%s347 + $0x9c] sm:$0xf]
      %v1568 = vld [vmem:[%s347 + $0xa0] sm:$0xf]
      %v1569 = vld [vmem:[%s347 + $0xa4] sm:$0xf]
      %v1570 = vld [vmem:[%s347 + $0xa8] sm:$0xf]
      %v1571 = vld [vmem:[%s347 + $0xac] sm:$0xf]
      %v1572 = vld [vmem:[%s347 + $0xb0] sm:$0xf]
      %v1573 = vld [vmem:[%s347 + $0xb4] sm:$0xf]
      %v1574 = vld [vmem:[%s347 + $0xb8] sm:$0xf]
      %v1575 = vld [vmem:[%s347 + $0xbc] sm:$0xf]
      %v1576 = vld [vmem:[%s347 + $0xc0] sm:$0xf]
      %v1577 = vld [vmem:[%s347 + $0xc4] sm:$0xf]
      %v1578 = vld [vmem:[%s347 + $0xc8] sm:$0xf]
      %v1579 = vld [vmem:[%s347 + $0xcc] sm:$0xf]
      %v1580 = vld [vmem:[%s347 + $0xd0] sm:$0xf]
      %v1581 = vld [vmem:[%s347 + $0xd4] sm:$0xf]
      %v1582 = vld [vmem:[%s347 + $0xd8] sm:$0xf]
      %v1583 = vld [vmem:[%s347 + $0xdc] sm:$0xf]
      %v1584 = vld [vmem:[%s347 + $0xe0] sm:$0xf]
      %v1585 = vld [vmem:[%s347 + $0xe4] sm:$0xf]
      %v1586 = vld [vmem:[%s347 + $0xe8] sm:$0xf]
      %v1587 = vld [vmem:[%s347 + $0xec] sm:$0xf]
      %v1588 = vld [vmem:[%s347 + $0xf0] sm:$0xf]
      %v1589 = vld [vmem:[%s347 + $0xf4] sm:$0xf]
      %v1590 = vld [vmem:[%s347 + $0xf8] sm:$0xf]
      %v1591 = vld [vmem:[%s347 + $0xfc] sm:$0xf]
      %v1592 = vld [vmem:[%s347 + $0x100] sm:$0xf]
      %v1593 = vld [vmem:[%s347 + $0x104] sm:$0xf]
      %v1594 = vld [vmem:[%s347 + $0x108] sm:$0xf]
      %v1595 = vld [vmem:[%s347 + $0x10c] sm:$0xf]
      %v1596 = vld [vmem:[%s347 + $0x110] sm:$0xf]
      %v1597 = vld [vmem:[%s347 + $0x114] sm:$0xf]
      %v1598 = vld [vmem:[%s347 + $0x118] sm:$0xf]
      %v1599 = vld [vmem:[%s347 + $0x11c] sm:$0xf]
      %v1600 = vld [vmem:[%s347 + $0x120] sm:$0xf]
      %v1601 = vld [vmem:[%s347 + $0x124] sm:$0xf]
      %v1602 = vld [vmem:[%s347 + $0x128] sm:$0xf]
      %v1603 = vld [vmem:[%s347 + $0x12c] sm:$0xf]
      %v1604 = vld [vmem:[%s347 + $0x130] sm:$0xf]
      %v1605 = vld [vmem:[%s347 + $0x134] sm:$0xf]
      %v1606 = vld [vmem:[%s347 + $0x138] sm:$0xf]
      %v1607 = vld [vmem:[%s347 + $0x13c] sm:$0xf]
      %v1608 = vld [vmem:[%s347 + $0x140] sm:$0xf]
      %v1609 = vld [vmem:[%s347 + $0x144] sm:$0xf]
      %v1610 = vld [vmem:[%s347 + $0x148] sm:$0xf]
      %v1611 = vld [vmem:[%s347 + $0x14c] sm:$0xf]
      %v1612 = vld [vmem:[%s347 + $0x150] sm:$0xf]
      %v1613 = vld [vmem:[%s347 + $0x154] sm:$0xf]
      %v1614 = vld [vmem:[%s347 + $0x158] sm:$0xf]
      %v1615 = vld [vmem:[%s347 + $0x15c] sm:$0xf]
      %v1616 = vld [vmem:[%s347 + $0x160] sm:$0xf]
      %v1617 = vld [vmem:[%s347 + $0x164] sm:$0xf]
      %v1618 = vld [vmem:[%s347 + $0x168] sm:$0xf]
      %v1619 = vld [vmem:[%s347 + $0x16c] sm:$0xf]
      %v1620 = vld [vmem:[%s347 + $0x170] sm:$0xf]
      %v1621 = vld [vmem:[%s347 + $0x174] sm:$0xf]
      %v1622 = vld [vmem:[%s347 + $0x178] sm:$0xf]
      %v1623 = vld [vmem:[%s347 + $0x17c] sm:$0xf]
      %v1624 = vld [vmem:[%s347 + $0x180] sm:$0xf]
      %v1625 = vld [vmem:[%s347 + $0x184] sm:$0xf]
      %v1626 = vld [vmem:[%s347 + $0x188] sm:$0xf]
      %v1627 = vld [vmem:[%s347 + $0x18c] sm:$0xf]
      %v1628 = vld [vmem:[%s347 + $0x190] sm:$0xf]
      %v1629 = vld [vmem:[%s347 + $0x194] sm:$0xf]
      %v1630 = vld [vmem:[%s347 + $0x198] sm:$0xf]
      %v1631 = vld [vmem:[%s347 + $0x19c] sm:$0xf]
      %v1632 = vld [vmem:[%s347 + $0x1a0] sm:$0xf]
      %v1633 = vld [vmem:[%s347 + $0x1a4] sm:$0xf]
      %v1634 = vld [vmem:[%s347 + $0x1a8] sm:$0xf]
      %v1635 = vld [vmem:[%s347 + $0x1ac] sm:$0xf]
      %v1636 = vld [vmem:[%s347 + $0x1b0] sm:$0xf]
      %v1637 = vld [vmem:[%s347 + $0x1b4] sm:$0xf]
      %v1638 = vld [vmem:[%s347 + $0x1b8] sm:$0xf]
      %v1639 = vld [vmem:[%s347 + $0x1bc] sm:$0xf]
      %v1640 = vld [vmem:[%s347 + $0x1c0] sm:$0xf]
      %v1641 = vld [vmem:[%s347 + $0x1c4] sm:$0xf]
      %v1642 = vld [vmem:[%s347 + $0x1c8] sm:$0xf]
      %v1643 = vld [vmem:[%s347 + $0x1cc] sm:$0xf]
      %v1644 = vld [vmem:[%s347 + $0x1d0] sm:$0xf]
      %v1645 = vld [vmem:[%s347 + $0x1d4] sm:$0xf]
      %v1646 = vld [vmem:[%s347 + $0x1d8] sm:$0xf]
      %v1647 = vld [vmem:[%s347 + $0x1dc] sm:$0xf]
      %v1648 = vld [vmem:[%s347 + $0x1e0] sm:$0xf]
      %v1649 = vld [vmem:[%s347 + $0x1e4] sm:$0xf]
      %v1650 = vld [vmem:[%s347 + $0x1e8] sm:$0xf]
      %v1651 = vld [vmem:[%s347 + $0x1ec] sm:$0xf]
      %v1652 = vld [vmem:[%s347 + $0x1f0] sm:$0xf]
      %v1653 = vld [vmem:[%s347 + $0x1f4] sm:$0xf]
      %v1654 = vld [vmem:[%s347 + $0x1f8] sm:$0xf]
      %v1655 = vld [vmem:[%s347 + $0x1fc] sm:$0xf]
      %v1656 = vld [vmem:[%s350] sm:$0x1]
      %v1658 = vlaneseq
      %v1659 = vshrl.u32 %v1658, 7
      %v1660 = vsub.s32 0, %v1659
      %v1661 = vrot.slane %v1656, %v1660
      %v1791 = vunpack.c.l.b16 %v1528
      %v1792 = vunpack.c.l.b16 %v1529
      %v1793 = vunpack.c.l.b16 %v1530
      %v1794 = vunpack.c.l.b16 %v1531
      %v1795 = vunpack.c.l.b16 %v1532
      %v1796 = vunpack.c.l.b16 %v1533
      %v1797 = vunpack.c.l.b16 %v1534
      %v1798 = vunpack.c.l.b16 %v1535
      %v1799 = vunpack.c.l.b16 %v1536
      %v1800 = vunpack.c.l.b16 %v1537
      %v1801 = vunpack.c.l.b16 %v1538
      %v1802 = vunpack.c.l.b16 %v1539
      %v1803 = vunpack.c.l.b16 %v1540
      %v1804 = vunpack.c.l.b16 %v1541
      %v1805 = vunpack.c.l.b16 %v1542
      %v1806 = vunpack.c.l.b16 %v1543
      %v1807 = vunpack.c.l.b16 %v1544
      %v1808 = vunpack.c.l.b16 %v1545
      %v1809 = vunpack.c.l.b16 %v1546
      %v1810 = vunpack.c.l.b16 %v1547
      %v1811 = vunpack.c.l.b16 %v1548
      %v1812 = vunpack.c.l.b16 %v1549
      %v1813 = vunpack.c.l.b16 %v1550
      %v1814 = vunpack.c.l.b16 %v1551
      %v1815 = vunpack.c.l.b16 %v1552
      %v1816 = vunpack.c.l.b16 %v1553
      %v1817 = vunpack.c.l.b16 %v1554
      %v1818 = vunpack.c.l.b16 %v1555
      %v1819 = vunpack.c.l.b16 %v1556
      %v1820 = vunpack.c.l.b16 %v1557
      %v1821 = vunpack.c.l.b16 %v1558
      %v1822 = vunpack.c.l.b16 %v1559
      %v1823 = vunpack.c.l.b16 %v1560
      %v1824 = vunpack.c.l.b16 %v1561
      %v1825 = vunpack.c.l.b16 %v1562
      %v1826 = vunpack.c.l.b16 %v1563
      %v1827 = vunpack.c.l.b16 %v1564
      %v1828 = vunpack.c.l.b16 %v1565
      %v1829 = vunpack.c.l.b16 %v1566
      %v1830 = vunpack.c.l.b16 %v1567
      %v1831 = vunpack.c.l.b16 %v1568
      %v1832 = vunpack.c.l.b16 %v1569
      %v1833 = vunpack.c.l.b16 %v1570
      %v1834 = vunpack.c.l.b16 %v1571
      %v1835 = vunpack.c.l.b16 %v1572
      %v1836 = vunpack.c.l.b16 %v1573
      %v1837 = vunpack.c.l.b16 %v1574
      %v1838 = vunpack.c.l.b16 %v1575
      %v1839 = vunpack.c.l.b16 %v1576
      %v1840 = vunpack.c.l.b16 %v1577
      %v1841 = vunpack.c.l.b16 %v1578
      %v1842 = vunpack.c.l.b16 %v1579
      %v1843 = vunpack.c.l.b16 %v1580
      %v1844 = vunpack.c.l.b16 %v1581
      %v1845 = vunpack.c.l.b16 %v1582
      %v1846 = vunpack.c.l.b16 %v1583
      %v1847 = vunpack.c.l.b16 %v1584
      %v1848 = vunpack.c.l.b16 %v1585
      %v1849 = vunpack.c.l.b16 %v1586
      %v1850 = vunpack.c.l.b16 %v1587
      %v1851 = vunpack.c.l.b16 %v1588
      %v1852 = vunpack.c.l.b16 %v1589
      %v1853 = vunpack.c.l.b16 %v1590
      %v1854 = vunpack.c.l.b16 %v1591
      %v1855 = vunpack.c.l.b16 %v1592
      %v1856 = vunpack.c.l.b16 %v1593
      %v1857 = vunpack.c.l.b16 %v1594
      %v1858 = vunpack.c.l.b16 %v1595
      %v1859 = vunpack.c.l.b16 %v1596
      %v1860 = vunpack.c.l.b16 %v1597
      %v1861 = vunpack.c.l.b16 %v1598
      %v1862 = vunpack.c.l.b16 %v1599
      %v1863 = vunpack.c.l.b16 %v1600
      %v1864 = vunpack.c.l.b16 %v1601
      %v1865 = vunpack.c.l.b16 %v1602
      %v1866 = vunpack.c.l.b16 %v1603
      %v1867 = vunpack.c.l.b16 %v1604
      %v1868 = vunpack.c.l.b16 %v1605
      %v1869 = vunpack.c.l.b16 %v1606
      %v1870 = vunpack.c.l.b16 %v1607
      %v1871 = vunpack.c.l.b16 %v1608
      %v1872 = vunpack.c.l.b16 %v1609
      %v1873 = vunpack.c.l.b16 %v1610
      %v1874 = vunpack.c.l.b16 %v1611
      %v1875 = vunpack.c.l.b16 %v1612
      %v1876 = vunpack.c.l.b16 %v1613
      %v1877 = vunpack.c.l.b16 %v1614
      %v1878 = vunpack.c.l.b16 %v1615
      %v1879 = vunpack.c.l.b16 %v1616
      %v1880 = vunpack.c.l.b16 %v1617
      %v1881 = vunpack.c.l.b16 %v1618
      %v1882 = vunpack.c.l.b16 %v1619
      %v1883 = vunpack.c.l.b16 %v1620
      %v1884 = vunpack.c.l.b16 %v1621
      %v1885 = vunpack.c.l.b16 %v1622
      %v1886 = vunpack.c.l.b16 %v1623
      %v1887 = vunpack.c.l.b16 %v1624
      %v1888 = vunpack.c.l.b16 %v1625
      %v1889 = vunpack.c.l.b16 %v1626
      %v1890 = vunpack.c.l.b16 %v1627
      %v1891 = vunpack.c.l.b16 %v1628
      %v1892 = vunpack.c.l.b16 %v1629
      %v1893 = vunpack.c.l.b16 %v1630
      %v1894 = vunpack.c.l.b16 %v1631
      %v1895 = vunpack.c.l.b16 %v1632
      %v1896 = vunpack.c.l.b16 %v1633
      %v1897 = vunpack.c.l.b16 %v1634
      %v1898 = vunpack.c.l.b16 %v1635
      %v1899 = vunpack.c.l.b16 %v1636
      %v1900 = vunpack.c.l.b16 %v1637
      %v1901 = vunpack.c.l.b16 %v1638
      %v1902 = vunpack.c.l.b16 %v1639
      %v1903 = vunpack.c.l.b16 %v1640
      %v1904 = vunpack.c.l.b16 %v1641
      %v1905 = vunpack.c.l.b16 %v1642
      %v1906 = vunpack.c.l.b16 %v1643
      %v1907 = vunpack.c.l.b16 %v1644
      %v1908 = vunpack.c.l.b16 %v1645
      %v1909 = vunpack.c.l.b16 %v1646
      %v1910 = vunpack.c.l.b16 %v1647
      %v1911 = vunpack.c.l.b16 %v1648
      %v1912 = vunpack.c.l.b16 %v1649
      %v1913 = vunpack.c.l.b16 %v1650
      %v1914 = vunpack.c.l.b16 %v1651
      %v1915 = vunpack.c.l.b16 %v1652
      %v1916 = vunpack.c.l.b16 %v1653
      %v1917 = vunpack.c.l.b16 %v1654
      %v1918 = vunpack.c.l.b16 %v1655
      %v1919 = vpack.c.b16 %v1792, %v1791
      %v1920 = vpack.c.b16 %v1794, %v1793
      %v1921 = vpack.c.b16 %v1796, %v1795
      %v1922 = vpack.c.b16 %v1798, %v1797
      %v1923 = vpack.c.b16 %v1800, %v1799
      %v1924 = vpack.c.b16 %v1802, %v1801
      %v1925 = vpack.c.b16 %v1804, %v1803
      %v1926 = vpack.c.b16 %v1806, %v1805
      %v1927 = vpack.c.b16 %v1808, %v1807
      %v1928 = vpack.c.b16 %v1810, %v1809
      %v1929 = vpack.c.b16 %v1812, %v1811
      %v1930 = vpack.c.b16 %v1814, %v1813
      %v1931 = vpack.c.b16 %v1816, %v1815
      %v1932 = vpack.c.b16 %v1818, %v1817
      %v1933 = vpack.c.b16 %v1820, %v1819
      %v1934 = vpack.c.b16 %v1822, %v1821
      %v1935 = vpack.c.b16 %v1824, %v1823
      %v1936 = vpack.c.b16 %v1826, %v1825
      %v1937 = vpack.c.b16 %v1828, %v1827
      %v1938 = vpack.c.b16 %v1830, %v1829
      %v1939 = vpack.c.b16 %v1832, %v1831
      %v1940 = vpack.c.b16 %v1834, %v1833
      %v1941 = vpack.c.b16 %v1836, %v1835
      %v1942 = vpack.c.b16 %v1838, %v1837
      %v1943 = vpack.c.b16 %v1840, %v1839
      %v1944 = vpack.c.b16 %v1842, %v1841
      %v1945 = vpack.c.b16 %v1844, %v1843
      %v1946 = vpack.c.b16 %v1846, %v1845
      %v1947 = vpack.c.b16 %v1848, %v1847
      %v1948 = vpack.c.b16 %v1850, %v1849
      %v1949 = vpack.c.b16 %v1852, %v1851
      %v1950 = vpack.c.b16 %v1854, %v1853
      %v1951 = vpack.c.b16 %v1856, %v1855
      %v1952 = vpack.c.b16 %v1858, %v1857
      %v1953 = vpack.c.b16 %v1860, %v1859
      %v1954 = vpack.c.b16 %v1862, %v1861
      %v1955 = vpack.c.b16 %v1864, %v1863
      %v1956 = vpack.c.b16 %v1866, %v1865
      %v1957 = vpack.c.b16 %v1868, %v1867
      %v1958 = vpack.c.b16 %v1870, %v1869
      %v1959 = vpack.c.b16 %v1872, %v1871
      %v1960 = vpack.c.b16 %v1874, %v1873
      %v1961 = vpack.c.b16 %v1876, %v1875
      %v1962 = vpack.c.b16 %v1878, %v1877
      %v1963 = vpack.c.b16 %v1880, %v1879
      %v1964 = vpack.c.b16 %v1882, %v1881
      %v1965 = vpack.c.b16 %v1884, %v1883
      %v1966 = vpack.c.b16 %v1886, %v1885
      %v1967 = vpack.c.b16 %v1888, %v1887
      %v1968 = vpack.c.b16 %v1890, %v1889
      %v1969 = vpack.c.b16 %v1892, %v1891
      %v1970 = vpack.c.b16 %v1894, %v1893
      %v1971 = vpack.c.b16 %v1896, %v1895
      %v1972 = vpack.c.b16 %v1898, %v1897
      %v1973 = vpack.c.b16 %v1900, %v1899
      %v1974 = vpack.c.b16 %v1902, %v1901
      %v1975 = vpack.c.b16 %v1904, %v1903
      %v1976 = vpack.c.b16 %v1906, %v1905
      %v1977 = vpack.c.b16 %v1908, %v1907
      %v1978 = vpack.c.b16 %v1910, %v1909
      %v1979 = vpack.c.b16 %v1912, %v1911
      %v1980 = vpack.c.b16 %v1914, %v1913
      %v1981 = vpack.c.b16 %v1916, %v1915
      %v1982 = vpack.c.b16 %v1918, %v1917
      %2047 = vmatprep.subr.bf16.mxu0 0
      %2048 = vmatpush1.bf16.msra.mxu0 %v1919
      %2049 = vmatprep.subr.bf16.mxu0 0
      %2050 = vmatpush1.bf16.msra.mxu0 %v1920
      %2051 = vmatprep.subr.bf16.mxu0 0
      %2052 = vmatpush1.bf16.msra.mxu0 %v1921
      %2053 = vmatprep.subr.bf16.mxu0 0
      %2054 = vmatpush1.bf16.msra.mxu0 %v1922
      %2055 = vmatprep.subr.bf16.mxu0 0
      %2056 = vmatpush1.bf16.msra.mxu0 %v1923
      %2057 = vmatprep.subr.bf16.mxu0 0
      %2058 = vmatpush1.bf16.msra.mxu0 %v1924
      %2059 = vmatprep.subr.bf16.mxu0 0
      %2060 = vmatpush1.bf16.msra.mxu0 %v1925
      %2061 = vmatprep.subr.bf16.mxu0 0
      %2062 = vmatpush1.bf16.msra.mxu0 %v1926
      %2063 = vmatprep.subr.bf16.mxu0 0
      %2064 = vmatpush1.bf16.msra.mxu0 %v1927
      %2065 = vmatprep.subr.bf16.mxu0 0
      %2066 = vmatpush1.bf16.msra.mxu0 %v1928
      %2067 = vmatprep.subr.bf16.mxu0 0
      %2068 = vmatpush1.bf16.msra.mxu0 %v1929
      %2069 = vmatprep.subr.bf16.mxu0 0
      %2070 = vmatpush1.bf16.msra.mxu0 %v1930
      %2071 = vmatprep.subr.bf16.mxu0 0
      %2072 = vmatpush1.bf16.msra.mxu0 %v1931
      %2073 = vmatprep.subr.bf16.mxu0 0
      %2074 = vmatpush1.bf16.msra.mxu0 %v1932
      %2075 = vmatprep.subr.bf16.mxu0 0
      %2076 = vmatpush1.bf16.msra.mxu0 %v1933
      %2077 = vmatprep.subr.bf16.mxu0 0
      %2078 = vmatpush1.bf16.msra.mxu0 %v1934
      %2079 = vmatprep.mubr.bf16.mxu0 %v1513
      %2080 = vmatmul.mubr.bf16.gmra.mrb[0].mxu0 %v1512
      %v2081 = vpop.f32.mrb[0].mxu0
      %v2082 = vadd.f32 %v1661, %v2081
      %v2083 = vpop.f32.mrb[0].mxu0
      %v2084 = vpop.f32.mrb[0].mxu0
      %v2085 = vadd.f32 %v1661, %v2084
      %v2086 = vpop.f32.mrb[0].mxu0
      %2087 = vmatprep.mubr.bf16.mxu0 %v1521
      %2088 = vmatmul.mubr.bf16.gmra.mrb[0].mxu0 %v1520
      %v2089 = vpop.f32.mrb[0].mxu0
      %v2090 = vadd.f32 %v1661, %v2089
      %v2091 = vpop.f32.mrb[0].mxu0
      %v2092 = vpop.f32.mrb[0].mxu0
      %v2093 = vadd.f32 %v1661, %v2092
      %v2094 = vpop.f32.mrb[0].mxu0
      %2095 = vdwg.mxu0
      %2096 = vmatprep.subr.bf16.mxu0 0
      %2097 = vmatpush1.bf16.msra.mxu0 %v1935
      %2098 = vmatprep.subr.bf16.mxu0 0
      %2099 = vmatpush1.bf16.msra.mxu0 %v1936
      %2100 = vmatprep.subr.bf16.mxu0 0
      %2101 = vmatpush1.bf16.msra.mxu0 %v1937
      %2102 = vmatprep.subr.bf16.mxu0 0
      %2103 = vmatpush1.bf16.msra.mxu0 %v1938
      %2104 = vmatprep.subr.bf16.mxu0 0
      %2105 = vmatpush1.bf16.msra.mxu0 %v1939
      %2106 = vmatprep.subr.bf16.mxu0 0
      %2107 = vmatpush1.bf16.msra.mxu0 %v1940
      %2108 = vmatprep.subr.bf16.mxu0 0
      %2109 = vmatpush1.bf16.msra.mxu0 %v1941
      %2110 = vmatprep.subr.bf16.mxu0 0
      %2111 = vmatpush1.bf16.msra.mxu0 %v1942
      %2112 = vmatprep.subr.bf16.mxu0 0
      %2113 = vmatpush1.bf16.msra.mxu0 %v1943
      %2114 = vmatprep.subr.bf16.mxu0 0
      %2115 = vmatpush1.bf16.msra.mxu0 %v1944
      %2116 = vmatprep.subr.bf16.mxu0 0
      %2117 = vmatpush1.bf16.msra.mxu0 %v1945
      %2118 = vmatprep.subr.bf16.mxu0 0
      %2119 = vmatpush1.bf16.msra.mxu0 %v1946
      %2120 = vmatprep.subr.bf16.mxu0 0
      %2121 = vmatpush1.bf16.msra.mxu0 %v1947
      %2122 = vmatprep.subr.bf16.mxu0 0
      %2123 = vmatpush1.bf16.msra.mxu0 %v1948
      %2124 = vmatprep.subr.bf16.mxu0 0
      %2125 = vmatpush1.bf16.msra.mxu0 %v1949
      %2126 = vmatprep.subr.bf16.mxu0 0
      %2127 = vmatpush1.bf16.msra.mxu0 %v1950
      %2128 = vmatprep.mubr.bf16.mxu0 %v1515
      %2129 = vmatmul.mubr.bf16.gmra.mrb[0].mxu0 %v1514
      %v2130 = vpop.f32.mrb[0].mxu0
      %v2131 = vadd.f32 %v2082, %v2130
      %v2132 = vpop.f32.mrb[0].mxu0
      %v2133 = vpop.f32.mrb[0].mxu0
      %v2134 = vadd.f32 %v2085, %v2133
      %v2135 = vpop.f32.mrb[0].mxu0
      %2136 = vmatprep.mubr.bf16.mxu0 %v1523
      %2137 = vmatmul.mubr.bf16.gmra.mrb[0].mxu0 %v1522
      %v2138 = vpop.f32.mrb[0].mxu0
      %v2139 = vadd.f32 %v2090, %v2138
      %v2140 = vpop.f32.mrb[0].mxu0
      %v2141 = vpop.f32.mrb[0].mxu0
      %v2142 = vadd.f32 %v2093, %v2141
      %v2143 = vpop.f32.mrb[0].mxu0
      %2144 = vdwg.mxu0
      %2145 = vmatprep.subr.bf16.mxu0 0
      %2146 = vmatpush1.bf16.msra.mxu0 %v1951
      %2147 = vmatprep.subr.bf16.mxu0 0
      %2148 = vmatpush1.bf16.msra.mxu0 %v1952
      %2149 = vmatprep.subr.bf16.mxu0 0
      %2150 = vmatpush1.bf16.msra.mxu0 %v1953
      %2151 = vmatprep.subr.bf16.mxu0 0
      %2152 = vmatpush1.bf16.msra.mxu0 %v1954
      %2153 = vmatprep.subr.bf16.mxu0 0
      %2154 = vmatpush1.bf16.msra.mxu0 %v1955
      %2155 = vmatprep.subr.bf16.mxu0 0
      %2156 = vmatpush1.bf16.msra.mxu0 %v1956
      %2157 = vmatprep.subr.bf16.mxu0 0
      %2158 = vmatpush1.bf16.msra.mxu0 %v1957
      %2159 = vmatprep.subr.bf16.mxu0 0
      %2160 = vmatpush1.bf16.msra.mxu0 %v1958
      %2161 = vmatprep.subr.bf16.mxu0 0
      %2162 = vmatpush1.bf16.msra.mxu0 %v1959
      %2163 = vmatprep.subr.bf16.mxu0 0
      %2164 = vmatpush1.bf16.msra.mxu0 %v1960
      %2165 = vmatprep.subr.bf16.mxu0 0
      %2166 = vmatpush1.bf16.msra.mxu0 %v1961
      %2167 = vmatprep.subr.bf16.mxu0 0
      %2168 = vmatpush1.bf16.msra.mxu0 %v1962
      %2169 = vmatprep.subr.bf16.mxu0 0
      %2170 = vmatpush1.bf16.msra.mxu0 %v1963
      %2171 = vmatprep.subr.bf16.mxu0 0
      %2172 = vmatpush1.bf16.msra.mxu0 %v1964
      %2173 = vmatprep.subr.bf16.mxu0 0
      %2174 = vmatpush1.bf16.msra.mxu0 %v1965
      %2175 = vmatprep.subr.bf16.mxu0 0
      %2176 = vmatpush1.bf16.msra.mxu0 %v1966
      %2177 = vmatprep.mubr.bf16.mxu0 %v1517
      %2178 = vmatmul.mubr.bf16.gmra.mrb[0].mxu0 %v1516
      %v2179 = vpop.f32.mrb[0].mxu0
      %v2180 = vadd.f32 %v2131, %v2179
      %v2181 = vpop.f32.mrb[0].mxu0
      %v2182 = vpop.f32.mrb[0].mxu0
      %v2183 = vadd.f32 %v2134, %v2182
      %v2184 = vpop.f32.mrb[0].mxu0
      %2185 = vmatprep.mubr.bf16.mxu0 %v1525
      %2186 = vmatmul.mubr.bf16.gmra.mrb[0].mxu0 %v1524
      %v2187 = vpop.f32.mrb[0].mxu0
      %v2188 = vadd.f32 %v2139, %v2187
      %v2189 = vpop.f32.mrb[0].mxu0
      %v2190 = vpop.f32.mrb[0].mxu0
      %v2191 = vadd.f32 %v2142, %v2190
      %v2192 = vpop.f32.mrb[0].mxu0
      %2193 = vdwg.mxu0
      %2194 = vmatprep.subr.bf16.mxu0 0
      %2195 = vmatpush1.bf16.msra.mxu0 %v1967
      %2196 = vmatprep.subr.bf16.mxu0 0
      %2197 = vmatpush1.bf16.msra.mxu0 %v1968
      %2198 = vmatprep.subr.bf16.mxu0 0
      %2199 = vmatpush1.bf16.msra.mxu0 %v1969
      %2200 = vmatprep.subr.bf16.mxu0 0
      %2201 = vmatpush1.bf16.msra.mxu0 %v1970
      %2202 = vmatprep.subr.bf16.mxu0 0
      %2203 = vmatpush1.bf16.msra.mxu0 %v1971
      %2204 = vmatprep.subr.bf16.mxu0 0
      %2205 = vmatpush1.bf16.msra.mxu0 %v1972
      %2206 = vmatprep.subr.bf16.mxu0 0
      %2207 = vmatpush1.bf16.msra.mxu0 %v1973
      %2208 = vmatprep.subr.bf16.mxu0 0
      %2209 = vmatpush1.bf16.msra.mxu0 %v1974
      %2210 = vmatprep.subr.bf16.mxu0 0
      %2211 = vmatpush1.bf16.msra.mxu0 %v1975
      %2212 = vmatprep.subr.bf16.mxu0 0
      %2213 = vmatpush1.bf16.msra.mxu0 %v1976
      %2214 = vmatprep.subr.bf16.mxu0 0
      %2215 = vmatpush1.bf16.msra.mxu0 %v1977
      %2216 = vmatprep.subr.bf16.mxu0 0
      %2217 = vmatpush1.bf16.msra.mxu0 %v1978
      %2218 = vmatprep.subr.bf16.mxu0 0
      %2219 = vmatpush1.bf16.msra.mxu0 %v1979
      %2220 = vmatprep.subr.bf16.mxu0 0
      %2221 = vmatpush1.bf16.msra.mxu0 %v1980
      %2222 = vmatprep.subr.bf16.mxu0 0
      %2223 = vmatpush1.bf16.msra.mxu0 %v1981
      %2224 = vmatprep.subr.bf16.mxu0 0
      %2225 = vmatpush1.bf16.msra.mxu0 %v1982
      %2226 = vmatprep.mubr.bf16.mxu0 %v1519
      %2227 = vmatmul.mubr.bf16.gmra.mrb[0].mxu0 %v1518
      %v2228 = vpop.f32.mrb[0].mxu0
      %v2229 = vadd.f32 %v2180, %v2228
      %v2230 = vpop.f32.mrb[0].mxu0
      %v2231 = vpop.f32.mrb[0].mxu0
      %v2232 = vadd.f32 %v2183, %v2231
      %v2233 = vpop.f32.mrb[0].mxu0
      %2234 = vmatprep.mubr.bf16.mxu0 %v1527
      %2235 = vmatmul.mubr.bf16.gmra.mrb[0].mxu0 %v1526
      %v2236 = vpop.f32.mrb[0].mxu0
      %v2237 = vadd.f32 %v2188, %v2236
      %v2238 = vpop.f32.mrb[0].mxu0
      %v2239 = vpop.f32.mrb[0].mxu0
      %v2240 = vadd.f32 %v2191, %v2239
      %v2241 = vpop.f32.mrb[0].mxu0
      %2242 = vdwg.mxu0
      %v2243 = vmax.f32 %v2229, 0.0
      %v2244 = vmax.f32 %v2232, 0.0
      %v2245 = vmax.f32 %v2237, 0.0
      %v2246 = vmax.f32 %v2240, 0.0
      %v2247 = vpack.c.bf16 %v2244, %v2243
      %v2248 = vpack.c.bf16 %v2246, %v2245
      %v2249 = vld [vmem:[%s355] sm:$0xff]
      %v2250 = vld [vmem:[%s355 + $0x8] sm:$0xff]
      %v2251 = vld [vmem:[%s355 + $0x10] sm:$0xff]
      %v2252 = vld [vmem:[%s355 + $0x18] sm:$0xff]
      %v2253 = vld [vmem:[%s355 + $0x20] sm:$0xff]
      %v2254 = vld [vmem:[%s355 + $0x28] sm:$0xff]
      %v2255 = vld [vmem:[%s355 + $0x30] sm:$0xff]
      %v2256 = vld [vmem:[%s355 + $0x38] sm:$0xff]
      %v2257 = vld [vmem:[%s355 + $0x40] sm:$0xff]
      %v2258 = vld [vmem:[%s355 + $0x48] sm:$0xff]
      %v2259 = vld [vmem:[%s355 + $0x50] sm:$0xff]
      %v2260 = vld [vmem:[%s355 + $0x58] sm:$0xff]
      %v2261 = vld [vmem:[%s355 + $0x60] sm:$0xff]
      %v2262 = vld [vmem:[%s355 + $0x68] sm:$0xff]
      %v2263 = vld [vmem:[%s355 + $0x70] sm:$0xff]
      %v2264 = vld [vmem:[%s355 + $0x78] sm:$0xff]
      %v2265 = vld [vmem:[%s355 + $0x80] sm:$0xff]
      %v2266 = vld [vmem:[%s355 + $0x88] sm:$0xff]
      %v2267 = vld [vmem:[%s355 + $0x90] sm:$0xff]
      %v2268 = vld [vmem:[%s355 + $0x98] sm:$0xff]
      %v2269 = vld [vmem:[%s355 + $0xa0] sm:$0xff]
      %v2270 = vld [vmem:[%s355 + $0xa8] sm:$0xff]
      %v2271 = vld [vmem:[%s355 + $0xb0] sm:$0xff]
      %v2272 = vld [vmem:[%s355 + $0xb8] sm:$0xff]
      %v2273 = vld [vmem:[%s355 + $0xc0] sm:$0xff]
      %v2274 = vld [vmem:[%s355 + $0xc8] sm:$0xff]
      %v2275 = vld [vmem:[%s355 + $0xd0] sm:$0xff]
      %v2276 = vld [vmem:[%s355 + $0xd8] sm:$0xff]
      %v2277 = vld [vmem:[%s355 + $0xe0] sm:$0xff]
      %v2278 = vld [vmem:[%s355 + $0xe8] sm:$0xff]
      %v2279 = vld [vmem:[%s355 + $0xf0] sm:$0xff]
      %v2280 = vld [vmem:[%s355 + $0xf8] sm:$0xff]
      %v2281 = vld [vmem:[%s355 + $0x100] sm:$0xff]
      %v2282 = vld [vmem:[%s355 + $0x108] sm:$0xff]
      %v2283 = vld [vmem:[%s355 + $0x110] sm:$0xff]
      %v2284 = vld [vmem:[%s355 + $0x118] sm:$0xff]
      %v2285 = vld [vmem:[%s355 + $0x120] sm:$0xff]
      %v2286 = vld [vmem:[%s355 + $0x128] sm:$0xff]
      %v2287 = vld [vmem:[%s355 + $0x130] sm:$0xff]
      %v2288 = vld [vmem:[%s355 + $0x138] sm:$0xff]
      %v2289 = vld [vmem:[%s355 + $0x140] sm:$0xff]
      %v2290 = vld [vmem:[%s355 + $0x148] sm:$0xff]
      %v2291 = vld [vmem:[%s355 + $0x150] sm:$0xff]
      %v2292 = vld [vmem:[%s355 + $0x158] sm:$0xff]
      %v2293 = vld [vmem:[%s355 + $0x160] sm:$0xff]
      %v2294 = vld [vmem:[%s355 + $0x168] sm:$0xff]
      %v2295 = vld [vmem:[%s355 + $0x170] sm:$0xff]
      %v2296 = vld [vmem:[%s355 + $0x178] sm:$0xff]
      %v2297 = vld [vmem:[%s355 + $0x180] sm:$0xff]
      %v2298 = vld [vmem:[%s355 + $0x188] sm:$0xff]
      %v2299 = vld [vmem:[%s355 + $0x190] sm:$0xff]
      %v2300 = vld [vmem:[%s355 + $0x198] sm:$0xff]
      %v2301 = vld [vmem:[%s355 + $0x1a0] sm:$0xff]
      %v2302 = vld [vmem:[%s355 + $0x1a8] sm:$0xff]
      %v2303 = vld [vmem:[%s355 + $0x1b0] sm:$0xff]
      %v2304 = vld [vmem:[%s355 + $0x1b8] sm:$0xff]
      %v2305 = vld [vmem:[%s355 + $0x1c0] sm:$0xff]
      %v2306 = vld [vmem:[%s355 + $0x1c8] sm:$0xff]
      %v2307 = vld [vmem:[%s355 + $0x1d0] sm:$0xff]
      %v2308 = vld [vmem:[%s355 + $0x1d8] sm:$0xff]
      %v2309 = vld [vmem:[%s355 + $0x1e0] sm:$0xff]
      %v2310 = vld [vmem:[%s355 + $0x1e8] sm:$0xff]
      %v2311 = vld [vmem:[%s355 + $0x1f0] sm:$0xff]
      %v2312 = vld [vmem:[%s355 + $0x1f8] sm:$0xff]
      %v2313 = vld [vmem:[%s359] sm:$0xff]
      %v2315 = vlaneseq
      %v2316 = vshrl.u32 %v2315, 7
      %v2317 = vsub.s32 0, %v2316
      %v2318 = vrot.slane %v2313, %v2317
      %v2319 = vlaneseq
      %v2320 = vshrl.u32 %v2319, 7
      %v2321 = vsub.s32 1, %v2320
      %v2322 = vrot.slane %v2313, %v2321
      %v2323 = vlaneseq
      %v2324 = vshrl.u32 %v2323, 7
      %v2325 = vsub.s32 2, %v2324
      %v2326 = vrot.slane %v2313, %v2325
      %v2327 = vlaneseq
      %v2328 = vshrl.u32 %v2327, 7
      %v2329 = vsub.s32 3, %v2328
      %v2330 = vrot.slane %v2313, %v2329
      %v2331 = vlaneseq
      %v2332 = vshrl.u32 %v2331, 7
      %v2333 = vsub.s32 4, %v2332
      %v2334 = vrot.slane %v2313, %v2333
      %v2335 = vlaneseq
      %v2336 = vshrl.u32 %v2335, 7
      %v2337 = vsub.s32 5, %v2336
      %v2338 = vrot.slane %v2313, %v2337
      %v2339 = vlaneseq
      %v2340 = vshrl.u32 %v2339, 7
      %v2341 = vsub.s32 6, %v2340
      %v2342 = vrot.slane %v2313, %v2341
      %v2343 = vlaneseq
      %v2344 = vshrl.u32 %v2343, 7
      %v2345 = vsub.s32 7, %v2344
      %v2346 = vrot.slane %v2313, %v2345
      %v2419 = vunpack.c.l.b16 %v2249
      %v2420 = vunpack.c.h.b16 %v2249
      %v2421 = vunpack.c.l.b16 %v2250
      %v2422 = vunpack.c.h.b16 %v2250
      %v2423 = vunpack.c.l.b16 %v2251
      %v2424 = vunpack.c.h.b16 %v2251
      %v2425 = vunpack.c.l.b16 %v2252
      %v2426 = vunpack.c.h.b16 %v2252
      %v2427 = vunpack.c.l.b16 %v2253
      %v2428 = vunpack.c.h.b16 %v2253
      %v2429 = vunpack.c.l.b16 %v2254
      %v2430 = vunpack.c.h.b16 %v2254
      %v2431 = vunpack.c.l.b16 %v2255
      %v2432 = vunpack.c.h.b16 %v2255
      %v2433 = vunpack.c.l.b16 %v2256
      %v2434 = vunpack.c.h.b16 %v2256
      %v2435 = vunpack.c.l.b16 %v2257
      %v2436 = vunpack.c.h.b16 %v2257
      %v2437 = vunpack.c.l.b16 %v2258
      %v2438 = vunpack.c.h.b16 %v2258
      %v2439 = vunpack.c.l.b16 %v2259
      %v2440 = vunpack.c.h.b16 %v2259
      %v2441 = vunpack.c.l.b16 %v2260
      %v2442 = vunpack.c.h.b16 %v2260
      %v2443 = vunpack.c.l.b16 %v2261
      %v2444 = vunpack.c.h.b16 %v2261
      %v2445 = vunpack.c.l.b16 %v2262
      %v2446 = vunpack.c.h.b16 %v2262
      %v2447 = vunpack.c.l.b16 %v2263
      %v2448 = vunpack.c.h.b16 %v2263
      %v2449 = vunpack.c.l.b16 %v2264
      %v2450 = vunpack.c.h.b16 %v2264
      %v2451 = vunpack.c.l.b16 %v2265
      %v2452 = vunpack.c.h.b16 %v2265
      %v2453 = vunpack.c.l.b16 %v2266
      %v2454 = vunpack.c.h.b16 %v2266
      %v2455 = vunpack.c.l.b16 %v2267
      %v2456 = vunpack.c.h.b16 %v2267
      %v2457 = vunpack.c.l.b16 %v2268
      %v2458 = vunpack.c.h.b16 %v2268
      %v2459 = vunpack.c.l.b16 %v2269
      %v2460 = vunpack.c.h.b16 %v2269
      %v2461 = vunpack.c.l.b16 %v2270
      %v2462 = vunpack.c.h.b16 %v2270
      %v2463 = vunpack.c.l.b16 %v2271
      %v2464 = vunpack.c.h.b16 %v2271
      %v2465 = vunpack.c.l.b16 %v2272
      %v2466 = vunpack.c.h.b16 %v2272
      %v2467 = vunpack.c.l.b16 %v2273
      %v2468 = vunpack.c.h.b16 %v2273
      %v2469 = vunpack.c.l.b16 %v2274
      %v2470 = vunpack.c.h.b16 %v2274
      %v2471 = vunpack.c.l.b16 %v2275
      %v2472 = vunpack.c.h.b16 %v2275
      %v2473 = vunpack.c.l.b16 %v2276
      %v2474 = vunpack.c.h.b16 %v2276
      %v2475 = vunpack.c.l.b16 %v2277
      %v2476 = vunpack.c.h.b16 %v2277
      %v2477 = vunpack.c.l.b16 %v2278
      %v2478 = vunpack.c.h.b16 %v2278
      %v2479 = vunpack.c.l.b16 %v2279
      %v2480 = vunpack.c.h.b16 %v2279
      %v2481 = vunpack.c.l.b16 %v2280
      %v2482 = vunpack.c.h.b16 %v2280
      %v2483 = vunpack.c.l.b16 %v2281
      %v2484 = vunpack.c.h.b16 %v2281
      %v2485 = vunpack.c.l.b16 %v2282
      %v2486 = vunpack.c.h.b16 %v2282
      %v2487 = vunpack.c.l.b16 %v2283
      %v2488 = vunpack.c.h.b16 %v2283
      %v2489 = vunpack.c.l.b16 %v2284
      %v2490 = vunpack.c.h.b16 %v2284
      %v2491 = vunpack.c.l.b16 %v2285
      %v2492 = vunpack.c.h.b16 %v2285
      %v2493 = vunpack.c.l.b16 %v2286
      %v2494 = vunpack.c.h.b16 %v2286
      %v2495 = vunpack.c.l.b16 %v2287
      %v2496 = vunpack.c.h.b16 %v2287
      %v2497 = vunpack.c.l.b16 %v2288
      %v2498 = vunpack.c.h.b16 %v2288
      %v2499 = vunpack.c.l.b16 %v2289
      %v2500 = vunpack.c.h.b16 %v2289
      %v2501 = vunpack.c.l.b16 %v2290
      %v2502 = vunpack.c.h.b16 %v2290
      %v2503 = vunpack.c.l.b16 %v2291
      %v2504 = vunpack.c.h.b16 %v2291
      %v2505 = vunpack.c.l.b16 %v2292
      %v2506 = vunpack.c.h.b16 %v2292
      %v2507 = vunpack.c.l.b16 %v2293
      %v2508 = vunpack.c.h.b16 %v2293
      %v2509 = vunpack.c.l.b16 %v2294
      %v2510 = vunpack.c.h.b16 %v2294
      %v2511 = vunpack.c.l.b16 %v2295
      %v2512 = vunpack.c.h.b16 %v2295
      %v2513 = vunpack.c.l.b16 %v2296
      %v2514 = vunpack.c.h.b16 %v2296
      %v2515 = vunpack.c.l.b16 %v2297
      %v2516 = vunpack.c.h.b16 %v2297
      %v2517 = vunpack.c.l.b16 %v2298
      %v2518 = vunpack.c.h.b16 %v2298
      %v2519 = vunpack.c.l.b16 %v2299
      %v2520 = vunpack.c.h.b16 %v2299
      %v2521 = vunpack.c.l.b16 %v2300
      %v2522 = vunpack.c.h.b16 %v2300
      %v2523 = vunpack.c.l.b16 %v2301
      %v2524 = vunpack.c.h.b16 %v2301
      %v2525 = vunpack.c.l.b16 %v2302
      %v2526 = vunpack.c.h.b16 %v2302
      %v2527 = vunpack.c.l.b16 %v2303
      %v2528 = vunpack.c.h.b16 %v2303
      %v2529 = vunpack.c.l.b16 %v2304
      %v2530 = vunpack.c.h.b16 %v2304
      %v2531 = vunpack.c.l.b16 %v2305
      %v2532 = vunpack.c.h.b16 %v2305
      %v2533 = vunpack.c.l.b16 %v2306
      %v2534 = vunpack.c.h.b16 %v2306
      %v2535 = vunpack.c.l.b16 %v2307
      %v2536 = vunpack.c.h.b16 %v2307
      %v2537 = vunpack.c.l.b16 %v2308
      %v2538 = vunpack.c.h.b16 %v2308
      %v2539 = vunpack.c.l.b16 %v2309
      %v2540 = vunpack.c.h.b16 %v2309
      %v2541 = vunpack.c.l.b16 %v2310
      %v2542 = vunpack.c.h.b16 %v2310
      %v2543 = vunpack.c.l.b16 %v2311
      %v2544 = vunpack.c.h.b16 %v2311
      %v2545 = vunpack.c.l.b16 %v2312
      %v2546 = vunpack.c.h.b16 %v2312
      %v2547 = vpack.c.b16 %v2427, %v2419
      %v2548 = vpack.c.b16 %v2428, %v2420
      %v2549 = vpack.c.b16 %v2429, %v2421
      %v2550 = vpack.c.b16 %v2430, %v2422
      %v2551 = vpack.c.b16 %v2431, %v2423
      %v2552 = vpack.c.b16 %v2432, %v2424
      %v2553 = vpack.c.b16 %v2433, %v2425
      %v2554 = vpack.c.b16 %v2434, %v2426
      %v2555 = vpack.c.b16 %v2443, %v2435
      %v2556 = vpack.c.b16 %v2444, %v2436
      %v2557 = vpack.c.b16 %v2445, %v2437
      %v2558 = vpack.c.b16 %v2446, %v2438
      %v2559 = vpack.c.b16 %v2447, %v2439
      %v2560 = vpack.c.b16 %v2448, %v2440
      %v2561 = vpack.c.b16 %v2449, %v2441
      %v2562 = vpack.c.b16 %v2450, %v2442
      %v2563 = vpack.c.b16 %v2459, %v2451
      %v2564 = vpack.c.b16 %v2460, %v2452
      %v2565 = vpack.c.b16 %v2461, %v2453
      %v2566 = vpack.c.b16 %v2462, %v2454
      %v2567 = vpack.c.b16 %v2463, %v2455
      %v2568 = vpack.c.b16 %v2464, %v2456
      %v2569 = vpack.c.b16 %v2465, %v2457
      %v2570 = vpack.c.b16 %v2466, %v2458
      %v2571 = vpack.c.b16 %v2475, %v2467
      %v2572 = vpack.c.b16 %v2476, %v2468
      %v2573 = vpack.c.b16 %v2477, %v2469
      %v2574 = vpack.c.b16 %v2478, %v2470
      %v2575 = vpack.c.b16 %v2479, %v2471
      %v2576 = vpack.c.b16 %v2480, %v2472
      %v2577 = vpack.c.b16 %v2481, %v2473
      %v2578 = vpack.c.b16 %v2482, %v2474
      %v2579 = vpack.c.b16 %v2491, %v2483
      %v2580 = vpack.c.b16 %v2492, %v2484
      %v2581 = vpack.c.b16 %v2493, %v2485
      %v2582 = vpack.c.b16 %v2494, %v2486
      %v2583 = vpack.c.b16 %v2495, %v2487
      %v2584 = vpack.c.b16 %v2496, %v2488
      %v2585 = vpack.c.b16 %v2497, %v2489
      %v2586 = vpack.c.b16 %v2498, %v2490
      %v2587 = vpack.c.b16 %v2507, %v2499
      %v2588 = vpack.c.b16 %v2508, %v2500
      %v2589 = vpack.c.b16 %v2509, %v2501
      %v2590 = vpack.c.b16 %v2510, %v2502
      %v2591 = vpack.c.b16 %v2511, %v2503
      %v2592 = vpack.c.b16 %v2512, %v2504
      %v2593 = vpack.c.b16 %v2513, %v2505
      %v2594 = vpack.c.b16 %v2514, %v2506
      %v2595 = vpack.c.b16 %v2523, %v2515
      %v2596 = vpack.c.b16 %v2524, %v2516
      %v2597 = vpack.c.b16 %v2525, %v2517
      %v2598 = vpack.c.b16 %v2526, %v2518
      %v2599 = vpack.c.b16 %v2527, %v2519
      %v2600 = vpack.c.b16 %v2528, %v2520
      %v2601 = vpack.c.b16 %v2529, %v2521
      %v2602 = vpack.c.b16 %v2530, %v2522
      %v2603 = vpack.c.b16 %v2539, %v2531
      %v2604 = vpack.c.b16 %v2540, %v2532
      %v2605 = vpack.c.b16 %v2541, %v2533
      %v2606 = vpack.c.b16 %v2542, %v2534
      %v2607 = vpack.c.b16 %v2543, %v2535
      %v2608 = vpack.c.b16 %v2544, %v2536
      %v2609 = vpack.c.b16 %v2545, %v2537
      %v2610 = vpack.c.b16 %v2546, %v2538
      %2675 = vmatprep.subr.bf16.mxu0 %v2548
      %2676 = vmatpush1.bf16.msra.mxu0 %v2547
      %2677 = vmatprep.subr.bf16.mxu0 %v2556
      %2678 = vmatpush1.bf16.msra.mxu0 %v2555
      %2679 = vmatprep.subr.bf16.mxu0 %v2564
      %2680 = vmatpush1.bf16.msra.mxu0 %v2563
      %2681 = vmatprep.subr.bf16.mxu0 %v2572
      %2682 = vmatpush1.bf16.msra.mxu0 %v2571
      %2683 = vmatprep.subr.bf16.mxu0 %v2580
      %2684 = vmatpush1.bf16.msra.mxu0 %v2579
      %2685 = vmatprep.subr.bf16.mxu0 %v2588
      %2686 = vmatpush1.bf16.msra.mxu0 %v2587
      %2687 = vmatprep.subr.bf16.mxu0 %v2596
      %2688 = vmatpush1.bf16.msra.mxu0 %v2595
      %2689 = vmatprep.subr.bf16.mxu0 %v2604
      %2690 = vmatpush1.bf16.msra.mxu0 %v2603
      %2691 = vmatprep.subr.bf16.mxu0 0
      %2692 = vmatpush1.bf16.msra.mxu0 0
      %2693 = vmatprep.subr.bf16.mxu0 0
      %2694 = vmatpush1.bf16.msra.mxu0 0
      %2695 = vmatprep.subr.bf16.mxu0 0
      %2696 = vmatpush1.bf16.msra.mxu0 0
      %2697 = vmatprep.subr.bf16.mxu0 0
      %2698 = vmatpush1.bf16.msra.mxu0 0
      %2699 = vmatprep.subr.bf16.mxu0 0
      %2700 = vmatpush1.bf16.msra.mxu0 0
      %2701 = vmatprep.subr.bf16.mxu0 0
      %2702 = vmatpush1.bf16.msra.mxu0 0
      %2703 = vmatprep.subr.bf16.mxu0 0
      %2704 = vmatpush1.bf16.msra.mxu0 0
      %2705 = vmatprep.subr.bf16.mxu0 0
      %2706 = vmatpush1.bf16.msra.mxu0 0
      %2707 = vmatprep.mubr.bf16.mxu0 0
      %2708 = vmatmul.mubr.bf16.gmra.mrb[0].mxu0 %v2247
      %v2709 = vpop.f32.mrb[0].mxu0
      %v2710 = vadd.f32 %v2318, %v2709
      %v2711 = vpop.f32.mrb[0].mxu0
      %v2712 = vadd.f32 %v2322, %v2711
      %v2713 = vpop.f32.mrb[0].mxu0
      %v2714 = vadd.f32 %v2318, %v2713
      %v2715 = vpop.f32.mrb[0].mxu0
      %v2716 = vadd.f32 %v2322, %v2715
      %2717 = vmatprep.mubr.bf16.mxu0 0
      %2718 = vmatmul.mubr.bf16.gmra.mrb[0].mxu0 %v2248
      %v2719 = vpop.f32.mrb[0].mxu0
      %v2720 = vadd.f32 %v2318, %v2719
      %v2721 = vpop.f32.mrb[0].mxu0
      %v2722 = vadd.f32 %v2322, %v2721
      %v2723 = vpop.f32.mrb[0].mxu0
      %v2724 = vadd.f32 %v2318, %v2723
      %v2725 = vpop.f32.mrb[0].mxu0
      %v2726 = vadd.f32 %v2322, %v2725
      %2727 = vdwg.mxu0
      %2728 = vmatprep.subr.bf16.mxu0 %v2550
      %2729 = vmatpush1.bf16.msra.mxu0 %v2549
      %2730 = vmatprep.subr.bf16.mxu0 %v2558
      %2731 = vmatpush1.bf16.msra.mxu0 %v2557
      %2732 = vmatprep.subr.bf16.mxu0 %v2566
      %2733 = vmatpush1.bf16.msra.mxu0 %v2565
      %2734 = vmatprep.subr.bf16.mxu0 %v2574
      %2735 = vmatpush1.bf16.msra.mxu0 %v2573
      %2736 = vmatprep.subr.bf16.mxu0 %v2582
      %2737 = vmatpush1.bf16.msra.mxu0 %v2581
      %2738 = vmatprep.subr.bf16.mxu0 %v2590
      %2739 = vmatpush1.bf16.msra.mxu0 %v2589
      %2740 = vmatprep.subr.bf16.mxu0 %v2598
      %2741 = vmatpush1.bf16.msra.mxu0 %v2597
      %2742 = vmatprep.subr.bf16.mxu0 %v2606
      %2743 = vmatpush1.bf16.msra.mxu0 %v2605
      %2744 = vmatprep.subr.bf16.mxu0 0
      %2745 = vmatpush1.bf16.msra.mxu0 0
      %2746 = vmatprep.subr.bf16.mxu0 0
      %2747 = vmatpush1.bf16.msra.mxu0 0
      %2748 = vmatprep.subr.bf16.mxu0 0
      %2749 = vmatpush1.bf16.msra.mxu0 0
      %2750 = vmatprep.subr.bf16.mxu0 0
      %2751 = vmatpush1.bf16.msra.mxu0 0
      %2752 = vmatprep.subr.bf16.mxu0 0
      %2753 = vmatpush1.bf16.msra.mxu0 0
      %2754 = vmatprep.subr.bf16.mxu0 0
      %2755 = vmatpush1.bf16.msra.mxu0 0
      %2756 = vmatprep.subr.bf16.mxu0 0
      %2757 = vmatpush1.bf16.msra.mxu0 0
      %2758 = vmatprep.subr.bf16.mxu0 0
      %2759 = vmatpush1.bf16.msra.mxu0 0
      %2760 = vmatprep.mubr.bf16.mxu0 0
      %2761 = vmatmul.mubr.bf16.gmra.mrb[0].mxu0 %v2247
      %v2762 = vpop.f32.mrb[0].mxu0
      %v2763 = vadd.f32 %v2326, %v2762
      %v2764 = vpop.f32.mrb[0].mxu0
      %v2765 = vadd.f32 %v2330, %v2764
      %v2766 = vpop.f32.mrb[0].mxu0
      %v2767 = vadd.f32 %v2326, %v2766
      %v2768 = vpop.f32.mrb[0].mxu0
      %v2769 = vadd.f32 %v2330, %v2768
      %2770 = vmatprep.mubr.bf16.mxu0 0
      %2771 = vmatmul.mubr.bf16.gmra.mrb[0].mxu0 %v2248
      %v2772 = vpop.f32.mrb[0].mxu0
      %v2773 = vadd.f32 %v2326, %v2772
      %v2774 = vpop.f32.mrb[0].mxu0
      %v2775 = vadd.f32 %v2330, %v2774
      %v2776 = vpop.f32.mrb[0].mxu0
      %v2777 = vadd.f32 %v2326, %v2776
      %v2778 = vpop.f32.mrb[0].mxu0
      %v2779 = vadd.f32 %v2330, %v2778
      %2780 = vdwg.mxu0
      %2781 = vmatprep.subr.bf16.mxu0 %v2552
      %2782 = vmatpush1.bf16.msra.mxu0 %v2551
      %2783 = vmatprep.subr.bf16.mxu0 %v2560
      %2784 = vmatpush1.bf16.msra.mxu0 %v2559
      %2785 = vmatprep.subr.bf16.mxu0 %v2568
      %2786 = vmatpush1.bf16.msra.mxu0 %v2567
      %2787 = vmatprep.subr.bf16.mxu0 %v2576
      %2788 = vmatpush1.bf16.msra.mxu0 %v2575
      %2789 = vmatprep.subr.bf16.mxu0 %v2584
      %2790 = vmatpush1.bf16.msra.mxu0 %v2583
      %2791 = vmatprep.subr.bf16.mxu0 %v2592
      %2792 = vmatpush1.bf16.msra.mxu0 %v2591
      %2793 = vmatprep.subr.bf16.mxu0 %v2600
      %2794 = vmatpush1.bf16.msra.mxu0 %v2599
      %2795 = vmatprep.subr.bf16.mxu0 %v2608
      %2796 = vmatpush1.bf16.msra.mxu0 %v2607
      %2797 = vmatprep.subr.bf16.mxu0 0
      %2798 = vmatpush1.bf16.msra.mxu0 0
      %2799 = vmatprep.subr.bf16.mxu0 0
      %2800 = vmatpush1.bf16.msra.mxu0 0
      %2801 = vmatprep.subr.bf16.mxu0 0
      %2802 = vmatpush1.bf16.msra.mxu0 0
      %2803 = vmatprep.subr.bf16.mxu0 0
      %2804 = vmatpush1.bf16.msra.mxu0 0
      %2805 = vmatprep.subr.bf16.mxu0 0
      %2806 = vmatpush1.bf16.msra.mxu0 0
      %2807 = vmatprep.subr.bf16.mxu0 0
      %2808 = vmatpush1.bf16.msra.mxu0 0
      %2809 = vmatprep.subr.bf16.mxu0 0
      %2810 = vmatpush1.bf16.msra.mxu0 0
      %2811 = vmatprep.subr.bf16.mxu0 0
      %2812 = vmatpush1.bf16.msra.mxu0 0
      %2813 = vmatprep.mubr.bf16.mxu0 0
      %2814 = vmatmul.mubr.bf16.gmra.mrb[0].mxu0 %v2247
      %v2815 = vpop.f32.mrb[0].mxu0
      %v2816 = vadd.f32 %v2334, %v2815
      %v2817 = vpop.f32.mrb[0].mxu0
      %v2818 = vadd.f32 %v2338, %v2817
      %v2819 = vpop.f32.mrb[0].mxu0
      %v2820 = vadd.f32 %v2334, %v2819
      %v2821 = vpop.f32.mrb[0].mxu0
      %v2822 = vadd.f32 %v2338, %v2821
      %2823 = vmatprep.mubr.bf16.mxu0 0
      %2824 = vmatmul.mubr.bf16.gmra.mrb[0].mxu0 %v2248
      %v2825 = vpop.f32.mrb[0].mxu0
      %v2826 = vadd.f32 %v2334, %v2825
      %v2827 = vpop.f32.mrb[0].mxu0
      %v2828 = vadd.f32 %v2338, %v2827
      %v2829 = vpop.f32.mrb[0].mxu0
      %v2830 = vadd.f32 %v2334, %v2829
      %v2831 = vpop.f32.mrb[0].mxu0
      %v2832 = vadd.f32 %v2338, %v2831
      %2833 = vdwg.mxu0
      %2834 = vmatprep.subr.bf16.mxu0 %v2554
      %2835 = vmatpush1.bf16.msra.mxu0 %v2553
      %2836 = vmatprep.subr.bf16.mxu0 %v2562
      %2837 = vmatpush1.bf16.msra.mxu0 %v2561
      %2838 = vmatprep.subr.bf16.mxu0 %v2570
      %2839 = vmatpush1.bf16.msra.mxu0 %v2569
      %2840 = vmatprep.subr.bf16.mxu0 %v2578
      %2841 = vmatpush1.bf16.msra.mxu0 %v2577
      %2842 = vmatprep.subr.bf16.mxu0 %v2586
      %2843 = vmatpush1.bf16.msra.mxu0 %v2585
      %2844 = vmatprep.subr.bf16.mxu0 %v2594
      %2845 = vmatpush1.bf16.msra.mxu0 %v2593
      %2846 = vmatprep.subr.bf16.mxu0 %v2602
      %2847 = vmatpush1.bf16.msra.mxu0 %v2601
      %2848 = vmatprep.subr.bf16.mxu0 %v2610
      %2849 = vmatpush1.bf16.msra.mxu0 %v2609
      %2850 = vmatprep.subr.bf16.mxu0 0
      %2851 = vmatpush1.bf16.msra.mxu0 0
      %2852 = vmatprep.subr.bf16.mxu0 0
      %2853 = vmatpush1.bf16.msra.mxu0 0
      %2854 = vmatprep.subr.bf16.mxu0 0
      %2855 = vmatpush1.bf16.msra.mxu0 0
      %2856 = vmatprep.subr.bf16.mxu0 0
      %2857 = vmatpush1.bf16.msra.mxu0 0
      %2858 = vmatprep.subr.bf16.mxu0 0
      %2859 = vmatpush1.bf16.msra.mxu0 0
      %2860 = vmatprep.subr.bf16.mxu0 0
      %2861 = vmatpush1.bf16.msra.mxu0 0
      %2862 = vmatprep.subr.bf16.mxu0 0
      %2863 = vmatpush1.bf16.msra.mxu0 0
      %2864 = vmatprep.subr.bf16.mxu0 0
      %2865 = vmatpush1.bf16.msra.mxu0 0
      %2866 = vmatprep.mubr.bf16.mxu0 0
      %2867 = vmatmul.mubr.bf16.gmra.mrb[0].mxu0 %v2247
      %v2868 = vpop.f32.mrb[0].mxu0
      %v2869 = vadd.f32 %v2342, %v2868
      %v2870 = vpop.f32.mrb[0].mxu0
      %v2871 = vadd.f32 %v2346, %v2870
      %v2872 = vpop.f32.mrb[0].mxu0
      %v2873 = vadd.f32 %v2342, %v2872
      %v2874 = vpop.f32.mrb[0].mxu0
      %v2875 = vadd.f32 %v2346, %v2874
      %2876 = vmatprep.mubr.bf16.mxu0 0
      %2877 = vmatmul.mubr.bf16.gmra.mrb[0].mxu0 %v2248
      %v2878 = vpop.f32.mrb[0].mxu0
      %v2879 = vadd.f32 %v2342, %v2878
      %v2880 = vpop.f32.mrb[0].mxu0
      %v2881 = vadd.f32 %v2346, %v2880
      %v2882 = vpop.f32.mrb[0].mxu0
      %v2883 = vadd.f32 %v2342, %v2882
      %v2884 = vpop.f32.mrb[0].mxu0
      %v2885 = vadd.f32 %v2346, %v2884
      %2886 = vdwg.mxu0
      %v2887 = vmax.f32 %v2710, 0.0
      %v2888 = vmax.f32 %v2712, 0.0
      %v2889 = vmax.f32 %v2763, 0.0
      %v2890 = vmax.f32 %v2765, 0.0
      %v2891 = vmax.f32 %v2816, 0.0
      %v2892 = vmax.f32 %v2818, 0.0
      %v2893 = vmax.f32 %v2869, 0.0
      %v2894 = vmax.f32 %v2871, 0.0
      %v2895 = vmax.f32 %v2714, 0.0
      %v2896 = vmax.f32 %v2716, 0.0
      %v2897 = vmax.f32 %v2767, 0.0
      %v2898 = vmax.f32 %v2769, 0.0
      %v2899 = vmax.f32 %v2820, 0.0
      %v2900 = vmax.f32 %v2822, 0.0
      %v2901 = vmax.f32 %v2873, 0.0
      %v2902 = vmax.f32 %v2875, 0.0
      %v2903 = vmax.f32 %v2720, 0.0
      %v2904 = vmax.f32 %v2722, 0.0
      %v2905 = vmax.f32 %v2773, 0.0
      %v2906 = vmax.f32 %v2775, 0.0
      %v2907 = vmax.f32 %v2826, 0.0
      %v2908 = vmax.f32 %v2828, 0.0
      %v2909 = vmax.f32 %v2879, 0.0
      %v2910 = vmax.f32 %v2881, 0.0
      %v2911 = vmax.f32 %v2724, 0.0
      %v2912 = vmax.f32 %v2726, 0.0
      %v2913 = vmax.f32 %v2777, 0.0
      %v2914 = vmax.f32 %v2779, 0.0
      %v2915 = vmax.f32 %v2830, 0.0
      %v2916 = vmax.f32 %v2832, 0.0
      %v2917 = vmax.f32 %v2883, 0.0
      %v2918 = vmax.f32 %v2885, 0.0
      %v2919 = vadd.f32 %v1294, 1e-08
      %v2920 = vadd.f32 %v1301, 1e-08
      %v2921 = vadd.f32 %v1308, 1e-08
      %v2922 = vadd.f32 %v1315, 1e-08
      %v2923 = vadd.f32 %v1322, 1e-08
      %v2924 = vadd.f32 %v1329, 1e-08
      %v2925 = vadd.f32 %v1336, 1e-08
      %v2926 = vadd.f32 %v1343, 1e-08
      %v2927 = vadd.f32 %v1350, 1e-08
      %v2928 = vadd.f32 %v1357, 1e-08
      %v2929 = vadd.f32 %v1364, 1e-08
      %v2930 = vadd.f32 %v1371, 1e-08
      %v2931 = vadd.f32 %v1378, 1e-08
      %v2932 = vadd.f32 %v1385, 1e-08
      %v2933 = vadd.f32 %v1392, 1e-08
      %v2934 = vadd.f32 %v1399, 1e-08
      %v2935 = vadd.f32 %v1406, 1e-08
      %v2936 = vadd.f32 %v1413, 1e-08
      %v2937 = vadd.f32 %v1420, 1e-08
      %v2938 = vadd.f32 %v1427, 1e-08
      %v2939 = vadd.f32 %v1434, 1e-08
      %v2940 = vadd.f32 %v1441, 1e-08
      %v2941 = vadd.f32 %v1448, 1e-08
      %v2942 = vadd.f32 %v1455, 1e-08
      %v2943 = vadd.f32 %v1462, 1e-08
      %v2944 = vadd.f32 %v1469, 1e-08
      %v2945 = vadd.f32 %v1476, 1e-08
      %v2946 = vadd.f32 %v1483, 1e-08
      %v2947 = vadd.f32 %v1490, 1e-08
      %v2948 = vadd.f32 %v1497, 1e-08
      %v2949 = vadd.f32 %v1504, 1e-08
      %v2950 = vadd.f32 %v1511, 1e-08
      %v2951 = vrcp.pop %v2919
      %v2952 = vrcp.pop %v2920
      %v2953 = vrcp.pop %v2921
      %v2954 = vrcp.pop %v2922
      %v2955 = vrcp.pop %v2923
      %v2956 = vrcp.pop %v2924
      %v2957 = vrcp.pop %v2925
      %v2958 = vrcp.pop %v2926
      %v2959 = vrcp.pop %v2927
      %v2960 = vrcp.pop %v2928
      %v2961 = vrcp.pop %v2929
      %v2962 = vrcp.pop %v2930
      %v2963 = vrcp.pop %v2931
      %v2964 = vrcp.pop %v2932
      %v2965 = vrcp.pop %v2933
      %v2966 = vrcp.pop %v2934
      %v2967 = vrcp.pop %v2935
      %v2968 = vrcp.pop %v2936
      %v2969 = vrcp.pop %v2937
      %v2970 = vrcp.pop %v2938
      %v2971 = vrcp.pop %v2939
      %v2972 = vrcp.pop %v2940
      %v2973 = vrcp.pop %v2941
      %v2974 = vrcp.pop %v2942
      %v2975 = vrcp.pop %v2943
      %v2976 = vrcp.pop %v2944
      %v2977 = vrcp.pop %v2945
      %v2978 = vrcp.pop %v2946
      %v2979 = vrcp.pop %v2947
      %v2980 = vrcp.pop %v2948
      %v2981 = vrcp.pop %v2949
      %v2982 = vrcp.pop %v2950
      %v2983 = vmul.f32 %v2887, %v2951
      %v2984 = vmul.f32 %v2888, %v2952
      %v2985 = vmul.f32 %v2889, %v2953
      %v2986 = vmul.f32 %v2890, %v2954
      %v2987 = vmul.f32 %v2891, %v2955
      %v2988 = vmul.f32 %v2892, %v2956
      %v2989 = vmul.f32 %v2893, %v2957
      %v2990 = vmul.f32 %v2894, %v2958
      %v2991 = vmul.f32 %v2895, %v2959
      %v2992 = vmul.f32 %v2896, %v2960
      %v2993 = vmul.f32 %v2897, %v2961
      %v2994 = vmul.f32 %v2898, %v2962
      %v2995 = vmul.f32 %v2899, %v2963
      %v2996 = vmul.f32 %v2900, %v2964
      %v2997 = vmul.f32 %v2901, %v2965
      %v2998 = vmul.f32 %v2902, %v2966
      %v2999 = vmul.f32 %v2903, %v2967
      %v3000 = vmul.f32 %v2904, %v2968
      %v3001 = vmul.f32 %v2905, %v2969
      %v3002 = vmul.f32 %v2906, %v2970
      %v3003 = vmul.f32 %v2907, %v2971
      %v3004 = vmul.f32 %v2908, %v2972
      %v3005 = vmul.f32 %v2909, %v2973
      %v3006 = vmul.f32 %v2910, %v2974
      %v3007 = vmul.f32 %v2911, %v2975
      %v3008 = vmul.f32 %v2912, %v2976
      %v3009 = vmul.f32 %v2913, %v2977
      %v3010 = vmul.f32 %v2914, %v2978
      %v3011 = vmul.f32 %v2915, %v2979
      %v3012 = vmul.f32 %v2916, %v2980
      %v3013 = vmul.f32 %v2917, %v2981
      %v3014 = vmul.f32 %v2918, %v2982
      %v3015 = vmul.f32 %v2983, %v803
      %v3016 = vmul.f32 %v2984, %v805
      %v3017 = vmul.f32 %v2985, %v856
      %v3018 = vmul.f32 %v2986, %v858
      %v3019 = vmul.f32 %v2987, %v909
      %v3020 = vmul.f32 %v2988, %v911
      %v3021 = vmul.f32 %v2989, %v962
      %v3022 = vmul.f32 %v2990, %v964
      %v3023 = vmul.f32 %v2991, %v807
      %v3024 = vmul.f32 %v2992, %v809
      %v3025 = vmul.f32 %v2993, %v860
      %v3026 = vmul.f32 %v2994, %v862
      %v3027 = vmul.f32 %v2995, %v913
      %v3028 = vmul.f32 %v2996, %v915
      %v3029 = vmul.f32 %v2997, %v966
      %v3030 = vmul.f32 %v2998, %v968
      %v3031 = vmul.f32 %v2999, %v813
      %v3032 = vmul.f32 %v3000, %v815
      %v3033 = vmul.f32 %v3001, %v866
      %v3034 = vmul.f32 %v3002, %v868
      %v3035 = vmul.f32 %v3003, %v919
      %v3036 = vmul.f32 %v3004, %v921
      %v3037 = vmul.f32 %v3005, %v972
      %v3038 = vmul.f32 %v3006, %v974
      %v3039 = vmul.f32 %v3007, %v817
      %v3040 = vmul.f32 %v3008, %v819
      %v3041 = vmul.f32 %v3009, %v870
      %v3042 = vmul.f32 %v3010, %v872
      %v3043 = vmul.f32 %v3011, %v923
      %v3044 = vmul.f32 %v3012, %v925
      %v3045 = vmul.f32 %v3013, %v976
      %v3046 = vmul.f32 %v3014, %v978
      %v3047 = vmul.f32 %v2983, %v1015
      %v3048 = vmul.f32 %v2984, %v1017
      %v3049 = vmul.f32 %v2985, %v1068
      %v3050 = vmul.f32 %v2986, %v1070
      %v3051 = vmul.f32 %v2987, %v1121
      %v3052 = vmul.f32 %v2988, %v1123
      %v3053 = vmul.f32 %v2989, %v1174
      %v3054 = vmul.f32 %v2990, %v1176
      %v3055 = vmul.f32 %v2991, %v1019
      %v3056 = vmul.f32 %v2992, %v1021
      %v3057 = vmul.f32 %v2993, %v1072
      %v3058 = vmul.f32 %v2994, %v1074
      %v3059 = vmul.f32 %v2995, %v1125
      %v3060 = vmul.f32 %v2996, %v1127
      %v3061 = vmul.f32 %v2997, %v1178
      %v3062 = vmul.f32 %v2998, %v1180
      %v3063 = vmul.f32 %v2999, %v1025
      %v3064 = vmul.f32 %v3000, %v1027
      %v3065 = vmul.f32 %v3001, %v1078
      %v3066 = vmul.f32 %v3002, %v1080
      %v3067 = vmul.f32 %v3003, %v1131
      %v3068 = vmul.f32 %v3004, %v1133
      %v3069 = vmul.f32 %v3005, %v1184
      %v3070 = vmul.f32 %v3006, %v1186
      %v3071 = vmul.f32 %v3007, %v1029
      %v3072 = vmul.f32 %v3008, %v1031
      %v3073 = vmul.f32 %v3009, %v1082
      %v3074 = vmul.f32 %v3010, %v1084
      %v3075 = vmul.f32 %v3011, %v1135
      %v3076 = vmul.f32 %v3012, %v1137
      %v3077 = vmul.f32 %v3013, %v1188
      %v3078 = vmul.f32 %v3014, %v1190
      %v3079 = vpack.c.bf16 %v3023, %v3015
      %v3080 = vpack.c.bf16 %v3024, %v3016
      %v3081 = vpack.c.bf16 %v3025, %v3017
      %v3082 = vpack.c.bf16 %v3026, %v3018
      %v3083 = vpack.c.bf16 %v3027, %v3019
      %v3084 = vpack.c.bf16 %v3028, %v3020
      %v3085 = vpack.c.bf16 %v3029, %v3021
      %v3086 = vpack.c.bf16 %v3030, %v3022
      %v3087 = vpack.c.bf16 %v3055, %v3047
      %v3088 = vpack.c.bf16 %v3056, %v3048
      %v3089 = vpack.c.bf16 %v3057, %v3049
      %v3090 = vpack.c.bf16 %v3058, %v3050
      %v3091 = vpack.c.bf16 %v3059, %v3051
      %v3092 = vpack.c.bf16 %v3060, %v3052
      %v3093 = vpack.c.bf16 %v3061, %v3053
      %v3094 = vpack.c.bf16 %v3062, %v3054
      %v3095 = vpack.c.bf16 %v3039, %v3031
      %v3096 = vpack.c.bf16 %v3040, %v3032
      %v3097 = vpack.c.bf16 %v3041, %v3033
      %v3098 = vpack.c.bf16 %v3042, %v3034
      %v3099 = vpack.c.bf16 %v3043, %v3035
      %v3100 = vpack.c.bf16 %v3044, %v3036
      %v3101 = vpack.c.bf16 %v3045, %v3037
      %v3102 = vpack.c.bf16 %v3046, %v3038
      %v3103 = vpack.c.bf16 %v3071, %v3063
      %v3104 = vpack.c.bf16 %v3072, %v3064
      %v3105 = vpack.c.bf16 %v3073, %v3065
      %v3106 = vpack.c.bf16 %v3074, %v3066
      %v3107 = vpack.c.bf16 %v3075, %v3067
      %v3108 = vpack.c.bf16 %v3076, %v3068
      %v3109 = vpack.c.bf16 %v3077, %v3069
      %v3110 = vpack.c.bf16 %v3078, %v3070
      %v3111 = vld [vmem:[%s364] sm:$0xf]
      %v3112 = vld [vmem:[%s364 + $0x4] sm:$0xf]
      %v3113 = vld [vmem:[%s364 + $0x8] sm:$0xf]
      %v3114 = vld [vmem:[%s364 + $0xc] sm:$0xf]
      %v3115 = vld [vmem:[%s364 + $0x10] sm:$0xf]
      %v3116 = vld [vmem:[%s364 + $0x14] sm:$0xf]
      %v3117 = vld [vmem:[%s364 + $0x18] sm:$0xf]
      %v3118 = vld [vmem:[%s364 + $0x1c] sm:$0xf]
      %v3119 = vld [vmem:[%s364 + $0x20] sm:$0xf]
      %v3120 = vld [vmem:[%s364 + $0x24] sm:$0xf]
      %v3121 = vld [vmem:[%s364 + $0x28] sm:$0xf]
      %v3122 = vld [vmem:[%s364 + $0x2c] sm:$0xf]
      %v3123 = vld [vmem:[%s364 + $0x30] sm:$0xf]
      %v3124 = vld [vmem:[%s364 + $0x34] sm:$0xf]
      %v3125 = vld [vmem:[%s364 + $0x38] sm:$0xf]
      %v3126 = vld [vmem:[%s364 + $0x3c] sm:$0xf]
      %v3127 = vld [vmem:[%s364 + $0x40] sm:$0xf]
      %v3128 = vld [vmem:[%s364 + $0x44] sm:$0xf]
      %v3129 = vld [vmem:[%s364 + $0x48] sm:$0xf]
      %v3130 = vld [vmem:[%s364 + $0x4c] sm:$0xf]
      %v3131 = vld [vmem:[%s364 + $0x50] sm:$0xf]
      %v3132 = vld [vmem:[%s364 + $0x54] sm:$0xf]
      %v3133 = vld [vmem:[%s364 + $0x58] sm:$0xf]
      %v3134 = vld [vmem:[%s364 + $0x5c] sm:$0xf]
      %v3135 = vld [vmem:[%s364 + $0x60] sm:$0xf]
      %v3136 = vld [vmem:[%s364 + $0x64] sm:$0xf]
      %v3137 = vld [vmem:[%s364 + $0x68] sm:$0xf]
      %v3138 = vld [vmem:[%s364 + $0x6c] sm:$0xf]
      %v3139 = vld [vmem:[%s364 + $0x70] sm:$0xf]
      %v3140 = vld [vmem:[%s364 + $0x74] sm:$0xf]
      %v3141 = vld [vmem:[%s364 + $0x78] sm:$0xf]
      %v3142 = vld [vmem:[%s364 + $0x7c] sm:$0xf]
      %v3143 = vld [vmem:[%s364 + $0x80] sm:$0xf]
      %v3144 = vld [vmem:[%s364 + $0x84] sm:$0xf]
      %v3145 = vld [vmem:[%s364 + $0x88] sm:$0xf]
      %v3146 = vld [vmem:[%s364 + $0x8c] sm:$0xf]
      %v3147 = vld [vmem:[%s364 + $0x90] sm:$0xf]
      %v3148 = vld [vmem:[%s364 + $0x94] sm:$0xf]
      %v3149 = vld [vmem:[%s364 + $0x98] sm:$0xf]
      %v3150 = vld [vmem:[%s364 + $0x9c] sm:$0xf]
      %v3151 = vld [vmem:[%s364 + $0xa0] sm:$0xf]
      %v3152 = vld [vmem:[%s364 + $0xa4] sm:$0xf]
      %v3153 = vld [vmem:[%s364 + $0xa8] sm:$0xf]
      %v3154 = vld [vmem:[%s364 + $0xac] sm:$0xf]
      %v3155 = vld [vmem:[%s364 + $0xb0] sm:$0xf]
      %v3156 = vld [vmem:[%s364 + $0xb4] sm:$0xf]
      %v3157 = vld [vmem:[%s364 + $0xb8] sm:$0xf]
      %v3158 = vld [vmem:[%s364 + $0xbc] sm:$0xf]
      %v3159 = vld [vmem:[%s364 + $0xc0] sm:$0xf]
      %v3160 = vld [vmem:[%s364 + $0xc4] sm:$0xf]
      %v3161 = vld [vmem:[%s364 + $0xc8] sm:$0xf]
      %v3162 = vld [vmem:[%s364 + $0xcc] sm:$0xf]
      %v3163 = vld [vmem:[%s364 + $0xd0] sm:$0xf]
      %v3164 = vld [vmem:[%s364 + $0xd4] sm:$0xf]
      %v3165 = vld [vmem:[%s364 + $0xd8] sm:$0xf]
      %v3166 = vld [vmem:[%s364 + $0xdc] sm:$0xf]
      %v3167 = vld [vmem:[%s364 + $0xe0] sm:$0xf]
      %v3168 = vld [vmem:[%s364 + $0xe4] sm:$0xf]
      %v3169 = vld [vmem:[%s364 + $0xe8] sm:$0xf]
      %v3170 = vld [vmem:[%s364 + $0xec] sm:$0xf]
      %v3171 = vld [vmem:[%s364 + $0xf0] sm:$0xf]
      %v3172 = vld [vmem:[%s364 + $0xf4] sm:$0xf]
      %v3173 = vld [vmem:[%s364 + $0xf8] sm:$0xf]
      %v3174 = vld [vmem:[%s364 + $0xfc] sm:$0xf]
      %v3175 = vld [vmem:[%s364 + $0x100] sm:$0xf]
      %v3176 = vld [vmem:[%s364 + $0x104] sm:$0xf]
      %v3177 = vld [vmem:[%s364 + $0x108] sm:$0xf]
      %v3178 = vld [vmem:[%s364 + $0x10c] sm:$0xf]
      %v3179 = vld [vmem:[%s364 + $0x110] sm:$0xf]
      %v3180 = vld [vmem:[%s364 + $0x114] sm:$0xf]
      %v3181 = vld [vmem:[%s364 + $0x118] sm:$0xf]
      %v3182 = vld [vmem:[%s364 + $0x11c] sm:$0xf]
      %v3183 = vld [vmem:[%s364 + $0x120] sm:$0xf]
      %v3184 = vld [vmem:[%s364 + $0x124] sm:$0xf]
      %v3185 = vld [vmem:[%s364 + $0x128] sm:$0xf]
      %v3186 = vld [vmem:[%s364 + $0x12c] sm:$0xf]
      %v3187 = vld [vmem:[%s364 + $0x130] sm:$0xf]
      %v3188 = vld [vmem:[%s364 + $0x134] sm:$0xf]
      %v3189 = vld [vmem:[%s364 + $0x138] sm:$0xf]
      %v3190 = vld [vmem:[%s364 + $0x13c] sm:$0xf]
      %v3191 = vld [vmem:[%s364 + $0x140] sm:$0xf]
      %v3192 = vld [vmem:[%s364 + $0x144] sm:$0xf]
      %v3193 = vld [vmem:[%s364 + $0x148] sm:$0xf]
      %v3194 = vld [vmem:[%s364 + $0x14c] sm:$0xf]
      %v3195 = vld [vmem:[%s364 + $0x150] sm:$0xf]
      %v3196 = vld [vmem:[%s364 + $0x154] sm:$0xf]
      %v3197 = vld [vmem:[%s364 + $0x158] sm:$0xf]
      %v3198 = vld [vmem:[%s364 + $0x15c] sm:$0xf]
      %v3199 = vld [vmem:[%s364 + $0x160] sm:$0xf]
      %v3200 = vld [vmem:[%s364 + $0x164] sm:$0xf]
      %v3201 = vld [vmem:[%s364 + $0x168] sm:$0xf]
      %v3202 = vld [vmem:[%s364 + $0x16c] sm:$0xf]
      %v3203 = vld [vmem:[%s364 + $0x170] sm:$0xf]
      %v3204 = vld [vmem:[%s364 + $0x174] sm:$0xf]
      %v3205 = vld [vmem:[%s364 + $0x178] sm:$0xf]
      %v3206 = vld [vmem:[%s364 + $0x17c] sm:$0xf]
      %v3207 = vld [vmem:[%s364 + $0x180] sm:$0xf]
      %v3208 = vld [vmem:[%s364 + $0x184] sm:$0xf]
      %v3209 = vld [vmem:[%s364 + $0x188] sm:$0xf]
      %v3210 = vld [vmem:[%s364 + $0x18c] sm:$0xf]
      %v3211 = vld [vmem:[%s364 + $0x190] sm:$0xf]
      %v3212 = vld [vmem:[%s364 + $0x194] sm:$0xf]
      %v3213 = vld [vmem:[%s364 + $0x198] sm:$0xf]
      %v3214 = vld [vmem:[%s364 + $0x19c] sm:$0xf]
      %v3215 = vld [vmem:[%s364 + $0x1a0] sm:$0xf]
      %v3216 = vld [vmem:[%s364 + $0x1a4] sm:$0xf]
      %v3217 = vld [vmem:[%s364 + $0x1a8] sm:$0xf]
      %v3218 = vld [vmem:[%s364 + $0x1ac] sm:$0xf]
      %v3219 = vld [vmem:[%s364 + $0x1b0] sm:$0xf]
      %v3220 = vld [vmem:[%s364 + $0x1b4] sm:$0xf]
      %v3221 = vld [vmem:[%s364 + $0x1b8] sm:$0xf]
      %v3222 = vld [vmem:[%s364 + $0x1bc] sm:$0xf]
      %v3223 = vld [vmem:[%s364 + $0x1c0] sm:$0xf]
      %v3224 = vld [vmem:[%s364 + $0x1c4] sm:$0xf]
      %v3225 = vld [vmem:[%s364 + $0x1c8] sm:$0xf]
      %v3226 = vld [vmem:[%s364 + $0x1cc] sm:$0xf]
      %v3227 = vld [vmem:[%s364 + $0x1d0] sm:$0xf]
      %v3228 = vld [vmem:[%s364 + $0x1d4] sm:$0xf]
      %v3229 = vld [vmem:[%s364 + $0x1d8] sm:$0xf]
      %v3230 = vld [vmem:[%s364 + $0x1dc] sm:$0xf]
      %v3231 = vld [vmem:[%s364 + $0x1e0] sm:$0xf]
      %v3232 = vld [vmem:[%s364 + $0x1e4] sm:$0xf]
      %v3233 = vld [vmem:[%s364 + $0x1e8] sm:$0xf]
      %v3234 = vld [vmem:[%s364 + $0x1ec] sm:$0xf]
      %v3235 = vld [vmem:[%s364 + $0x1f0] sm:$0xf]
      %v3236 = vld [vmem:[%s364 + $0x1f4] sm:$0xf]
      %v3237 = vld [vmem:[%s364 + $0x1f8] sm:$0xf]
      %v3238 = vld [vmem:[%s364 + $0x1fc] sm:$0xf]
      %v3239 = vld [vmem:[%s364 + $0x200] sm:$0xf]
      %v3240 = vld [vmem:[%s364 + $0x204] sm:$0xf]
      %v3241 = vld [vmem:[%s364 + $0x208] sm:$0xf]
      %v3242 = vld [vmem:[%s364 + $0x20c] sm:$0xf]
      %v3243 = vld [vmem:[%s364 + $0x210] sm:$0xf]
      %v3244 = vld [vmem:[%s364 + $0x214] sm:$0xf]
      %v3245 = vld [vmem:[%s364 + $0x218] sm:$0xf]
      %v3246 = vld [vmem:[%s364 + $0x21c] sm:$0xf]
      %v3247 = vld [vmem:[%s364 + $0x220] sm:$0xf]
      %v3248 = vld [vmem:[%s364 + $0x224] sm:$0xf]
      %v3249 = vld [vmem:[%s364 + $0x228] sm:$0xf]
      %v3250 = vld [vmem:[%s364 + $0x22c] sm:$0xf]
      %v3251 = vld [vmem:[%s364 + $0x230] sm:$0xf]
      %v3252 = vld [vmem:[%s364 + $0x234] sm:$0xf]
      %v3253 = vld [vmem:[%s364 + $0x238] sm:$0xf]
      %v3254 = vld [vmem:[%s364 + $0x23c] sm:$0xf]
      %v3255 = vld [vmem:[%s364 + $0x240] sm:$0xf]
      %v3256 = vld [vmem:[%s364 + $0x244] sm:$0xf]
      %v3257 = vld [vmem:[%s364 + $0x248] sm:$0xf]
      %v3258 = vld [vmem:[%s364 + $0x24c] sm:$0xf]
      %v3259 = vld [vmem:[%s364 + $0x250] sm:$0xf]
      %v3260 = vld [vmem:[%s364 + $0x254] sm:$0xf]
      %v3261 = vld [vmem:[%s364 + $0x258] sm:$0xf]
      %v3262 = vld [vmem:[%s364 + $0x25c] sm:$0xf]
      %v3263 = vld [vmem:[%s364 + $0x260] sm:$0xf]
      %v3264 = vld [vmem:[%s364 + $0x264] sm:$0xf]
      %v3265 = vld [vmem:[%s364 + $0x268] sm:$0xf]
      %v3266 = vld [vmem:[%s364 + $0x26c] sm:$0xf]
      %v3267 = vld [vmem:[%s364 + $0x270] sm:$0xf]
      %v3268 = vld [vmem:[%s364 + $0x274] sm:$0xf]
      %v3269 = vld [vmem:[%s364 + $0x278] sm:$0xf]
      %v3270 = vld [vmem:[%s364 + $0x27c] sm:$0xf]
      %v3271 = vld [vmem:[%s364 + $0x280] sm:$0xf]
      %v3272 = vld [vmem:[%s364 + $0x284] sm:$0xf]
      %v3273 = vld [vmem:[%s364 + $0x288] sm:$0xf]
      %v3274 = vld [vmem:[%s364 + $0x28c] sm:$0xf]
      %v3275 = vld [vmem:[%s364 + $0x290] sm:$0xf]
      %v3276 = vld [vmem:[%s364 + $0x294] sm:$0xf]
      %v3277 = vld [vmem:[%s364 + $0x298] sm:$0xf]
      %v3278 = vld [vmem:[%s364 + $0x29c] sm:$0xf]
      %v3279 = vld [vmem:[%s364 + $0x2a0] sm:$0xf]
      %v3280 = vld [vmem:[%s364 + $0x2a4] sm:$0xf]
      %v3281 = vld [vmem:[%s364 + $0x2a8] sm:$0xf]
      %v3282 = vld [vmem:[%s364 + $0x2ac] sm:$0xf]
      %v3283 = vld [vmem:[%s364 + $0x2b0] sm:$0xf]
      %v3284 = vld [vmem:[%s364 + $0x2b4] sm:$0xf]
      %v3285 = vld [vmem:[%s364 + $0x2b8] sm:$0xf]
      %v3286 = vld [vmem:[%s364 + $0x2bc] sm:$0xf]
      %v3287 = vld [vmem:[%s364 + $0x2c0] sm:$0xf]
      %v3288 = vld [vmem:[%s364 + $0x2c4] sm:$0xf]
      %v3289 = vld [vmem:[%s364 + $0x2c8] sm:$0xf]
      %v3290 = vld [vmem:[%s364 + $0x2cc] sm:$0xf]
      %v3291 = vld [vmem:[%s364 + $0x2d0] sm:$0xf]
      %v3292 = vld [vmem:[%s364 + $0x2d4] sm:$0xf]
      %v3293 = vld [vmem:[%s364 + $0x2d8] sm:$0xf]
      %v3294 = vld [vmem:[%s364 + $0x2dc] sm:$0xf]
      %v3295 = vld [vmem:[%s364 + $0x2e0] sm:$0xf]
      %v3296 = vld [vmem:[%s364 + $0x2e4] sm:$0xf]
      %v3297 = vld [vmem:[%s364 + $0x2e8] sm:$0xf]
      %v3298 = vld [vmem:[%s364 + $0x2ec] sm:$0xf]
      %v3299 = vld [vmem:[%s364 + $0x2f0] sm:$0xf]
      %v3300 = vld [vmem:[%s364 + $0x2f4] sm:$0xf]
      %v3301 = vld [vmem:[%s364 + $0x2f8] sm:$0xf]
      %v3302 = vld [vmem:[%s364 + $0x2fc] sm:$0xf]
      %v3303 = vld [vmem:[%s364 + $0x300] sm:$0xf]
      %v3304 = vld [vmem:[%s364 + $0x304] sm:$0xf]
      %v3305 = vld [vmem:[%s364 + $0x308] sm:$0xf]
      %v3306 = vld [vmem:[%s364 + $0x30c] sm:$0xf]
      %v3307 = vld [vmem:[%s364 + $0x310] sm:$0xf]
      %v3308 = vld [vmem:[%s364 + $0x314] sm:$0xf]
      %v3309 = vld [vmem:[%s364 + $0x318] sm:$0xf]
      %v3310 = vld [vmem:[%s364 + $0x31c] sm:$0xf]
      %v3311 = vld [vmem:[%s364 + $0x320] sm:$0xf]
      %v3312 = vld [vmem:[%s364 + $0x324] sm:$0xf]
      %v3313 = vld [vmem:[%s364 + $0x328] sm:$0xf]
      %v3314 = vld [vmem:[%s364 + $0x32c] sm:$0xf]
      %v3315 = vld [vmem:[%s364 + $0x330] sm:$0xf]
      %v3316 = vld [vmem:[%s364 + $0x334] sm:$0xf]
      %v3317 = vld [vmem:[%s364 + $0x338] sm:$0xf]
      %v3318 = vld [vmem:[%s364 + $0x33c] sm:$0xf]
      %v3319 = vld [vmem:[%s364 + $0x340] sm:$0xf]
      %v3320 = vld [vmem:[%s364 + $0x344] sm:$0xf]
      %v3321 = vld [vmem:[%s364 + $0x348] sm:$0xf]
      %v3322 = vld [vmem:[%s364 + $0x34c] sm:$0xf]
      %v3323 = vld [vmem:[%s364 + $0x350] sm:$0xf]
      %v3324 = vld [vmem:[%s364 + $0x354] sm:$0xf]
      %v3325 = vld [vmem:[%s364 + $0x358] sm:$0xf]
      %v3326 = vld [vmem:[%s364 + $0x35c] sm:$0xf]
      %v3327 = vld [vmem:[%s364 + $0x360] sm:$0xf]
      %v3328 = vld [vmem:[%s364 + $0x364] sm:$0xf]
      %v3329 = vld [vmem:[%s364 + $0x368] sm:$0xf]
      %v3330 = vld [vmem:[%s364 + $0x36c] sm:$0xf]
      %v3331 = vld [vmem:[%s364 + $0x370] sm:$0xf]
      %v3332 = vld [vmem:[%s364 + $0x374] sm:$0xf]
      %v3333 = vld [vmem:[%s364 + $0x378] sm:$0xf]
      %v3334 = vld [vmem:[%s364 + $0x37c] sm:$0xf]
      %v3335 = vld [vmem:[%s364 + $0x380] sm:$0xf]
      %v3336 = vld [vmem:[%s364 + $0x384] sm:$0xf]
      %v3337 = vld [vmem:[%s364 + $0x388] sm:$0xf]
      %v3338 = vld [vmem:[%s364 + $0x38c] sm:$0xf]
      %v3339 = vld [vmem:[%s364 + $0x390] sm:$0xf]
      %v3340 = vld [vmem:[%s364 + $0x394] sm:$0xf]
      %v3341 = vld [vmem:[%s364 + $0x398] sm:$0xf]
      %v3342 = vld [vmem:[%s364 + $0x39c] sm:$0xf]
      %v3343 = vld [vmem:[%s364 + $0x3a0] sm:$0xf]
      %v3344 = vld [vmem:[%s364 + $0x3a4] sm:$0xf]
      %v3345 = vld [vmem:[%s364 + $0x3a8] sm:$0xf]
      %v3346 = vld [vmem:[%s364 + $0x3ac] sm:$0xf]
      %v3347 = vld [vmem:[%s364 + $0x3b0] sm:$0xf]
      %v3348 = vld [vmem:[%s364 + $0x3b4] sm:$0xf]
      %v3349 = vld [vmem:[%s364 + $0x3b8] sm:$0xf]
      %v3350 = vld [vmem:[%s364 + $0x3bc] sm:$0xf]
      %v3351 = vld [vmem:[%s364 + $0x3c0] sm:$0xf]
      %v3352 = vld [vmem:[%s364 + $0x3c4] sm:$0xf]
      %v3353 = vld [vmem:[%s364 + $0x3c8] sm:$0xf]
      %v3354 = vld [vmem:[%s364 + $0x3cc] sm:$0xf]
      %v3355 = vld [vmem:[%s364 + $0x3d0] sm:$0xf]
      %v3356 = vld [vmem:[%s364 + $0x3d4] sm:$0xf]
      %v3357 = vld [vmem:[%s364 + $0x3d8] sm:$0xf]
      %v3358 = vld [vmem:[%s364 + $0x3dc] sm:$0xf]
      %v3359 = vld [vmem:[%s364 + $0x3e0] sm:$0xf]
      %v3360 = vld [vmem:[%s364 + $0x3e4] sm:$0xf]
      %v3361 = vld [vmem:[%s364 + $0x3e8] sm:$0xf]
      %v3362 = vld [vmem:[%s364 + $0x3ec] sm:$0xf]
      %v3363 = vld [vmem:[%s364 + $0x3f0] sm:$0xf]
      %v3364 = vld [vmem:[%s364 + $0x3f4] sm:$0xf]
      %v3365 = vld [vmem:[%s364 + $0x3f8] sm:$0xf]
      %v3366 = vld [vmem:[%s364 + $0x3fc] sm:$0xf]
      %v3623 = vunpack.c.l.b16 %v3111
      %v3624 = vunpack.c.l.b16 %v3112
      %v3625 = vunpack.c.l.b16 %v3113
      %v3626 = vunpack.c.l.b16 %v3114
      %v3627 = vunpack.c.l.b16 %v3115
      %v3628 = vunpack.c.l.b16 %v3116
      %v3629 = vunpack.c.l.b16 %v3117
      %v3630 = vunpack.c.l.b16 %v3118
      %v3631 = vunpack.c.l.b16 %v3119
      %v3632 = vunpack.c.l.b16 %v3120
      %v3633 = vunpack.c.l.b16 %v3121
      %v3634 = vunpack.c.l.b16 %v3122
      %v3635 = vunpack.c.l.b16 %v3123
      %v3636 = vunpack.c.l.b16 %v3124
      %v3637 = vunpack.c.l.b16 %v3125
      %v3638 = vunpack.c.l.b16 %v3126
      %v3639 = vunpack.c.l.b16 %v3127
      %v3640 = vunpack.c.l.b16 %v3128
      %v3641 = vunpack.c.l.b16 %v3129
      %v3642 = vunpack.c.l.b16 %v3130
      %v3643 = vunpack.c.l.b16 %v3131
      %v3644 = vunpack.c.l.b16 %v3132
      %v3645 = vunpack.c.l.b16 %v3133
      %v3646 = vunpack.c.l.b16 %v3134
      %v3647 = vunpack.c.l.b16 %v3135
      %v3648 = vunpack.c.l.b16 %v3136
      %v3649 = vunpack.c.l.b16 %v3137
      %v3650 = vunpack.c.l.b16 %v3138
      %v3651 = vunpack.c.l.b16 %v3139
      %v3652 = vunpack.c.l.b16 %v3140
      %v3653 = vunpack.c.l.b16 %v3141
      %v3654 = vunpack.c.l.b16 %v3142
      %v3655 = vunpack.c.l.b16 %v3143
      %v3656 = vunpack.c.l.b16 %v3144
      %v3657 = vunpack.c.l.b16 %v3145
      %v3658 = vunpack.c.l.b16 %v3146
      %v3659 = vunpack.c.l.b16 %v3147
      %v3660 = vunpack.c.l.b16 %v3148
      %v3661 = vunpack.c.l.b16 %v3149
      %v3662 = vunpack.c.l.b16 %v3150
      %v3663 = vunpack.c.l.b16 %v3151
      %v3664 = vunpack.c.l.b16 %v3152
      %v3665 = vunpack.c.l.b16 %v3153
      %v3666 = vunpack.c.l.b16 %v3154
      %v3667 = vunpack.c.l.b16 %v3155
      %v3668 = vunpack.c.l.b16 %v3156
      %v3669 = vunpack.c.l.b16 %v3157
      %v3670 = vunpack.c.l.b16 %v3158
      %v3671 = vunpack.c.l.b16 %v3159
      %v3672 = vunpack.c.l.b16 %v3160
      %v3673 = vunpack.c.l.b16 %v3161
      %v3674 = vunpack.c.l.b16 %v3162
      %v3675 = vunpack.c.l.b16 %v3163
      %v3676 = vunpack.c.l.b16 %v3164
      %v3677 = vunpack.c.l.b16 %v3165
      %v3678 = vunpack.c.l.b16 %v3166
      %v3679 = vunpack.c.l.b16 %v3167
      %v3680 = vunpack.c.l.b16 %v3168
      %v3681 = vunpack.c.l.b16 %v3169
      %v3682 = vunpack.c.l.b16 %v3170
      %v3683 = vunpack.c.l.b16 %v3171
      %v3684 = vunpack.c.l.b16 %v3172
      %v3685 = vunpack.c.l.b16 %v3173
      %v3686 = vunpack.c.l.b16 %v3174
      %v3687 = vunpack.c.l.b16 %v3175
      %v3688 = vunpack.c.l.b16 %v3176
      %v3689 = vunpack.c.l.b16 %v3177
      %v3690 = vunpack.c.l.b16 %v3178
      %v3691 = vunpack.c.l.b16 %v3179
      %v3692 = vunpack.c.l.b16 %v3180
      %v3693 = vunpack.c.l.b16 %v3181
      %v3694 = vunpack.c.l.b16 %v3182
      %v3695 = vunpack.c.l.b16 %v3183
      %v3696 = vunpack.c.l.b16 %v3184
      %v3697 = vunpack.c.l.b16 %v3185
      %v3698 = vunpack.c.l.b16 %v3186
      %v3699 = vunpack.c.l.b16 %v3187
      %v3700 = vunpack.c.l.b16 %v3188
      %v3701 = vunpack.c.l.b16 %v3189
      %v3702 = vunpack.c.l.b16 %v3190
      %v3703 = vunpack.c.l.b16 %v3191
      %v3704 = vunpack.c.l.b16 %v3192
      %v3705 = vunpack.c.l.b16 %v3193
      %v3706 = vunpack.c.l.b16 %v3194
      %v3707 = vunpack.c.l.b16 %v3195
      %v3708 = vunpack.c.l.b16 %v3196
      %v3709 = vunpack.c.l.b16 %v3197
      %v3710 = vunpack.c.l.b16 %v3198
      %v3711 = vunpack.c.l.b16 %v3199
      %v3712 = vunpack.c.l.b16 %v3200
      %v3713 = vunpack.c.l.b16 %v3201
      %v3714 = vunpack.c.l.b16 %v3202
      %v3715 = vunpack.c.l.b16 %v3203
      %v3716 = vunpack.c.l.b16 %v3204
      %v3717 = vunpack.c.l.b16 %v3205
      %v3718 = vunpack.c.l.b16 %v3206
      %v3719 = vunpack.c.l.b16 %v3207
      %v3720 = vunpack.c.l.b16 %v3208
      %v3721 = vunpack.c.l.b16 %v3209
      %v3722 = vunpack.c.l.b16 %v3210
      %v3723 = vunpack.c.l.b16 %v3211
      %v3724 = vunpack.c.l.b16 %v3212
      %v3725 = vunpack.c.l.b16 %v3213
      %v3726 = vunpack.c.l.b16 %v3214
      %v3727 = vunpack.c.l.b16 %v3215
      %v3728 = vunpack.c.l.b16 %v3216
      %v3729 = vunpack.c.l.b16 %v3217
      %v3730 = vunpack.c.l.b16 %v3218
      %v3731 = vunpack.c.l.b16 %v3219
      %v3732 = vunpack.c.l.b16 %v3220
      %v3733 = vunpack.c.l.b16 %v3221
      %v3734 = vunpack.c.l.b16 %v3222
      %v3735 = vunpack.c.l.b16 %v3223
      %v3736 = vunpack.c.l.b16 %v3224
      %v3737 = vunpack.c.l.b16 %v3225
      %v3738 = vunpack.c.l.b16 %v3226
      %v3739 = vunpack.c.l.b16 %v3227
      %v3740 = vunpack.c.l.b16 %v3228
      %v3741 = vunpack.c.l.b16 %v3229
      %v3742 = vunpack.c.l.b16 %v3230
      %v3743 = vunpack.c.l.b16 %v3231
      %v3744 = vunpack.c.l.b16 %v3232
      %v3745 = vunpack.c.l.b16 %v3233
      %v3746 = vunpack.c.l.b16 %v3234
      %v3747 = vunpack.c.l.b16 %v3235
      %v3748 = vunpack.c.l.b16 %v3236
      %v3749 = vunpack.c.l.b16 %v3237
      %v3750 = vunpack.c.l.b16 %v3238
      %v3751 = vunpack.c.l.b16 %v3239
      %v3752 = vunpack.c.l.b16 %v3240
      %v3753 = vunpack.c.l.b16 %v3241
      %v3754 = vunpack.c.l.b16 %v3242
      %v3755 = vunpack.c.l.b16 %v3243
      %v3756 = vunpack.c.l.b16 %v3244
      %v3757 = vunpack.c.l.b16 %v3245
      %v3758 = vunpack.c.l.b16 %v3246
      %v3759 = vunpack.c.l.b16 %v3247
      %v3760 = vunpack.c.l.b16 %v3248
      %v3761 = vunpack.c.l.b16 %v3249
      %v3762 = vunpack.c.l.b16 %v3250
      %v3763 = vunpack.c.l.b16 %v3251
      %v3764 = vunpack.c.l.b16 %v3252
      %v3765 = vunpack.c.l.b16 %v3253
      %v3766 = vunpack.c.l.b16 %v3254
      %v3767 = vunpack.c.l.b16 %v3255
      %v3768 = vunpack.c.l.b16 %v3256
      %v3769 = vunpack.c.l.b16 %v3257
      %v3770 = vunpack.c.l.b16 %v3258
      %v3771 = vunpack.c.l.b16 %v3259
      %v3772 = vunpack.c.l.b16 %v3260
      %v3773 = vunpack.c.l.b16 %v3261
      %v3774 = vunpack.c.l.b16 %v3262
      %v3775 = vunpack.c.l.b16 %v3263
      %v3776 = vunpack.c.l.b16 %v3264
      %v3777 = vunpack.c.l.b16 %v3265
      %v3778 = vunpack.c.l.b16 %v3266
      %v3779 = vunpack.c.l.b16 %v3267
      %v3780 = vunpack.c.l.b16 %v3268
      %v3781 = vunpack.c.l.b16 %v3269
      %v3782 = vunpack.c.l.b16 %v3270
      %v3783 = vunpack.c.l.b16 %v3271
      %v3784 = vunpack.c.l.b16 %v3272
      %v3785 = vunpack.c.l.b16 %v3273
      %v3786 = vunpack.c.l.b16 %v3274
      %v3787 = vunpack.c.l.b16 %v3275
      %v3788 = vunpack.c.l.b16 %v3276
      %v3789 = vunpack.c.l.b16 %v3277
      %v3790 = vunpack.c.l.b16 %v3278
      %v3791 = vunpack.c.l.b16 %v3279
      %v3792 = vunpack.c.l.b16 %v3280
      %v3793 = vunpack.c.l.b16 %v3281
      %v3794 = vunpack.c.l.b16 %v3282
      %v3795 = vunpack.c.l.b16 %v3283
      %v3796 = vunpack.c.l.b16 %v3284
      %v3797 = vunpack.c.l.b16 %v3285
      %v3798 = vunpack.c.l.b16 %v3286
      %v3799 = vunpack.c.l.b16 %v3287
      %v3800 = vunpack.c.l.b16 %v3288
      %v3801 = vunpack.c.l.b16 %v3289
      %v3802 = vunpack.c.l.b16 %v3290
      %v3803 = vunpack.c.l.b16 %v3291
      %v3804 = vunpack.c.l.b16 %v3292
      %v3805 = vunpack.c.l.b16 %v3293
      %v3806 = vunpack.c.l.b16 %v3294
      %v3807 = vunpack.c.l.b16 %v3295
      %v3808 = vunpack.c.l.b16 %v3296
      %v3809 = vunpack.c.l.b16 %v3297
      %v3810 = vunpack.c.l.b16 %v3298
      %v3811 = vunpack.c.l.b16 %v3299
      %v3812 = vunpack.c.l.b16 %v3300
      %v3813 = vunpack.c.l.b16 %v3301
      %v3814 = vunpack.c.l.b16 %v3302
      %v3815 = vunpack.c.l.b16 %v3303
      %v3816 = vunpack.c.l.b16 %v3304
      %v3817 = vunpack.c.l.b16 %v3305
      %v3818 = vunpack.c.l.b16 %v3306
      %v3819 = vunpack.c.l.b16 %v3307
      %v3820 = vunpack.c.l.b16 %v3308
      %v3821 = vunpack.c.l.b16 %v3309
      %v3822 = vunpack.c.l.b16 %v3310
      %v3823 = vunpack.c.l.b16 %v3311
      %v3824 = vunpack.c.l.b16 %v3312
      %v3825 = vunpack.c.l.b16 %v3313
      %v3826 = vunpack.c.l.b16 %v3314
      %v3827 = vunpack.c.l.b16 %v3315
      %v3828 = vunpack.c.l.b16 %v3316
      %v3829 = vunpack.c.l.b16 %v3317
      %v3830 = vunpack.c.l.b16 %v3318
      %v3831 = vunpack.c.l.b16 %v3319
      %v3832 = vunpack.c.l.b16 %v3320
      %v3833 = vunpack.c.l.b16 %v3321
      %v3834 = vunpack.c.l.b16 %v3322
      %v3835 = vunpack.c.l.b16 %v3323
      %v3836 = vunpack.c.l.b16 %v3324
      %v3837 = vunpack.c.l.b16 %v3325
      %v3838 = vunpack.c.l.b16 %v3326
      %v3839 = vunpack.c.l.b16 %v3327
      %v3840 = vunpack.c.l.b16 %v3328
      %v3841 = vunpack.c.l.b16 %v3329
      %v3842 = vunpack.c.l.b16 %v3330
      %v3843 = vunpack.c.l.b16 %v3331
      %v3844 = vunpack.c.l.b16 %v3332
      %v3845 = vunpack.c.l.b16 %v3333
      %v3846 = vunpack.c.l.b16 %v3334
      %v3847 = vunpack.c.l.b16 %v3335
      %v3848 = vunpack.c.l.b16 %v3336
      %v3849 = vunpack.c.l.b16 %v3337
      %v3850 = vunpack.c.l.b16 %v3338
      %v3851 = vunpack.c.l.b16 %v3339
      %v3852 = vunpack.c.l.b16 %v3340
      %v3853 = vunpack.c.l.b16 %v3341
      %v3854 = vunpack.c.l.b16 %v3342
      %v3855 = vunpack.c.l.b16 %v3343
      %v3856 = vunpack.c.l.b16 %v3344
      %v3857 = vunpack.c.l.b16 %v3345
      %v3858 = vunpack.c.l.b16 %v3346
      %v3859 = vunpack.c.l.b16 %v3347
      %v3860 = vunpack.c.l.b16 %v3348
      %v3861 = vunpack.c.l.b16 %v3349
      %v3862 = vunpack.c.l.b16 %v3350
      %v3863 = vunpack.c.l.b16 %v3351
      %v3864 = vunpack.c.l.b16 %v3352
      %v3865 = vunpack.c.l.b16 %v3353
      %v3866 = vunpack.c.l.b16 %v3354
      %v3867 = vunpack.c.l.b16 %v3355
      %v3868 = vunpack.c.l.b16 %v3356
      %v3869 = vunpack.c.l.b16 %v3357
      %v3870 = vunpack.c.l.b16 %v3358
      %v3871 = vunpack.c.l.b16 %v3359
      %v3872 = vunpack.c.l.b16 %v3360
      %v3873 = vunpack.c.l.b16 %v3361
      %v3874 = vunpack.c.l.b16 %v3362
      %v3875 = vunpack.c.l.b16 %v3363
      %v3876 = vunpack.c.l.b16 %v3364
      %v3877 = vunpack.c.l.b16 %v3365
      %v3878 = vunpack.c.l.b16 %v3366
      %v3879 = vpack.c.b16 %v3624, %v3623
      %v3880 = vpack.c.b16 %v3626, %v3625
      %v3881 = vpack.c.b16 %v3628, %v3627
      %v3882 = vpack.c.b16 %v3630, %v3629
      %v3883 = vpack.c.b16 %v3632, %v3631
      %v3884 = vpack.c.b16 %v3634, %v3633
      %v3885 = vpack.c.b16 %v3636, %v3635
      %v3886 = vpack.c.b16 %v3638, %v3637
      %v3887 = vpack.c.b16 %v3640, %v3639
      %v3888 = vpack.c.b16 %v3642, %v3641
      %v3889 = vpack.c.b16 %v3644, %v3643
      %v3890 = vpack.c.b16 %v3646, %v3645
      %v3891 = vpack.c.b16 %v3648, %v3647
      %v3892 = vpack.c.b16 %v3650, %v3649
      %v3893 = vpack.c.b16 %v3652, %v3651
      %v3894 = vpack.c.b16 %v3654, %v3653
      %v3895 = vpack.c.b16 %v3656, %v3655
      %v3896 = vpack.c.b16 %v3658, %v3657
      %v3897 = vpack.c.b16 %v3660, %v3659
      %v3898 = vpack.c.b16 %v3662, %v3661
      %v3899 = vpack.c.b16 %v3664, %v3663
      %v3900 = vpack.c.b16 %v3666, %v3665
      %v3901 = vpack.c.b16 %v3668, %v3667
      %v3902 = vpack.c.b16 %v3670, %v3669
      %v3903 = vpack.c.b16 %v3672, %v3671
      %v3904 = vpack.c.b16 %v3674, %v3673
      %v3905 = vpack.c.b16 %v3676, %v3675
      %v3906 = vpack.c.b16 %v3678, %v3677
      %v3907 = vpack.c.b16 %v3680, %v3679
      %v3908 = vpack.c.b16 %v3682, %v3681
      %v3909 = vpack.c.b16 %v3684, %v3683
      %v3910 = vpack.c.b16 %v3686, %v3685
      %v3911 = vpack.c.b16 %v3688, %v3687
      %v3912 = vpack.c.b16 %v3690, %v3689
      %v3913 = vpack.c.b16 %v3692, %v3691
      %v3914 = vpack.c.b16 %v3694, %v3693
      %v3915 = vpack.c.b16 %v3696, %v3695
      %v3916 = vpack.c.b16 %v3698, %v3697
      %v3917 = vpack.c.b16 %v3700, %v3699
      %v3918 = vpack.c.b16 %v3702, %v3701
      %v3919 = vpack.c.b16 %v3704, %v3703
      %v3920 = vpack.c.b16 %v3706, %v3705
      %v3921 = vpack.c.b16 %v3708, %v3707
      %v3922 = vpack.c.b16 %v3710, %v3709
      %v3923 = vpack.c.b16 %v3712, %v3711
      %v3924 = vpack.c.b16 %v3714, %v3713
      %v3925 = vpack.c.b16 %v3716, %v3715
      %v3926 = vpack.c.b16 %v3718, %v3717
      %v3927 = vpack.c.b16 %v3720, %v3719
      %v3928 = vpack.c.b16 %v3722, %v3721
      %v3929 = vpack.c.b16 %v3724, %v3723
      %v3930 = vpack.c.b16 %v3726, %v3725
      %v3931 = vpack.c.b16 %v3728, %v3727
      %v3932 = vpack.c.b16 %v3730, %v3729
      %v3933 = vpack.c.b16 %v3732, %v3731
      %v3934 = vpack.c.b16 %v3734, %v3733
      %v3935 = vpack.c.b16 %v3736, %v3735
      %v3936 = vpack.c.b16 %v3738, %v3737
      %v3937 = vpack.c.b16 %v3740, %v3739
      %v3938 = vpack.c.b16 %v3742, %v3741
      %v3939 = vpack.c.b16 %v3744, %v3743
      %v3940 = vpack.c.b16 %v3746, %v3745
      %v3941 = vpack.c.b16 %v3748, %v3747
      %v3942 = vpack.c.b16 %v3750, %v3749
      %v3943 = vpack.c.b16 %v3752, %v3751
      %v3944 = vpack.c.b16 %v3754, %v3753
      %v3945 = vpack.c.b16 %v3756, %v3755
      %v3946 = vpack.c.b16 %v3758, %v3757
      %v3947 = vpack.c.b16 %v3760, %v3759
      %v3948 = vpack.c.b16 %v3762, %v3761
      %v3949 = vpack.c.b16 %v3764, %v3763
      %v3950 = vpack.c.b16 %v3766, %v3765
      %v3951 = vpack.c.b16 %v3768, %v3767
      %v3952 = vpack.c.b16 %v3770, %v3769
      %v3953 = vpack.c.b16 %v3772, %v3771
      %v3954 = vpack.c.b16 %v3774, %v3773
      %v3955 = vpack.c.b16 %v3776, %v3775
      %v3956 = vpack.c.b16 %v3778, %v3777
      %v3957 = vpack.c.b16 %v3780, %v3779
      %v3958 = vpack.c.b16 %v3782, %v3781
      %v3959 = vpack.c.b16 %v3784, %v3783
      %v3960 = vpack.c.b16 %v3786, %v3785
      %v3961 = vpack.c.b16 %v3788, %v3787
      %v3962 = vpack.c.b16 %v3790, %v3789
      %v3963 = vpack.c.b16 %v3792, %v3791
      %v3964 = vpack.c.b16 %v3794, %v3793
      %v3965 = vpack.c.b16 %v3796, %v3795
      %v3966 = vpack.c.b16 %v3798, %v3797
      %v3967 = vpack.c.b16 %v3800, %v3799
      %v3968 = vpack.c.b16 %v3802, %v3801
      %v3969 = vpack.c.b16 %v3804, %v3803
      %v3970 = vpack.c.b16 %v3806, %v3805
      %v3971 = vpack.c.b16 %v3808, %v3807
      %v3972 = vpack.c.b16 %v3810, %v3809
      %v3973 = vpack.c.b16 %v3812, %v3811
      %v3974 = vpack.c.b16 %v3814, %v3813
      %v3975 = vpack.c.b16 %v3816, %v3815
      %v3976 = vpack.c.b16 %v3818, %v3817
      %v3977 = vpack.c.b16 %v3820, %v3819
      %v3978 = vpack.c.b16 %v3822, %v3821
      %v3979 = vpack.c.b16 %v3824, %v3823
      %v3980 = vpack.c.b16 %v3826, %v3825
      %v3981 = vpack.c.b16 %v3828, %v3827
      %v3982 = vpack.c.b16 %v3830, %v3829
      %v3983 = vpack.c.b16 %v3832, %v3831
      %v3984 = vpack.c.b16 %v3834, %v3833
      %v3985 = vpack.c.b16 %v3836, %v3835
      %v3986 = vpack.c.b16 %v3838, %v3837
      %v3987 = vpack.c.b16 %v3840, %v3839
      %v3988 = vpack.c.b16 %v3842, %v3841
      %v3989 = vpack.c.b16 %v3844, %v3843
      %v3990 = vpack.c.b16 %v3846, %v3845
      %v3991 = vpack.c.b16 %v3848, %v3847
      %v3992 = vpack.c.b16 %v3850, %v3849
      %v3993 = vpack.c.b16 %v3852, %v3851
      %v3994 = vpack.c.b16 %v3854, %v3853
      %v3995 = vpack.c.b16 %v3856, %v3855
      %v3996 = vpack.c.b16 %v3858, %v3857
      %v3997 = vpack.c.b16 %v3860, %v3859
      %v3998 = vpack.c.b16 %v3862, %v3861
      %v3999 = vpack.c.b16 %v3864, %v3863
      %v4000 = vpack.c.b16 %v3866, %v3865
      %v4001 = vpack.c.b16 %v3868, %v3867
      %v4002 = vpack.c.b16 %v3870, %v3869
      %v4003 = vpack.c.b16 %v3872, %v3871
      %v4004 = vpack.c.b16 %v3874, %v3873
      %v4005 = vpack.c.b16 %v3876, %v3875
      %v4006 = vpack.c.b16 %v3878, %v3877
      %4135 = vmatprep.subr.bf16.mxu0 0
      %4136 = vmatpush1.bf16.msra.mxu0 %v3879
      %4137 = vmatprep.subr.bf16.mxu0 0
      %4138 = vmatpush1.bf16.msra.mxu0 %v3880
      %4139 = vmatprep.subr.bf16.mxu0 0
      %4140 = vmatpush1.bf16.msra.mxu0 %v3881
      %4141 = vmatprep.subr.bf16.mxu0 0
      %4142 = vmatpush1.bf16.msra.mxu0 %v3882
      %4143 = vmatprep.subr.bf16.mxu0 0
      %4144 = vmatpush1.bf16.msra.mxu0 %v3883
      %4145 = vmatprep.subr.bf16.mxu0 0
      %4146 = vmatpush1.bf16.msra.mxu0 %v3884
      %4147 = vmatprep.subr.bf16.mxu0 0
      %4148 = vmatpush1.bf16.msra.mxu0 %v3885
      %4149 = vmatprep.subr.bf16.mxu0 0
      %4150 = vmatpush1.bf16.msra.mxu0 %v3886
      %4151 = vmatprep.subr.bf16.mxu0 0
      %4152 = vmatpush1.bf16.msra.mxu0 %v3887
      %4153 = vmatprep.subr.bf16.mxu0 0
      %4154 = vmatpush1.bf16.msra.mxu0 %v3888
      %4155 = vmatprep.subr.bf16.mxu0 0
      %4156 = vmatpush1.bf16.msra.mxu0 %v3889
      %4157 = vmatprep.subr.bf16.mxu0 0
      %4158 = vmatpush1.bf16.msra.mxu0 %v3890
      %4159 = vmatprep.subr.bf16.mxu0 0
      %4160 = vmatpush1.bf16.msra.mxu0 %v3891
      %4161 = vmatprep.subr.bf16.mxu0 0
      %4162 = vmatpush1.bf16.msra.mxu0 %v3892
      %4163 = vmatprep.subr.bf16.mxu0 0
      %4164 = vmatpush1.bf16.msra.mxu0 %v3893
      %4165 = vmatprep.subr.bf16.mxu0 0
      %4166 = vmatpush1.bf16.msra.mxu0 %v3894
      %4167 = vmatprep.mubr.bf16.mxu0 %v3080
      %4168 = vmatmul.mubr.bf16.gmra.mrb[0].mxu0 %v3079
      %v4169 = vpop.f32.mrb[0].mxu0
      %v4170 = vadd.f32 0.0, %v4169
      %v4171 = vpop.f32.mrb[0].mxu0
      %v4172 = vpop.f32.mrb[0].mxu0
      %v4173 = vadd.f32 0.0, %v4172
      %v4174 = vpop.f32.mrb[0].mxu0
      %4175 = vmatprep.mubr.bf16.mxu0 %v3096
      %4176 = vmatmul.mubr.bf16.gmra.mrb[0].mxu0 %v3095
      %v4177 = vpop.f32.mrb[0].mxu0
      %v4178 = vadd.f32 0.0, %v4177
      %v4179 = vpop.f32.mrb[0].mxu0
      %v4180 = vpop.f32.mrb[0].mxu0
      %v4181 = vadd.f32 0.0, %v4180
      %v4182 = vpop.f32.mrb[0].mxu0
      %4183 = vdwg.mxu0
      %4184 = vmatprep.subr.bf16.mxu0 0
      %4185 = vmatpush1.bf16.msra.mxu0 %v3895
      %4186 = vmatprep.subr.bf16.mxu0 0
      %4187 = vmatpush1.bf16.msra.mxu0 %v3896
      %4188 = vmatprep.subr.bf16.mxu0 0
      %4189 = vmatpush1.bf16.msra.mxu0 %v3897
      %4190 = vmatprep.subr.bf16.mxu0 0
      %4191 = vmatpush1.bf16.msra.mxu0 %v3898
      %4192 = vmatprep.subr.bf16.mxu0 0
      %4193 = vmatpush1.bf16.msra.mxu0 %v3899
      %4194 = vmatprep.subr.bf16.mxu0 0
      %4195 = vmatpush1.bf16.msra.mxu0 %v3900
      %4196 = vmatprep.subr.bf16.mxu0 0
      %4197 = vmatpush1.bf16.msra.mxu0 %v3901
      %4198 = vmatprep.subr.bf16.mxu0 0
      %4199 = vmatpush1.bf16.msra.mxu0 %v3902
      %4200 = vmatprep.subr.bf16.mxu0 0
      %4201 = vmatpush1.bf16.msra.mxu0 %v3903
      %4202 = vmatprep.subr.bf16.mxu0 0
      %4203 = vmatpush1.bf16.msra.mxu0 %v3904
      %4204 = vmatprep.subr.bf16.mxu0 0
      %4205 = vmatpush1.bf16.msra.mxu0 %v3905
      %4206 = vmatprep.subr.bf16.mxu0 0
      %4207 = vmatpush1.bf16.msra.mxu0 %v3906
      %4208 = vmatprep.subr.bf16.mxu0 0
      %4209 = vmatpush1.bf16.msra.mxu0 %v3907
      %4210 = vmatprep.subr.bf16.mxu0 0
      %4211 = vmatpush1.bf16.msra.mxu0 %v3908
      %4212 = vmatprep.subr.bf16.mxu0 0
      %4213 = vmatpush1.bf16.msra.mxu0 %v3909
      %4214 = vmatprep.subr.bf16.mxu0 0
      %4215 = vmatpush1.bf16.msra.mxu0 %v3910
      %4216 = vmatprep.mubr.bf16.mxu0 %v3082
      %4217 = vmatmul.mubr.bf16.gmra.mrb[0].mxu0 %v3081
      %v4218 = vpop.f32.mrb[0].mxu0
      %v4219 = vadd.f32 %v4170, %v4218
      %v4220 = vpop.f32.mrb[0].mxu0
      %v4221 = vpop.f32.mrb[0].mxu0
      %v4222 = vadd.f32 %v4173, %v4221
      %v4223 = vpop.f32.mrb[0].mxu0
      %4224 = vmatprep.mubr.bf16.mxu0 %v3098
      %4225 = vmatmul.mubr.bf16.gmra.mrb[0].mxu0 %v3097
      %v4226 = vpop.f32.mrb[0].mxu0
      %v4227 = vadd.f32 %v4178, %v4226
      %v4228 = vpop.f32.mrb[0].mxu0
      %v4229 = vpop.f32.mrb[0].mxu0
      %v4230 = vadd.f32 %v4181, %v4229
      %v4231 = vpop.f32.mrb[0].mxu0
      %4232 = vdwg.mxu0
      %4233 = vmatprep.subr.bf16.mxu0 0
      %4234 = vmatpush1.bf16.msra.mxu0 %v3911
      %4235 = vmatprep.subr.bf16.mxu0 0
      %4236 = vmatpush1.bf16.msra.mxu0 %v3912
      %4237 = vmatprep.subr.bf16.mxu0 0
      %4238 = vmatpush1.bf16.msra.mxu0 %v3913
      %4239 = vmatprep.subr.bf16.mxu0 0
      %4240 = vmatpush1.bf16.msra.mxu0 %v3914
      %4241 = vmatprep.subr.bf16.mxu0 0
      %4242 = vmatpush1.bf16.msra.mxu0 %v3915
      %4243 = vmatprep.subr.bf16.mxu0 0
      %4244 = vmatpush1.bf16.msra.mxu0 %v3916
      %4245 = vmatprep.subr.bf16.mxu0 0
      %4246 = vmatpush1.bf16.msra.mxu0 %v3917
      %4247 = vmatprep.subr.bf16.mxu0 0
      %4248 = vmatpush1.bf16.msra.mxu0 %v3918
      %4249 = vmatprep.subr.bf16.mxu0 0
      %4250 = vmatpush1.bf16.msra.mxu0 %v3919
      %4251 = vmatprep.subr.bf16.mxu0 0
      %4252 = vmatpush1.bf16.msra.mxu0 %v3920
      %4253 = vmatprep.subr.bf16.mxu0 0
      %4254 = vmatpush1.bf16.msra.mxu0 %v3921
      %4255 = vmatprep.subr.bf16.mxu0 0
      %4256 = vmatpush1.bf16.msra.mxu0 %v3922
      %4257 = vmatprep.subr.bf16.mxu0 0
      %4258 = vmatpush1.bf16.msra.mxu0 %v3923
      %4259 = vmatprep.subr.bf16.mxu0 0
      %4260 = vmatpush1.bf16.msra.mxu0 %v3924
      %4261 = vmatprep.subr.bf16.mxu0 0
      %4262 = vmatpush1.bf16.msra.mxu0 %v3925
      %4263 = vmatprep.subr.bf16.mxu0 0
      %4264 = vmatpush1.bf16.msra.mxu0 %v3926
      %4265 = vmatprep.mubr.bf16.mxu0 %v3084
      %4266 = vmatmul.mubr.bf16.gmra.mrb[0].mxu0 %v3083
      %v4267 = vpop.f32.mrb[0].mxu0
      %v4268 = vadd.f32 %v4219, %v4267
      %v4269 = vpop.f32.mrb[0].mxu0
      %v4270 = vpop.f32.mrb[0].mxu0
      %v4271 = vadd.f32 %v4222, %v4270
      %v4272 = vpop.f32.mrb[0].mxu0
      %4273 = vmatprep.mubr.bf16.mxu0 %v3100
      %4274 = vmatmul.mubr.bf16.gmra.mrb[0].mxu0 %v3099
      %v4275 = vpop.f32.mrb[0].mxu0
      %v4276 = vadd.f32 %v4227, %v4275
      %v4277 = vpop.f32.mrb[0].mxu0
      %v4278 = vpop.f32.mrb[0].mxu0
      %v4279 = vadd.f32 %v4230, %v4278
      %v4280 = vpop.f32.mrb[0].mxu0
      %4281 = vdwg.mxu0
      %4282 = vmatprep.subr.bf16.mxu0 0
      %4283 = vmatpush1.bf16.msra.mxu0 %v3927
      %4284 = vmatprep.subr.bf16.mxu0 0
      %4285 = vmatpush1.bf16.msra.mxu0 %v3928
      %4286 = vmatprep.subr.bf16.mxu0 0
      %4287 = vmatpush1.bf16.msra.mxu0 %v3929
      %4288 = vmatprep.subr.bf16.mxu0 0
      %4289 = vmatpush1.bf16.msra.mxu0 %v3930
      %4290 = vmatprep.subr.bf16.mxu0 0
      %4291 = vmatpush1.bf16.msra.mxu0 %v3931
      %4292 = vmatprep.subr.bf16.mxu0 0
      %4293 = vmatpush1.bf16.msra.mxu0 %v3932
      %4294 = vmatprep.subr.bf16.mxu0 0
      %4295 = vmatpush1.bf16.msra.mxu0 %v3933
      %4296 = vmatprep.subr.bf16.mxu0 0
      %4297 = vmatpush1.bf16.msra.mxu0 %v3934
      %4298 = vmatprep.subr.bf16.mxu0 0
      %4299 = vmatpush1.bf16.msra.mxu0 %v3935
      %4300 = vmatprep.subr.bf16.mxu0 0
      %4301 = vmatpush1.bf16.msra.mxu0 %v3936
      %4302 = vmatprep.subr.bf16.mxu0 0
      %4303 = vmatpush1.bf16.msra.mxu0 %v3937
      %4304 = vmatprep.subr.bf16.mxu0 0
      %4305 = vmatpush1.bf16.msra.mxu0 %v3938
      %4306 = vmatprep.subr.bf16.mxu0 0
      %4307 = vmatpush1.bf16.msra.mxu0 %v3939
      %4308 = vmatprep.subr.bf16.mxu0 0
      %4309 = vmatpush1.bf16.msra.mxu0 %v3940
      %4310 = vmatprep.subr.bf16.mxu0 0
      %4311 = vmatpush1.bf16.msra.mxu0 %v3941
      %4312 = vmatprep.subr.bf16.mxu0 0
      %4313 = vmatpush1.bf16.msra.mxu0 %v3942
      %4314 = vmatprep.mubr.bf16.mxu0 %v3086
      %4315 = vmatmul.mubr.bf16.gmra.mrb[0].mxu0 %v3085
      %v4316 = vpop.f32.mrb[0].mxu0
      %v4317 = vadd.f32 %v4268, %v4316
      %v4318 = vpop.f32.mrb[0].mxu0
      %v4319 = vpop.f32.mrb[0].mxu0
      %v4320 = vadd.f32 %v4271, %v4319
      %v4321 = vpop.f32.mrb[0].mxu0
      %4322 = vmatprep.mubr.bf16.mxu0 %v3102
      %4323 = vmatmul.mubr.bf16.gmra.mrb[0].mxu0 %v3101
      %v4324 = vpop.f32.mrb[0].mxu0
      %v4325 = vadd.f32 %v4276, %v4324
      %v4326 = vpop.f32.mrb[0].mxu0
      %v4327 = vpop.f32.mrb[0].mxu0
      %v4328 = vadd.f32 %v4279, %v4327
      %v4329 = vpop.f32.mrb[0].mxu0
      %4330 = vdwg.mxu0
      %4331 = vmatprep.subr.bf16.mxu0 0
      %4332 = vmatpush1.bf16.msra.mxu0 %v3943
      %4333 = vmatprep.subr.bf16.mxu0 0
      %4334 = vmatpush1.bf16.msra.mxu0 %v3944
      %4335 = vmatprep.subr.bf16.mxu0 0
      %4336 = vmatpush1.bf16.msra.mxu0 %v3945
      %4337 = vmatprep.subr.bf16.mxu0 0
      %4338 = vmatpush1.bf16.msra.mxu0 %v3946
      %4339 = vmatprep.subr.bf16.mxu0 0
      %4340 = vmatpush1.bf16.msra.mxu0 %v3947
      %4341 = vmatprep.subr.bf16.mxu0 0
      %4342 = vmatpush1.bf16.msra.mxu0 %v3948
      %4343 = vmatprep.subr.bf16.mxu0 0
      %4344 = vmatpush1.bf16.msra.mxu0 %v3949
      %4345 = vmatprep.subr.bf16.mxu0 0
      %4346 = vmatpush1.bf16.msra.mxu0 %v3950
      %4347 = vmatprep.subr.bf16.mxu0 0
      %4348 = vmatpush1.bf16.msra.mxu0 %v3951
      %4349 = vmatprep.subr.bf16.mxu0 0
      %4350 = vmatpush1.bf16.msra.mxu0 %v3952
      %4351 = vmatprep.subr.bf16.mxu0 0
      %4352 = vmatpush1.bf16.msra.mxu0 %v3953
      %4353 = vmatprep.subr.bf16.mxu0 0
      %4354 = vmatpush1.bf16.msra.mxu0 %v3954
      %4355 = vmatprep.subr.bf16.mxu0 0
      %4356 = vmatpush1.bf16.msra.mxu0 %v3955
      %4357 = vmatprep.subr.bf16.mxu0 0
      %4358 = vmatpush1.bf16.msra.mxu0 %v3956
      %4359 = vmatprep.subr.bf16.mxu0 0
      %4360 = vmatpush1.bf16.msra.mxu0 %v3957
      %4361 = vmatprep.subr.bf16.mxu0 0
      %4362 = vmatpush1.bf16.msra.mxu0 %v3958
      %4363 = vmatprep.mubr.bf16.mxu0 %v3088
      %4364 = vmatmul.mubr.bf16.gmra.mrb[0].mxu0 %v3087
      %v4365 = vpop.f32.mrb[0].mxu0
      %v4366 = vadd.f32 %v4317, %v4365
      %v4367 = vpop.f32.mrb[0].mxu0
      %v4368 = vpop.f32.mrb[0].mxu0
      %v4369 = vadd.f32 %v4320, %v4368
      %v4370 = vpop.f32.mrb[0].mxu0
      %4371 = vmatprep.mubr.bf16.mxu0 %v3104
      %4372 = vmatmul.mubr.bf16.gmra.mrb[0].mxu0 %v3103
      %v4373 = vpop.f32.mrb[0].mxu0
      %v4374 = vadd.f32 %v4325, %v4373
      %v4375 = vpop.f32.mrb[0].mxu0
      %v4376 = vpop.f32.mrb[0].mxu0
      %v4377 = vadd.f32 %v4328, %v4376
      %v4378 = vpop.f32.mrb[0].mxu0
      %4379 = vdwg.mxu0
      %4380 = vmatprep.subr.bf16.mxu0 0
      %4381 = vmatpush1.bf16.msra.mxu0 %v3959
      %4382 = vmatprep.subr.bf16.mxu0 0
      %4383 = vmatpush1.bf16.msra.mxu0 %v3960
      %4384 = vmatprep.subr.bf16.mxu0 0
      %4385 = vmatpush1.bf16.msra.mxu0 %v3961
      %4386 = vmatprep.subr.bf16.mxu0 0
      %4387 = vmatpush1.bf16.msra.mxu0 %v3962
      %4388 = vmatprep.subr.bf16.mxu0 0
      %4389 = vmatpush1.bf16.msra.mxu0 %v3963
      %4390 = vmatprep.subr.bf16.mxu0 0
      %4391 = vmatpush1.bf16.msra.mxu0 %v3964
      %4392 = vmatprep.subr.bf16.mxu0 0
      %4393 = vmatpush1.bf16.msra.mxu0 %v3965
      %4394 = vmatprep.subr.bf16.mxu0 0
      %4395 = vmatpush1.bf16.msra.mxu0 %v3966
      %4396 = vmatprep.subr.bf16.mxu0 0
      %4397 = vmatpush1.bf16.msra.mxu0 %v3967
      %4398 = vmatprep.subr.bf16.mxu0 0
      %4399 = vmatpush1.bf16.msra.mxu0 %v3968
      %4400 = vmatprep.subr.bf16.mxu0 0
      %4401 = vmatpush1.bf16.msra.mxu0 %v3969
      %4402 = vmatprep.subr.bf16.mxu0 0
      %4403 = vmatpush1.bf16.msra.mxu0 %v3970
      %4404 = vmatprep.subr.bf16.mxu0 0
      %4405 = vmatpush1.bf16.msra.mxu0 %v3971
      %4406 = vmatprep.subr.bf16.mxu0 0
      %4407 = vmatpush1.bf16.msra.mxu0 %v3972
      %4408 = vmatprep.subr.bf16.mxu0 0
      %4409 = vmatpush1.bf16.msra.mxu0 %v3973
      %4410 = vmatprep.subr.bf16.mxu0 0
      %4411 = vmatpush1.bf16.msra.mxu0 %v3974
      %4412 = vmatprep.mubr.bf16.mxu0 %v3090
      %4413 = vmatmul.mubr.bf16.gmra.mrb[0].mxu0 %v3089
      %v4414 = vpop.f32.mrb[0].mxu0
      %v4415 = vadd.f32 %v4366, %v4414
      %v4416 = vpop.f32.mrb[0].mxu0
      %v4417 = vpop.f32.mrb[0].mxu0
      %v4418 = vadd.f32 %v4369, %v4417
      %v4419 = vpop.f32.mrb[0].mxu0
      %4420 = vmatprep.mubr.bf16.mxu0 %v3106
      %4421 = vmatmul.mubr.bf16.gmra.mrb[0].mxu0 %v3105
      %v4422 = vpop.f32.mrb[0].mxu0
      %v4423 = vadd.f32 %v4374, %v4422
      %v4424 = vpop.f32.mrb[0].mxu0
      %v4425 = vpop.f32.mrb[0].mxu0
      %v4426 = vadd.f32 %v4377, %v4425
      %v4427 = vpop.f32.mrb[0].mxu0
      %4428 = vdwg.mxu0
      %4429 = vmatprep.subr.bf16.mxu0 0
      %4430 = vmatpush1.bf16.msra.mxu0 %v3975
      %4431 = vmatprep.subr.bf16.mxu0 0
      %4432 = vmatpush1.bf16.msra.mxu0 %v3976
      %4433 = vmatprep.subr.bf16.mxu0 0
      %4434 = vmatpush1.bf16.msra.mxu0 %v3977
      %4435 = vmatprep.subr.bf16.mxu0 0
      %4436 = vmatpush1.bf16.msra.mxu0 %v3978
      %4437 = vmatprep.subr.bf16.mxu0 0
      %4438 = vmatpush1.bf16.msra.mxu0 %v3979
      %4439 = vmatprep.subr.bf16.mxu0 0
      %4440 = vmatpush1.bf16.msra.mxu0 %v3980
      %4441 = vmatprep.subr.bf16.mxu0 0
      %4442 = vmatpush1.bf16.msra.mxu0 %v3981
      %4443 = vmatprep.subr.bf16.mxu0 0
      %4444 = vmatpush1.bf16.msra.mxu0 %v3982
      %4445 = vmatprep.subr.bf16.mxu0 0
      %4446 = vmatpush1.bf16.msra.mxu0 %v3983
      %4447 = vmatprep.subr.bf16.mxu0 0
      %4448 = vmatpush1.bf16.msra.mxu0 %v3984
      %4449 = vmatprep.subr.bf16.mxu0 0
      %4450 = vmatpush1.bf16.msra.mxu0 %v3985
      %4451 = vmatprep.subr.bf16.mxu0 0
      %4452 = vmatpush1.bf16.msra.mxu0 %v3986
      %4453 = vmatprep.subr.bf16.mxu0 0
      %4454 = vmatpush1.bf16.msra.mxu0 %v3987
      %4455 = vmatprep.subr.bf16.mxu0 0
      %4456 = vmatpush1.bf16.msra.mxu0 %v3988
      %4457 = vmatprep.subr.bf16.mxu0 0
      %4458 = vmatpush1.bf16.msra.mxu0 %v3989
      %4459 = vmatprep.subr.bf16.mxu0 0
      %4460 = vmatpush1.bf16.msra.mxu0 %v3990
      %4461 = vmatprep.mubr.bf16.mxu0 %v3092
      %4462 = vmatmul.mubr.bf16.gmra.mrb[0].mxu0 %v3091
      %v4463 = vpop.f32.mrb[0].mxu0
      %v4464 = vadd.f32 %v4415, %v4463
      %v4465 = vpop.f32.mrb[0].mxu0
      %v4466 = vpop.f32.mrb[0].mxu0
      %v4467 = vadd.f32 %v4418, %v4466
      %v4468 = vpop.f32.mrb[0].mxu0
      %4469 = vmatprep.mubr.bf16.mxu0 %v3108
      %4470 = vmatmul.mubr.bf16.gmra.mrb[0].mxu0 %v3107
      %v4471 = vpop.f32.mrb[0].mxu0
      %v4472 = vadd.f32 %v4423, %v4471
      %v4473 = vpop.f32.mrb[0].mxu0
      %v4474 = vpop.f32.mrb[0].mxu0
      %v4475 = vadd.f32 %v4426, %v4474
      %v4476 = vpop.f32.mrb[0].mxu0
      %4477 = vdwg.mxu0
      %4478 = vmatprep.subr.bf16.mxu0 0
      %4479 = vmatpush1.bf16.msra.mxu0 %v3991
      %4480 = vmatprep.subr.bf16.mxu0 0
      %4481 = vmatpush1.bf16.msra.mxu0 %v3992
      %4482 = vmatprep.subr.bf16.mxu0 0
      %4483 = vmatpush1.bf16.msra.mxu0 %v3993
      %4484 = vmatprep.subr.bf16.mxu0 0
      %4485 = vmatpush1.bf16.msra.mxu0 %v3994
      %4486 = vmatprep.subr.bf16.mxu0 0
      %4487 = vmatpush1.bf16.msra.mxu0 %v3995
      %4488 = vmatprep.subr.bf16.mxu0 0
      %4489 = vmatpush1.bf16.msra.mxu0 %v3996
      %4490 = vmatprep.subr.bf16.mxu0 0
      %4491 = vmatpush1.bf16.msra.mxu0 %v3997
      %4492 = vmatprep.subr.bf16.mxu0 0
      %4493 = vmatpush1.bf16.msra.mxu0 %v3998
      %4494 = vmatprep.subr.bf16.mxu0 0
      %4495 = vmatpush1.bf16.msra.mxu0 %v3999
      %4496 = vmatprep.subr.bf16.mxu0 0
      %4497 = vmatpush1.bf16.msra.mxu0 %v4000
      %4498 = vmatprep.subr.bf16.mxu0 0
      %4499 = vmatpush1.bf16.msra.mxu0 %v4001
      %4500 = vmatprep.subr.bf16.mxu0 0
      %4501 = vmatpush1.bf16.msra.mxu0 %v4002
      %4502 = vmatprep.subr.bf16.mxu0 0
      %4503 = vmatpush1.bf16.msra.mxu0 %v4003
      %4504 = vmatprep.subr.bf16.mxu0 0
      %4505 = vmatpush1.bf16.msra.mxu0 %v4004
      %4506 = vmatprep.subr.bf16.mxu0 0
      %4507 = vmatpush1.bf16.msra.mxu0 %v4005
      %4508 = vmatprep.subr.bf16.mxu0 0
      %4509 = vmatpush1.bf16.msra.mxu0 %v4006
      %4510 = vmatprep.mubr.bf16.mxu0 %v3094
      %4511 = vmatmul.mubr.bf16.gmra.mrb[0].mxu0 %v3093
      %v4512 = vpop.f32.mrb[0].mxu0
      %v4513 = vadd.f32 %v4464, %v4512
      %v4514 = vpop.f32.mrb[0].mxu0
      %v4515 = vpop.f32.mrb[0].mxu0
      %v4516 = vadd.f32 %v4467, %v4515
      %v4517 = vpop.f32.mrb[0].mxu0
      %4518 = vmatprep.mubr.bf16.mxu0 %v3110
      %4519 = vmatmul.mubr.bf16.gmra.mrb[0].mxu0 %v3109
      %v4520 = vpop.f32.mrb[0].mxu0
      %v4521 = vadd.f32 %v4472, %v4520
      %v4522 = vpop.f32.mrb[0].mxu0
      %v4523 = vpop.f32.mrb[0].mxu0
      %v4524 = vadd.f32 %v4475, %v4523
      %v4525 = vpop.f32.mrb[0].mxu0
      %4526 = vdwg.mxu0
      %4527 = vst.msk [vmem:[%s369] sm:$0xff] %vm761, %v4513
      %4528 = vst.msk [vmem:[%s369 + $0x8] sm:$0xff] %vm761, %v4516
      %4529 = vst.msk [vmem:[%s369 + $0x10] sm:$0xff] %vm761, %v4521
      %4530 = vst.msk [vmem:[%s369 + $0x18] sm:$0xff] %vm761, %v4524
      %p4531 = scmp.lt.s32.totalorder %s18, 1
      %s4532 = scalar_select %p4531, %s18, 1
      %s4533 = smul.addr %s4532, 4
      %s4534 = smul.addr %s4533, 8
      %s4535 = scalar_lea.vmem %s7, %s4534
      // Predicated region
      $region49: #{separator_forward.1} parent=47 // pred_check
        %p4536 = pneg %p213
      $region50: #{separator_forward.1} parent=47 // pred_check_branch
        %4538 = sbr.rel (%p4536) target = $region52
      $region51: #{separator_forward.1} parent=47 // pred_region
        _
      $region52: #{separator_forward.1} parent=47 // pred_fallthru
        _
    $region48: #{separator_forward.1} parent=5 // pred_fallthru
      _
    %p4539 = scmp.le.s32.totalorder 2, %s13
    // Predicated region
    $region53: #{separator_forward.1} parent=5 // pred_check
      %p4540 = pneg %p4539
    $region54: #{separator_forward.1} parent=5 // pred_check_branch
      %4542 = sbr.rel (%p4540) target = $region56
    $region55: #{separator_forward.1} parent=5 // pred_region
      %s4543 = ssub.s32 %s13, 2
      // Predicated region
      $region57: #{separator_forward.1} parent=55 // pred_check
        %p4544 = pneg %p219
      $region58: #{separator_forward.1} parent=55 // pred_check_branch
        %4546 = sbr.rel (%p4544) target = $region60
      $region59: #{separator_forward.1} parent=55 // pred_region
        %p4547 = scmp.lt.s32.totalorder %s19, 1
        %s4548 = scalar_select %p4547, %s19, 1
        %s4549 = smul.addr %s4548, 4
        %s4550 = smul.addr %s4549, 8
        %s4551 = scalar_lea.vmem %s7, %s4550
      $region60: #{separator_forward.1} parent=55 // pred_fallthru
        _
    $region56: #{separator_forward.1} parent=5 // pred_fallthru
      _
  $region6: #{separator_forward.1} parent=0 // loop_footer
    %s17 = sadd.s32 1, %s13
  $region7: #{separator_forward.1} parent=0 // loop_footer_branch
    %12 = sbr.rel target = $region3
  $region8: #{separator_forward.1} parent=0 // loop_exit
    _

</llo_original>
